<compile_context>
chip_gen: v6e
topology: v6e:2x2x1
jax: 0.10.0
libtpu: 0.0.40
codegen_flags: <defaults>
</compile_context>

<pallas_src>
import jax
import jax.numpy as jnp
from jax import lax
from jax.experimental import pallas as pl
from jax.experimental.pallas import tpu as pltpu


# --------------------------------------------------------------------------- #
# Kernel
# --------------------------------------------------------------------------- #
def _make_kernel(TH, W, Cin, C1, C2):
    """One grid step = one (image, row-strip)."""

    def kernel(xa_ref, xt_ref, xb_ref, w1_ref, b1_ref, w2_ref, b2_ref,
               o_ref, ypad_ref):
        # xa_ref  : (1, TH, W, Cin)  strip rows [i*TH, (i+1)*TH)  (also residual)
        # xt_ref  : (1, 1,  W, Cin)  halo row  i*TH - 1   (clamped to row 0)
        # xb_ref  : (1, 1,  W, Cin)  halo row (i+1)*TH    (clamped to row H-1)
        # w1_ref  : (Cin, C1)        1x1 conv, BN1 scale folded in
        # w2_ref  : (9*C1, C2) or (9, C1, C2)  3x3 conv taps, BN2 scale folded
        # b1/b2   : (1, C)           folded BN biases (f32)
        # o_ref   : (1, TH, W, C2)
        # ypad_ref: (TH+2, W+2, C1)  zero-padded conv1 output for this strip
        i = pl.program_id(1)
        nstrips = pl.num_programs(1)

        # ---- conv1 (1x1) + BN1 bias + LeakyReLU(0.1) on all TH+2 rows ----
        x_all = jnp.concatenate([xt_ref[0], xa_ref[0], xb_ref[0]], axis=0)
        xm = x_all.reshape((TH + 2) * W, Cin).astype(w1_ref.dtype)
        y = jnp.dot(xm, w1_ref[...], preferred_element_type=jnp.float32)
        y = y + b1_ref[...]
        y = jnp.where(y > 0, y, 0.1 * y)
        ypad_ref[:, 1:W + 1, :] = y.reshape(TH + 2, W, C1).astype(ypad_ref.dtype)

        # conv2's zero padding: W borders every step (tiny); out-of-image H
        # rows only on the first / last strip of the image (the clamped halo
        # fetch for those strips is garbage and is overwritten here).
        zcol = jnp.zeros((TH + 2, 1, C1), ypad_ref.dtype)
        ypad_ref[:, 0:1, :] = zcol
        ypad_ref[:, W + 1:W + 2, :] = zcol

        @pl.when(i == 0)
        def _():
            ypad_ref[0:1, :, :] = jnp.zeros((1, W + 2, C1), ypad_ref.dtype)

        @pl.when(i == nstrips - 1)
        def _():
            ypad_ref[TH + 1:TH + 2, :, :] = jnp.zeros((1, W + 2, C1),
                                                      ypad_ref.dtype)

        # ---- conv2 (3x3, pad=1) + BN2 bias + LeakyReLU(0.1) ----
        if C1 <= 64:
            # small C1: one K=9*C1 im2col matmul keeps the MXU fed.
            taps = [ypad_ref[ky:ky + TH, kx:kx + W, :].reshape(TH * W, C1)
                    for ky in range(3) for kx in range(3)]
            col = jnp.concatenate(taps, axis=1)                   # (TH*W, 9*C1)
            z = jnp.dot(col, w2_ref[...], preferred_element_type=jnp.float32)
        else:
            # large C1: 9 accumulating K=C1 matmuls, no im2col slab / concat.
            z = jnp.zeros((TH * W, C2), jnp.float32)
            for t in range(9):
                ky, kx = divmod(t, 3)
                tap = ypad_ref[ky:ky + TH, kx:kx + W, :].reshape(TH * W, C1)
                z = z + jnp.dot(tap, w2_ref[t],
                                preferred_element_type=jnp.float32)
        z = z + b2_ref[...]
        z = jnp.where(z > 0, z, 0.1 * z)

        # ---- residual add + store the strip ----
        # TODO(synk): lane-dense (TH, W*C2) output layout for C2 < 128 layers.
        o_ref[0] = (z.reshape(TH, W, C2) + xa_ref[0]).astype(o_ref.dtype)

    return kernel


# --------------------------------------------------------------------------- #
# Sizing helpers
# --------------------------------------------------------------------------- #
def _vmem_capacity_bytes():
    try:
        return int(pltpu.get_tpu_info().vmem_capacity_bytes)
    except Exception:                                    # pragma: no cover
        return 64 * 1024 * 1024                          # conservative default


def _pick_strip_height(N, H, W, Cin, C1, C2, mxu_itemsize, budget_bytes):
    """Largest multiple-of-8 strip height dividing H whose per-step VMEM
    footprint (pipelined blocks + weights + scratch + temporaries, lane/sublane
    padded) fits the budget, preferring N*nstrips >= 2 grid steps so both
    TensorCores get work."""

    def lanes(c):
        return ((c + 127) // 128) * 128

    def sub(r):
        return ((r + 7) // 8) * 8

    f32 = 4

    def footprint(th):
        # double-buffered activation blocks: strip in, two 1-row halos, strip out
        act = 2 * f32 * (th * sub(W) * lanes(Cin) + 2 * sub(W) * lanes(Cin)
                         + th * sub(W) * lanes(C2))
        # constant-index weight / bias blocks (single-buffered)
        wgt = (mxu_itemsize * (sub(Cin) * lanes(C1) + sub(9 * C1) * lanes(C2))
               + f32 * 8 * (lanes(C1) + lanes(C2)))
        # conv1 zero-padded output scratch
        scr = mxu_itemsize * (th + 2) * sub(W + 2) * lanes(C1)
        # in-kernel temporaries: conv1 slab (f32) + conv2 operand + accumulator
        tmp = (f32 * (th + 2) * sub(W) * lanes(C1)
               + f32 * th * sub(W) * lanes(C2))
        if C1 <= 64:
            tmp += mxu_itemsize * th * sub(W) * lanes(9 * C1)
        else:
            tmp += mxu_itemsize * th * sub(W) * lanes(C1)
        return act + wgt + scr + tmp

    cands = [th for th in range(8, H + 1, 8) if H % th == 0]
    fit = [th for th in cands if footprint(th) <= budget_bytes] or [cands[0]]
    multi = [th for th in fit if N * (H // th) >= 2]      # keep both TCs busy
    return max(multi or fit)


def _folded_params(w1, g1, b1, m1, v1, w2, g2, b2, m2, v2, eps, mxu_dtype):
    """Fold eval-mode BN scales into the conv weights; keep biases in f32."""
    C1, C2 = w1.shape[0], w2.shape[0]
    s1 = g1 / jnp.sqrt(v1 + eps)
    s2 = g2 / jnp.sqrt(v2 + eps)
    w1k = (jnp.transpose(w1[:, :, 0, 0], (1, 0)) * s1[None, :]).astype(mxu_dtype)
    w2k = (jnp.transpose(w2, (2, 3, 1, 0)).reshape(9 * C1, C2)
           * s2[None, :]).astype(mxu_dtype)               # tap-major (ky, kx)
    if C1 > 64:
        w2k = w2k.reshape(9, C1, C2)                      # per-tap matmul form
    bb1 = (b1 - m1 * s1).reshape(1, C1).astype(jnp.float32)
    bb2 = (b2 - m2 * s2).reshape(1, C2).astype(jnp.float32)
    return w1k, bb1, w2k, bb2


# --------------------------------------------------------------------------- #
# Forward wrappers
# --------------------------------------------------------------------------- #
def basic_block_forward_nhwc(x_nhwc, w1, g1, b1, m1, v1, w2, g2, b2, m2, v2,
                             eps=1e-5, mxu_dtype=jnp.bfloat16,
                             strip_height=None):
    """Fused BasicBlock forward on an NHWC activation (no layout transposes).

    mxu_dtype=jnp.bfloat16 (default) runs both matmuls on the bf16 MXU path;
    pass jnp.float32 for a tight match against an f32 reference.
    """
    N, H, W, Cin = x_nhwc.shape
    C1, C2 = w1.shape[0], w2.shape[0]
    assert C2 == Cin, "residual add requires planes[1] == in_planes"
    # TODO(synk): pad ragged H (not a multiple of 8) instead of asserting.
    assert H % 8 == 0, "row-strip tiling assumes H % 8 == 0"

    cap = _vmem_capacity_bytes()
    itemsize = jnp.dtype(mxu_dtype).itemsize
    TH = strip_height or _pick_strip_height(N, H, W, Cin, C1, C2, itemsize,
                                            budget_bytes=cap // 2)
    assert H % TH == 0 and TH % 8 == 0
    nstrips = H // TH

    x = x_nhwc.astype(jnp.float32)
    w1k, bb1, w2k, bb2 = _folded_params(w1, g1, b1, m1, v1, w2, g2, b2, m2, v2,
                                        eps, mxu_dtype)
    kernel = _make_kernel(TH, W, Cin, C1, C2)

    def build_call(single_buffer_consts):
        ckw = ({"pipeline_mode": pl.Buffered(1)} if single_buffer_consts
               else {})
        in_specs = [
            # main strip: rows [i*TH, (i+1)*TH)
            pl.BlockSpec((1, TH, W, Cin), lambda n, i: (n, i, 0, 0)),
            # 1-row halos, clamped to the image; out-of-image halo rows are
            # re-zeroed in-kernel (conv2's zero padding).
            pl.BlockSpec((1, 1, W, Cin),
                         lambda n, i: (n, jnp.maximum(i * TH - 1, 0), 0, 0)),
            pl.BlockSpec((1, 1, W, Cin),
                         lambda n, i: (n, jnp.minimum((i + 1) * TH, H - 1), 0, 0)),
            pl.BlockSpec(w1k.shape, lambda n, i: (0, 0), **ckw),
            pl.BlockSpec(bb1.shape, lambda n, i: (0, 0), **ckw),
            pl.BlockSpec(w2k.shape,
                         (lambda n, i: (0, 0, 0)) if w2k.ndim == 3
                         else (lambda n, i: (0, 0)), **ckw),
            pl.BlockSpec(bb2.shape, lambda n, i: (0, 0), **ckw),
        ]
        return pl.pallas_call(
            kernel,
            out_shape=jax.ShapeDtypeStruct((N, H, W, C2), jnp.float32),
            grid_spec=pltpu.PrefetchScalarGridSpec(
                num_scalar_prefetch=0,
                grid=(N, nstrips),
                in_specs=in_specs,
                out_specs=pl.BlockSpec((1, TH, W, C2),
                                       lambda n, i: (n, i, 0, 0)),
                scratch_shapes=[pltpu.VMEM((TH + 2, W + 2, C1), mxu_dtype)],
            ),
            compiler_params=pltpu.CompilerParams(
                dimension_semantics=("parallel", "parallel"),
                vmem_limit_bytes=(cap * 3) // 4,
            ),
        )

    args = (x, x, x, w1k, bb1, w2k, bb2)
    try:
        return build_call(True)(*args)
    except Exception:
        # pl.Buffered(1) single-buffering unsupported here: fall back to the
        # default double-buffering of the constant operands.
        return build_call(False)(*args)


def basic_block_forward(x_nchw, *params, **kw):
    """PyTorch-layout entry point: (N, Cin, H, W) in, (N, C2, H, W) out."""
    # TODO(synk): these two transposes are wrapper HBM traffic; NHWC models
    # should call basic_block_forward_nhwc directly.
    x = jnp.transpose(x_nchw, (0, 2, 3, 1))
    out = basic_block_forward_nhwc(x, *params, **kw)
    return jnp.transpose(out, (0, 3, 1, 2))


# --------------------------------------------------------------------------- #
# Reference + self-test
# --------------------------------------------------------------------------- #
def _reference_forward(x_nchw, w1, g1, b1, m1, v1, w2, g2, b2, m2, v2,
                       eps=1e-5):
    """Pure-JAX reference using lax.conv (NHWC), eval-mode BN semantics."""
    x = jnp.transpose(x_nchw, (0, 2, 3, 1)).astype(jnp.float32)
    w1h = jnp.transpose(w1, (2, 3, 1, 0))
    w2h = jnp.transpose(w2, (2, 3, 1, 0))
    dn = ("NHWC", "HWIO", "NHWC")
    hi = lax.Precision.HIGHEST

    y = lax.conv_general_dilated(x, w1h, (1, 1), "VALID",
                                 dimension_numbers=dn, precision=hi)
    y = (y - m1) / jnp.sqrt(v1 + eps) * g1 + b1
    y = jnp.where(y > 0, y, 0.1 * y)

    z = lax.conv_general_dilated(y, w2h, (1, 1), "SAME",
                                 dimension_numbers=dn, precision=hi)
    z = (z - m2) / jnp.sqrt(v2 + eps) * g2 + b2
    z = jnp.where(z > 0, z, 0.1 * z)

    out = z + x
    return jnp.transpose(out, (0, 3, 1, 2))


def _make_params(key, Cin, C1, C2):
    ks = jax.random.split(key, 11)
    w1 = 0.1 * jax.random.normal(ks[0], (C1, Cin, 1, 1), jnp.float32)
    g1 = 1.0 + 0.1 * jax.random.normal(ks[1], (C1,), jnp.float32)
    b1 = 0.1 * jax.random.normal(ks[2], (C1,), jnp.float32)
    m1 = 0.1 * jax.random.normal(ks[3], (C1,), jnp.float32)
    v1 = 0.5 + jnp.abs(jax.random.normal(ks[4], (C1,), jnp.float32))
    w2 = 0.1 * jax.random.normal(ks[5], (C2, C1, 3, 3), jnp.float32)
    g2 = 1.0 + 0.1 * jax.random.normal(ks[6], (C2,), jnp.float32)
    b2 = 0.1 * jax.random.normal(ks[7], (C2,), jnp.float32)
    m2 = 0.1 * jax.random.normal(ks[8], (C2,), jnp.float32)
    v2 = 0.5 + jnp.abs(jax.random.normal(ks[9], (C2,), jnp.float32))
    return (w1, g1, b1, m1, v1, w2, g2, b2, m2, v2), ks[10]


def _check_case(key, *, N, Cin, C1, H, W, mxu_dtype, strip_height, atol, rtol):
    C2 = Cin
    params, kx = _make_params(key, Cin, C1, C2)
    x = jax.random.normal(kx, (N, Cin, H, W), jnp.float32)
    out = basic_block_forward(x, *params, mxu_dtype=mxu_dtype,
                              strip_height=strip_height)
    out = jax.block_until_ready(out)
    ref = _reference_forward(x, *params)
    assert out.shape == (N, C2, H, W)
    err = float(jnp.max(jnp.abs(out - ref)))
    assert jnp.allclose(out, ref, atol=atol, rtol=rtol), (
        f"mismatch (max abs err {err:.3e}) for N={N} Cin={Cin} C1={C1} "
        f"dtype={jnp.dtype(mxu_dtype).name}")


if __name__ == "__main__":
    key = jax.random.PRNGKey(0)
    k1, k2, k3 = jax.random.split(key, 3)

    # f32 MXU path, forced 2 row strips per image: exercises the clamped
    # inter-strip halo and the small-C1 (single im2col matmul) conv2 path.
    _check_case(k1, N=2, Cin=32, C1=16, H=16, W=16, mxu_dtype=jnp.float32,
                strip_height=8, atol=1e-4, rtol=1e-4)

    # default bf16 MXU path, auto strip height (one strip per image, N=2).
    _check_case(k2, N=2, Cin=32, C1=16, H=16, W=16, mxu_dtype=jnp.bfloat16,
                strip_height=None, atol=5e-2, rtol=5e-2)

    # f32 path with C1 >= 128: exercises the 9-accumulating-matmul conv2 path
    # and the ">= 2 grid steps" cap in the strip-height picker (N=1).
    _check_case(k3, N=1, Cin=256, C1=128, H=16, W=16, mxu_dtype=jnp.float32,
                strip_height=None, atol=2e-4, rtol=2e-4)

    print("KERNEL_OK")
</pallas_src>

<mosaic_0001>
module attributes {stable_mosaic.version = 11 : i64} {
  func.func @kernel(%arg0: i32, %arg1: i32, %arg2: memref<1x8x16x32xf32, #tpu.memory_space<vmem>>, %arg3: memref<1x1x16x32xf32, #tpu.memory_space<vmem>>, %arg4: memref<1x1x16x32xf32, #tpu.memory_space<vmem>>, %arg5: memref<32x16xf32, #tpu.memory_space<vmem>>, %arg6: memref<1x16xf32, #tpu.memory_space<vmem>>, %arg7: memref<144x32xf32, #tpu.memory_space<vmem>>, %arg8: memref<1x32xf32, #tpu.memory_space<vmem>>, %arg9: memref<1x8x16x32xf32, #tpu.memory_space<vmem>>, %arg10: memref<10x18x16xf32, #tpu.memory_space<vmem>>) attributes {dimension_semantics = [#tpu.dimension_semantics<parallel>, #tpu.dimension_semantics<parallel>], iteration_bounds = array<i64: 2, 2>, scalar_prefetch = 0 : i64, scratch_operands = 1 : i64, tpu.core_type = #tpu.core_type<tc>, window_params = [{transform_indices = @transform_0, window_bounds = array<i64: 1, 8, 16, 32>}, {transform_indices = @transform_1, window_bounds = array<i64: 1, 1, 16, 32>}, {transform_indices = @transform_2, window_bounds = array<i64: 1, 1, 16, 32>}, {pipeline_mode = #tpu.pipeline_mode<synchronous>, transform_indices = @transform_3, window_bounds = array<i64: 32, 16>}, {pipeline_mode = #tpu.pipeline_mode<synchronous>, transform_indices = @transform_4, window_bounds = array<i64: 1, 16>}, {pipeline_mode = #tpu.pipeline_mode<synchronous>, transform_indices = @transform_5, window_bounds = array<i64: 144, 32>}, {pipeline_mode = #tpu.pipeline_mode<synchronous>, transform_indices = @transform_6, window_bounds = array<i64: 1, 32>}, {transform_indices = @transform_7, window_bounds = array<i64: 1, 8, 16, 32>}]} {
    %c0 = arith.constant 0 : index
    %c0_0 = arith.constant 0 : index
    %c0_1 = arith.constant 0 : index
    %c0_2 = arith.constant 0 : index
    %0 = vector.load %arg3[%c0, %c0_0, %c0_1, %c0_2] : memref<1x1x16x32xf32, #tpu.memory_space<vmem>>, vector<1x1x16x32xf32>
    %1 = vector.shape_cast %0 : vector<1x1x16x32xf32> to vector<1x16x32xf32>
    %c0_3 = arith.constant 0 : index
    %c0_4 = arith.constant 0 : index
    %c0_5 = arith.constant 0 : index
    %c0_6 = arith.constant 0 : index
    %2 = vector.load %arg2[%c0_3, %c0_4, %c0_5, %c0_6] : memref<1x8x16x32xf32, #tpu.memory_space<vmem>>, vector<1x8x16x32xf32>
    %3 = vector.shape_cast %2 : vector<1x8x16x32xf32> to vector<8x16x32xf32>
    %c0_7 = arith.constant 0 : index
    %c0_8 = arith.constant 0 : index
    %c0_9 = arith.constant 0 : index
    %c0_10 = arith.constant 0 : index
    %4 = vector.load %arg4[%c0_7, %c0_8, %c0_9, %c0_10] : memref<1x1x16x32xf32, #tpu.memory_space<vmem>>, vector<1x1x16x32xf32>
    %5 = vector.shape_cast %4 : vector<1x1x16x32xf32> to vector<1x16x32xf32>
    %6 = tpu.concatenate %1, %3, %5 in 0 : vector<1x16x32xf32>, vector<8x16x32xf32>, vector<1x16x32xf32> -> vector<10x16x32xf32>
    %7 = vector.shape_cast %6 : vector<10x16x32xf32> to vector<160x32xf32>
    %c0_11 = arith.constant 0 : index
    %c0_12 = arith.constant 0 : index
    %8 = vector.load %arg5[%c0_11, %c0_12] : memref<32x16xf32, #tpu.memory_space<vmem>>, vector<32x16xf32>
    %cst = arith.constant dense<0.000000e+00> : vector<160x16xf32>
    %9 = tpu.matmul %7, %8, %cst {dimension_numbers = #tpu.dot_dimension_numbers<[1], [0], [0], [1], [0, 0, 1, 1], [], []>} : vector<160x32xf32>, vector<32x16xf32>, vector<160x16xf32> -> vector<160x16xf32>
    %c0_13 = arith.constant 0 : index
    %c0_14 = arith.constant 0 : index
    %10 = vector.load %arg6[%c0_13, %c0_14] : memref<1x16xf32, #tpu.memory_space<vmem>>, vector<1x16xf32>
    %11 = vector.broadcast %10 : vector<1x16xf32> to vector<160x16xf32>
    %12 = arith.addf %9, %11 : vector<160x16xf32>
    %cst_15 = arith.constant 0.000000e+00 : f32
    %13 = vector.broadcast %cst_15 : f32 to vector<160x16xf32>
    %14 = arith.cmpf ogt, %12, %13 : vector<160x16xf32>
    %cst_16 = arith.constant 1.000000e-01 : f32
    %15 = vector.broadcast %cst_16 : f32 to vector<160x16xf32>
    %16 = arith.mulf %15, %12 : vector<160x16xf32>
    %17 = arith.select %14, %12, %16 : vector<160x16xi1>, vector<160x16xf32>
    %18 = vector.shape_cast %17 : vector<160x16xf32> to vector<10x16x16xf32>
    %c0_17 = arith.constant 0 : index
    %c1 = arith.constant 1 : index
    %c0_18 = arith.constant 0 : index
    %19 = vector.load %arg10[%c0_17, %c1, %c0_18] : memref<10x18x16xf32, #tpu.memory_space<vmem>>, vector<10x16x16xf32>
    tpu.vector_store %arg10[%c0_17, %c1, %c0_18], %18 {strides = array<i32>} : memref<10x18x16xf32, #tpu.memory_space<vmem>>, vector<10x16x16xf32>,
    %cst_19 = arith.constant 0.000000e+00 : f32
    %20 = vector.broadcast %cst_19 : f32 to vector<10x1x16xf32>
    %c0_20 = arith.constant 0 : index
    %c0_21 = arith.constant 0 : index
    %c0_22 = arith.constant 0 : index
    %21 = vector.load %arg10[%c0_20, %c0_21, %c0_22] : memref<10x18x16xf32, #tpu.memory_space<vmem>>, vector<10x1x16xf32>
    tpu.vector_store %arg10[%c0_20, %c0_21, %c0_22], %20 {strides = array<i32>} : memref<10x18x16xf32, #tpu.memory_space<vmem>>, vector<10x1x16xf32>,
    %c0_23 = arith.constant 0 : index
    %c17 = arith.constant 17 : index
    %c0_24 = arith.constant 0 : index
    %22 = vector.load %arg10[%c0_23, %c17, %c0_24] : memref<10x18x16xf32, #tpu.memory_space<vmem>>, vector<10x1x16xf32>
    tpu.vector_store %arg10[%c0_23, %c17, %c0_24], %20 {strides = array<i32>} : memref<10x18x16xf32, #tpu.memory_space<vmem>>, vector<10x1x16xf32>,
    %c0_i32 = arith.constant 0 : i32
    %23 = arith.cmpi eq, %arg1, %c0_i32 : i32
    %24 = arith.extui %23 : i1 to i32
    %c0_i32_25 = arith.constant 0 : i32
    %25 = arith.cmpi ne, %24, %c0_i32_25 : i32
    scf.if %25 {
      %cst_68 = arith.constant 0.000000e+00 : f32
      %65 = vector.broadcast %cst_68 : f32 to vector<1x18x16xf32>
      %c0_69 = arith.constant 0 : index
      %c0_70 = arith.constant 0 : index
      %c0_71 = arith.constant 0 : index
      %66 = vector.load %arg10[%c0_69, %c0_70, %c0_71] : memref<10x18x16xf32, #tpu.memory_space<vmem>>, vector<1x18x16xf32>
      tpu.vector_store %arg10[%c0_69, %c0_70, %c0_71], %65 {strides = array<i32>} : memref<10x18x16xf32, #tpu.memory_space<vmem>>, vector<1x18x16xf32>,
    } else {
    }
    %c1_i32 = arith.constant 1 : i32
    %26 = arith.cmpi eq, %arg1, %c1_i32 : i32
    %27 = arith.extui %26 : i1 to i32
    %c0_i32_26 = arith.constant 0 : i32
    %28 = arith.cmpi ne, %27, %c0_i32_26 : i32
    scf.if %28 {
      %cst_68 = arith.constant 0.000000e+00 : f32
      %65 = vector.broadcast %cst_68 : f32 to vector<1x18x16xf32>
      %c9 = arith.constant 9 : index
      %c0_69 = arith.constant 0 : index
      %c0_70 = arith.constant 0 : index
      %66 = vector.load %arg10[%c9, %c0_69, %c0_70] : memref<10x18x16xf32, #tpu.memory_space<vmem>>, vector<1x18x16xf32>
      tpu.vector_store %arg10[%c9, %c0_69, %c0_70], %65 {strides = array<i32>} : memref<10x18x16xf32, #tpu.memory_space<vmem>>, vector<1x18x16xf32>,
    } else {
    }
    %c0_27 = arith.constant 0 : index
    %c0_28 = arith.constant 0 : index
    %c0_29 = arith.constant 0 : index
    %29 = vector.load %arg10[%c0_27, %c0_28, %c0_29] : memref<10x18x16xf32, #tpu.memory_space<vmem>>, vector<8x16x16xf32>
    %30 = vector.shape_cast %29 : vector<8x16x16xf32> to vector<128x16xf32>
    %c0_30 = arith.constant 0 : index
    %c1_31 = arith.constant 1 : index
    %c0_32 = arith.constant 0 : index
    %31 = vector.load %arg10[%c0_30, %c1_31, %c0_32] : memref<10x18x16xf32, #tpu.memory_space<vmem>>, vector<8x16x16xf32>
    %32 = vector.shape_cast %31 : vector<8x16x16xf32> to vector<128x16xf32>
    %c0_33 = arith.constant 0 : index
    %c2 = arith.constant 2 : index
    %c0_34 = arith.constant 0 : index
    %33 = vector.load %arg10[%c0_33, %c2, %c0_34] : memref<10x18x16xf32, #tpu.memory_space<vmem>>, vector<8x16x16xf32>
    %34 = vector.shape_cast %33 : vector<8x16x16xf32> to vector<128x16xf32>
    %c1_35 = arith.constant 1 : index
    %c0_36 = arith.constant 0 : index
    %c0_37 = arith.constant 0 : index
    %35 = vector.load %arg10[%c1_35, %c0_36, %c0_37] : memref<10x18x16xf32, #tpu.memory_space<vmem>>, vector<8x16x16xf32>
    %36 = vector.shape_cast %35 : vector<8x16x16xf32> to vector<128x16xf32>
    %c1_38 = arith.constant 1 : index
    %c1_39 = arith.constant 1 : index
    %c0_40 = arith.constant 0 : index
    %37 = vector.load %arg10[%c1_38, %c1_39, %c0_40] : memref<10x18x16xf32, #tpu.memory_space<vmem>>, vector<8x16x16xf32>
    %38 = vector.shape_cast %37 : vector<8x16x16xf32> to vector<128x16xf32>
    %c1_41 = arith.constant 1 : index
    %c2_42 = arith.constant 2 : index
    %c0_43 = arith.constant 0 : index
    %39 = vector.load %arg10[%c1_41, %c2_42, %c0_43] : memref<10x18x16xf32, #tpu.memory_space<vmem>>, vector<8x16x16xf32>
    %40 = vector.shape_cast %39 : vector<8x16x16xf32> to vector<128x16xf32>
    %c2_44 = arith.constant 2 : index
    %c0_45 = arith.constant 0 : index
    %c0_46 = arith.constant 0 : index
    %41 = vector.load %arg10[%c2_44, %c0_45, %c0_46] : memref<10x18x16xf32, #tpu.memory_space<vmem>>, vector<8x16x16xf32>
    %42 = vector.shape_cast %41 : vector<8x16x16xf32> to vector<128x16xf32>
    %c2_47 = arith.constant 2 : index
    %c1_48 = arith.constant 1 : index
    %c0_49 = arith.constant 0 : index
    %43 = vector.load %arg10[%c2_47, %c1_48, %c0_49] : memref<10x18x16xf32, #tpu.memory_space<vmem>>, vector<8x16x16xf32>
    %44 = vector.shape_cast %43 : vector<8x16x16xf32> to vector<128x16xf32>
    %c2_50 = arith.constant 2 : index
    %c2_51 = arith.constant 2 : index
    %c0_52 = arith.constant 0 : index
    %45 = vector.load %arg10[%c2_50, %c2_51, %c0_52] : memref<10x18x16xf32, #tpu.memory_space<vmem>>, vector<8x16x16xf32>
    %46 = vector.shape_cast %45 : vector<8x16x16xf32> to vector<128x16xf32>
    %47 = tpu.concatenate %30, %32, %34, %36, %38, %40, %42, %44, %46 in 1 : vector<128x16xf32>, vector<128x16xf32>, vector<128x16xf32>, vector<128x16xf32>, vector<128x16xf32>, vector<128x16xf32>, vector<128x16xf32>, vector<128x16xf32>, vector<128x16xf32> -> vector<128x144xf32>
    %c0_53 = arith.constant 0 : index
    %c0_54 = arith.constant 0 : index
    %48 = vector.load %arg7[%c0_53, %c0_54] : memref<144x32xf32, #tpu.memory_space<vmem>>, vector<144x32xf32>
    %cst_55 = arith.constant dense<0.000000e+00> : vector<128x32xf32>
    %49 = tpu.matmul %47, %48, %cst_55 {dimension_numbers = #tpu.dot_dimension_numbers<[1], [0], [0], [1], [0, 0, 1, 1], [], []>} : vector<128x144xf32>, vector<144x32xf32>, vector<128x32xf32> -> vector<128x32xf32>
    %c0_56 = arith.constant 0 : index
    %c0_57 = arith.constant 0 : index
    %50 = vector.load %arg8[%c0_56, %c0_57] : memref<1x32xf32, #tpu.memory_space<vmem>>, vector<1x32xf32>
    %51 = vector.broadcast %50 : vector<1x32xf32> to vector<128x32xf32>
    %52 = arith.addf %49, %51 : vector<128x32xf32>
    %cst_58 = arith.constant 0.000000e+00 : f32
    %53 = vector.broadcast %cst_58 : f32 to vector<128x32xf32>
    %54 = arith.cmpf ogt, %52, %53 : vector<128x32xf32>
    %cst_59 = arith.constant 1.000000e-01 : f32
    %55 = vector.broadcast %cst_59 : f32 to vector<128x32xf32>
    %56 = arith.mulf %55, %52 : vector<128x32xf32>
    %57 = arith.select %54, %52, %56 : vector<128x32xi1>, vector<128x32xf32>
    %58 = vector.shape_cast %57 : vector<128x32xf32> to vector<8x16x32xf32>
    %c0_60 = arith.constant 0 : index
    %c0_61 = arith.constant 0 : index
    %c0_62 = arith.constant 0 : index
    %c0_63 = arith.constant 0 : index
    %59 = vector.load %arg2[%c0_60, %c0_61, %c0_62, %c0_63] : memref<1x8x16x32xf32, #tpu.memory_space<vmem>>, vector<1x8x16x32xf32>
    %60 = vector.shape_cast %59 : vector<1x8x16x32xf32> to vector<8x16x32xf32>
    %61 = arith.addf %58, %60 : vector<8x16x32xf32>
    %c0_64 = arith.constant 0 : index
    %c0_65 = arith.constant 0 : index
    %c0_66 = arith.constant 0 : index
    %c0_67 = arith.constant 0 : index
    %62 = vector.load %arg9[%c0_64, %c0_65, %c0_66, %c0_67] : memref<1x8x16x32xf32, #tpu.memory_space<vmem>>, vector<1x8x16x32xf32>
    %63 = vector.shape_cast %62 : vector<1x8x16x32xf32> to vector<8x16x32xf32>
    %64 = vector.shape_cast %61 : vector<8x16x32xf32> to vector<1x8x16x32xf32>
    tpu.vector_store %arg9[%c0_64, %c0_65, %c0_66, %c0_67], %64 {strides = array<i32>} : memref<1x8x16x32xf32, #tpu.memory_space<vmem>>, vector<1x8x16x32xf32>,
    return
  }
  func.func @transform_0(%arg0: i32, %arg1: i32) -> (i32, i32, i32, i32) {
    %c0_i32 = arith.constant 0 : i32
    %c0_i32_0 = arith.constant 0 : i32
    %c0_i32_1 = arith.constant 0 : i32
    return %arg0, %arg1, %c0_i32, %c0_i32_0 : i32, i32, i32, i32
  }
  func.func @transform_1(%arg0: i32, %arg1: i32) -> (i32, i32, i32, i32) {
    %c8_i32 = arith.constant 8 : i32
    %0 = arith.muli %arg1, %c8_i32 : i32
    %c1_i32 = arith.constant 1 : i32
    %1 = arith.subi %0, %c1_i32 : i32
    %c0_i32 = arith.constant 0 : i32
    %2 = arith.maxsi %1, %c0_i32 : i32
    %c0_i32_0 = arith.constant 0 : i32
    %c0_i32_1 = arith.constant 0 : i32
    %c0_i32_2 = arith.constant 0 : i32
    return %arg0, %2, %c0_i32_0, %c0_i32_1 : i32, i32, i32, i32
  }
  func.func @transform_2(%arg0: i32, %arg1: i32) -> (i32, i32, i32, i32) {
    %c1_i32 = arith.constant 1 : i32
    %0 = arith.addi %arg1, %c1_i32 : i32
    %c8_i32 = arith.constant 8 : i32
    %1 = arith.muli %0, %c8_i32 : i32
    %c15_i32 = arith.constant 15 : i32
    %2 = arith.minsi %1, %c15_i32 : i32
    %c0_i32 = arith.constant 0 : i32
    %c0_i32_0 = arith.constant 0 : i32
    %c0_i32_1 = arith.constant 0 : i32
    return %arg0, %2, %c0_i32, %c0_i32_0 : i32, i32, i32, i32
  }
  func.func @transform_3(%arg0: i32, %arg1: i32) -> (i32, i32) {
    %c0_i32 = arith.constant 0 : i32
    %c0_i32_0 = arith.constant 0 : i32
    %c0_i32_1 = arith.constant 0 : i32
    return %c0_i32, %c0_i32_0 : i32, i32
  }
  func.func @transform_4(%arg0: i32, %arg1: i32) -> (i32, i32) {
    %c0_i32 = arith.constant 0 : i32
    %c0_i32_0 = arith.constant 0 : i32
    %c0_i32_1 = arith.constant 0 : i32
    return %c0_i32, %c0_i32_0 : i32, i32
  }
  func.func @transform_5(%arg0: i32, %arg1: i32) -> (i32, i32) {
    %c0_i32 = arith.constant 0 : i32
    %c0_i32_0 = arith.constant 0 : i32
    %c0_i32_1 = arith.constant 0 : i32
    return %c0_i32, %c0_i32_0 : i32, i32
  }
  func.func @transform_6(%arg0: i32, %arg1: i32) -> (i32, i32) {
    %c0_i32 = arith.constant 0 : i32
    %c0_i32_0 = arith.constant 0 : i32
    %c0_i32_1 = arith.constant 0 : i32
    return %c0_i32, %c0_i32_0 : i32, i32
  }
  func.func @transform_7(%arg0: i32, %arg1: i32) -> (i32, i32, i32, i32) {
    %c0_i32 = arith.constant 0 : i32
    %c0_i32_0 = arith.constant 0 : i32
    %c0_i32_1 = arith.constant 0 : i32
    return %arg0, %arg1, %c0_i32, %c0_i32_0 : i32, i32, i32, i32
  }
}

module attributes {stable_mosaic.version = 11 : i64} {
  func.func @kernel(%arg0: i32, %arg1: i32, %arg2: memref<1x8x16x32xf32, #tpu.memory_space<vmem>>, %arg3: memref<1x1x16x32xf32, #tpu.memory_space<vmem>>, %arg4: memref<1x1x16x32xf32, #tpu.memory_space<vmem>>, %arg5: memref<32x16xf32, #tpu.memory_space<vmem>>, %arg6: memref<1x16xf32, #tpu.memory_space<vmem>>, %arg7: memref<144x32xf32, #tpu.memory_space<vmem>>, %arg8: memref<1x32xf32, #tpu.memory_space<vmem>>, %arg9: memref<1x8x16x32xf32, #tpu.memory_space<vmem>>, %arg10: memref<10x18x16xf32, #tpu.memory_space<vmem>>) attributes {dimension_semantics = [#tpu.dimension_semantics<parallel>, #tpu.dimension_semantics<parallel>], iteration_bounds = array<i64: 2, 2>, scalar_prefetch = 0 : i64, scratch_operands = 1 : i64, tpu.core_type = #tpu.core_type<tc>, window_params = [{transform_indices = @transform_0, window_bounds = array<i64: 1, 8, 16, 32>}, {transform_indices = @transform_1, window_bounds = array<i64: 1, 1, 16, 32>}, {transform_indices = @transform_2, window_bounds = array<i64: 1, 1, 16, 32>}, {pipeline_mode = #tpu.pipeline_mode<synchronous>, transform_indices = @transform_3, window_bounds = array<i64: 32, 16>}, {pipeline_mode = #tpu.pipeline_mode<synchronous>, transform_indices = @transform_4, window_bounds = array<i64: 1, 16>}, {pipeline_mode = #tpu.pipeline_mode<synchronous>, transform_indices = @transform_5, window_bounds = array<i64: 144, 32>}, {pipeline_mode = #tpu.pipeline_mode<synchronous>, transform_indices = @transform_6, window_bounds = array<i64: 1, 32>}, {transform_indices = @transform_7, window_bounds = array<i64: 1, 8, 16, 32>}]} {
    %c0 = arith.constant 0 : index
    %c0_0 = arith.constant 0 : index
    %c0_1 = arith.constant 0 : index
    %c0_2 = arith.constant 0 : index
    %0 = vector.load %arg3[%c0, %c0_0, %c0_1, %c0_2] : memref<1x1x16x32xf32, #tpu.memory_space<vmem>>, vector<1x1x16x32xf32>
    %1 = vector.shape_cast %0 : vector<1x1x16x32xf32> to vector<1x16x32xf32>
    %c0_3 = arith.constant 0 : index
    %c0_4 = arith.constant 0 : index
    %c0_5 = arith.constant 0 : index
    %c0_6 = arith.constant 0 : index
    %2 = vector.load %arg2[%c0_3, %c0_4, %c0_5, %c0_6] : memref<1x8x16x32xf32, #tpu.memory_space<vmem>>, vector<1x8x16x32xf32>
    %3 = vector.shape_cast %2 : vector<1x8x16x32xf32> to vector<8x16x32xf32>
    %c0_7 = arith.constant 0 : index
    %c0_8 = arith.constant 0 : index
    %c0_9 = arith.constant 0 : index
    %c0_10 = arith.constant 0 : index
    %4 = vector.load %arg4[%c0_7, %c0_8, %c0_9, %c0_10] : memref<1x1x16x32xf32, #tpu.memory_space<vmem>>, vector<1x1x16x32xf32>
    %5 = vector.shape_cast %4 : vector<1x1x16x32xf32> to vector<1x16x32xf32>
    %6 = tpu.concatenate %1, %3, %5 in 0 : vector<1x16x32xf32>, vector<8x16x32xf32>, vector<1x16x32xf32> -> vector<10x16x32xf32>
    %7 = vector.shape_cast %6 : vector<10x16x32xf32> to vector<160x32xf32>
    %c0_11 = arith.constant 0 : index
    %c0_12 = arith.constant 0 : index
    %8 = vector.load %arg5[%c0_11, %c0_12] : memref<32x16xf32, #tpu.memory_space<vmem>>, vector<32x16xf32>
    %cst = arith.constant dense<0.000000e+00> : vector<160x16xf32>
    %9 = tpu.matmul %7, %8, %cst {dimension_numbers = #tpu.dot_dimension_numbers<[1], [0], [0], [1], [0, 0, 1, 1], [], []>} : vector<160x32xf32>, vector<32x16xf32>, vector<160x16xf32> -> vector<160x16xf32>
    %c0_13 = arith.constant 0 : index
    %c0_14 = arith.constant 0 : index
    %10 = vector.load %arg6[%c0_13, %c0_14] : memref<1x16xf32, #tpu.memory_space<vmem>>, vector<1x16xf32>
    %11 = vector.broadcast %10 : vector<1x16xf32> to vector<160x16xf32>
    %12 = arith.addf %9, %11 : vector<160x16xf32>
    %cst_15 = arith.constant 0.000000e+00 : f32
    %13 = vector.broadcast %cst_15 : f32 to vector<160x16xf32>
    %14 = arith.cmpf ogt, %12, %13 : vector<160x16xf32>
    %cst_16 = arith.constant 1.000000e-01 : f32
    %15 = vector.broadcast %cst_16 : f32 to vector<160x16xf32>
    %16 = arith.mulf %15, %12 : vector<160x16xf32>
    %17 = arith.select %14, %12, %16 : vector<160x16xi1>, vector<160x16xf32>
    %18 = vector.shape_cast %17 : vector<160x16xf32> to vector<10x16x16xf32>
    %c0_17 = arith.constant 0 : index
    %c1 = arith.constant 1 : index
    %c0_18 = arith.constant 0 : index
    %19 = vector.load %arg10[%c0_17, %c1, %c0_18] : memref<10x18x16xf32, #tpu.memory_space<vmem>>, vector<10x16x16xf32>
    tpu.vector_store %arg10[%c0_17, %c1, %c0_18], %18 {strides = array<i32>} : memref<10x18x16xf32, #tpu.memory_space<vmem>>, vector<10x16x16xf32>,
    %cst_19 = arith.constant 0.000000e+00 : f32
    %20 = vector.broadcast %cst_19 : f32 to vector<10x1x16xf32>
    %c0_20 = arith.constant 0 : index
    %c0_21 = arith.constant 0 : index
    %c0_22 = arith.constant 0 : index
    %21 = vector.load %arg10[%c0_20, %c0_21, %c0_22] : memref<10x18x16xf32, #tpu.memory_space<vmem>>, vector<10x1x16xf32>
    tpu.vector_store %arg10[%c0_20, %c0_21, %c0_22], %20 {strides = array<i32>} : memref<10x18x16xf32, #tpu.memory_space<vmem>>, vector<10x1x16xf32>,
    %c0_23 = arith.constant 0 : index
    %c17 = arith.constant 17 : index
    %c0_24 = arith.constant 0 : index
    %22 = vector.load %arg10[%c0_23, %c17, %c0_24] : memref<10x18x16xf32, #tpu.memory_space<vmem>>, vector<10x1x16xf32>
    tpu.vector_store %arg10[%c0_23, %c17, %c0_24], %20 {strides = array<i32>} : memref<10x18x16xf32, #tpu.memory_space<vmem>>, vector<10x1x16xf32>,
    %c0_i32 = arith.constant 0 : i32
    %23 = arith.cmpi eq, %arg1, %c0_i32 : i32
    %24 = arith.extui %23 : i1 to i32
    %c0_i32_25 = arith.constant 0 : i32
    %25 = arith.cmpi ne, %24, %c0_i32_25 : i32
    scf.if %25 {
      %cst_68 = arith.constant 0.000000e+00 : f32
      %65 = vector.broadcast %cst_68 : f32 to vector<1x18x16xf32>
      %c0_69 = arith.constant 0 : index
      %c0_70 = arith.constant 0 : index
      %c0_71 = arith.constant 0 : index
      %66 = vector.load %arg10[%c0_69, %c0_70, %c0_71] : memref<10x18x16xf32, #tpu.memory_space<vmem>>, vector<1x18x16xf32>
      tpu.vector_store %arg10[%c0_69, %c0_70, %c0_71], %65 {strides = array<i32>} : memref<10x18x16xf32, #tpu.memory_space<vmem>>, vector<1x18x16xf32>,
    } else {
    }
    %c1_i32 = arith.constant 1 : i32
    %26 = arith.cmpi eq, %arg1, %c1_i32 : i32
    %27 = arith.extui %26 : i1 to i32
    %c0_i32_26 = arith.constant 0 : i32
    %28 = arith.cmpi ne, %27, %c0_i32_26 : i32
    scf.if %28 {
      %cst_68 = arith.constant 0.000000e+00 : f32
      %65 = vector.broadcast %cst_68 : f32 to vector<1x18x16xf32>
      %c9 = arith.constant 9 : index
      %c0_69 = arith.constant 0 : index
      %c0_70 = arith.constant 0 : index
      %66 = vector.load %arg10[%c9, %c0_69, %c0_70] : memref<10x18x16xf32, #tpu.memory_space<vmem>>, vector<1x18x16xf32>
      tpu.vector_store %arg10[%c9, %c0_69, %c0_70], %65 {strides = array<i32>} : memref<10x18x16xf32, #tpu.memory_space<vmem>>, vector<1x18x16xf32>,
    } else {
    }
    %c0_27 = arith.constant 0 : index
    %c0_28 = arith.constant 0 : index
    %c0_29 = arith.constant 0 : index
    %29 = vector.load %arg10[%c0_27, %c0_28, %c0_29] : memref<10x18x16xf32, #tpu.memory_space<vmem>>, vector<8x16x16xf32>
    %30 = vector.shape_cast %29 : vector<8x16x16xf32> to vector<128x16xf32>
    %c0_30 = arith.constant 0 : index
    %c1_31 = arith.constant 1 : index
    %c0_32 = arith.constant 0 : index
    %31 = vector.load %arg10[%c0_30, %c1_31, %c0_32] : memref<10x18x16xf32, #tpu.memory_space<vmem>>, vector<8x16x16xf32>
    %32 = vector.shape_cast %31 : vector<8x16x16xf32> to vector<128x16xf32>
    %c0_33 = arith.constant 0 : index
    %c2 = arith.constant 2 : index
    %c0_34 = arith.constant 0 : index
    %33 = vector.load %arg10[%c0_33, %c2, %c0_34] : memref<10x18x16xf32, #tpu.memory_space<vmem>>, vector<8x16x16xf32>
    %34 = vector.shape_cast %33 : vector<8x16x16xf32> to vector<128x16xf32>
    %c1_35 = arith.constant 1 : index
    %c0_36 = arith.constant 0 : index
    %c0_37 = arith.constant 0 : index
    %35 = vector.load %arg10[%c1_35, %c0_36, %c0_37] : memref<10x18x16xf32, #tpu.memory_space<vmem>>, vector<8x16x16xf32>
    %36 = vector.shape_cast %35 : vector<8x16x16xf32> to vector<128x16xf32>
    %c1_38 = arith.constant 1 : index
    %c1_39 = arith.constant 1 : index
    %c0_40 = arith.constant 0 : index
    %37 = vector.load %arg10[%c1_38, %c1_39, %c0_40] : memref<10x18x16xf32, #tpu.memory_space<vmem>>, vector<8x16x16xf32>
    %38 = vector.shape_cast %37 : vector<8x16x16xf32> to vector<128x16xf32>
    %c1_41 = arith.constant 1 : index
    %c2_42 = arith.constant 2 : index
    %c0_43 = arith.constant 0 : index
    %39 = vector.load %arg10[%c1_41, %c2_42, %c0_43] : memref<10x18x16xf32, #tpu.memory_space<vmem>>, vector<8x16x16xf32>
    %40 = vector.shape_cast %39 : vector<8x16x16xf32> to vector<128x16xf32>
    %c2_44 = arith.constant 2 : index
    %c0_45 = arith.constant 0 : index
    %c0_46 = arith.constant 0 : index
    %41 = vector.load %arg10[%c2_44, %c0_45, %c0_46] : memref<10x18x16xf32, #tpu.memory_space<vmem>>, vector<8x16x16xf32>
    %42 = vector.shape_cast %41 : vector<8x16x16xf32> to vector<128x16xf32>
    %c2_47 = arith.constant 2 : index
    %c1_48 = arith.constant 1 : index
    %c0_49 = arith.constant 0 : index
    %43 = vector.load %arg10[%c2_47, %c1_48, %c0_49] : memref<10x18x16xf32, #tpu.memory_space<vmem>>, vector<8x16x16xf32>
    %44 = vector.shape_cast %43 : vector<8x16x16xf32> to vector<128x16xf32>
    %c2_50 = arith.constant 2 : index
    %c2_51 = arith.constant 2 : index
    %c0_52 = arith.constant 0 : index
    %45 = vector.load %arg10[%c2_50, %c2_51, %c0_52] : memref<10x18x16xf32, #tpu.memory_space<vmem>>, vector<8x16x16xf32>
    %46 = vector.shape_cast %45 : vector<8x16x16xf32> to vector<128x16xf32>
    %47 = tpu.concatenate %30, %32, %34, %36, %38, %40, %42, %44, %46 in 1 : vector<128x16xf32>, vector<128x16xf32>, vector<128x16xf32>, vector<128x16xf32>, vector<128x16xf32>, vector<128x16xf32>, vector<128x16xf32>, vector<128x16xf32>, vector<128x16xf32> -> vector<128x144xf32>
    %c0_53 = arith.constant 0 : index
    %c0_54 = arith.constant 0 : index
    %48 = vector.load %arg7[%c0_53, %c0_54] : memref<144x32xf32, #tpu.memory_space<vmem>>, vector<144x32xf32>
    %cst_55 = arith.constant dense<0.000000e+00> : vector<128x32xf32>
    %49 = tpu.matmul %47, %48, %cst_55 {dimension_numbers = #tpu.dot_dimension_numbers<[1], [0], [0], [1], [0, 0, 1, 1], [], []>} : vector<128x144xf32>, vector<144x32xf32>, vector<128x32xf32> -> vector<128x32xf32>
    %c0_56 = arith.constant 0 : index
    %c0_57 = arith.constant 0 : index
    %50 = vector.load %arg8[%c0_56, %c0_57] : memref<1x32xf32, #tpu.memory_space<vmem>>, vector<1x32xf32>
    %51 = vector.broadcast %50 : vector<1x32xf32> to vector<128x32xf32>
    %52 = arith.addf %49, %51 : vector<128x32xf32>
    %cst_58 = arith.constant 0.000000e+00 : f32
    %53 = vector.broadcast %cst_58 : f32 to vector<128x32xf32>
    %54 = arith.cmpf ogt, %52, %53 : vector<128x32xf32>
    %cst_59 = arith.constant 1.000000e-01 : f32
    %55 = vector.broadcast %cst_59 : f32 to vector<128x32xf32>
    %56 = arith.mulf %55, %52 : vector<128x32xf32>
    %57 = arith.select %54, %52, %56 : vector<128x32xi1>, vector<128x32xf32>
    %58 = vector.shape_cast %57 : vector<128x32xf32> to vector<8x16x32xf32>
    %c0_60 = arith.constant 0 : index
    %c0_61 = arith.constant 0 : index
    %c0_62 = arith.constant 0 : index
    %c0_63 = arith.constant 0 : index
    %59 = vector.load %arg2[%c0_60, %c0_61, %c0_62, %c0_63] : memref<1x8x16x32xf32, #tpu.memory_space<vmem>>, vector<1x8x16x32xf32>
    %60 = vector.shape_cast %59 : vector<1x8x16x32xf32> to vector<8x16x32xf32>
    %61 = arith.addf %58, %60 : vector<8x16x32xf32>
    %c0_64 = arith.constant 0 : index
    %c0_65 = arith.constant 0 : index
    %c0_66 = arith.constant 0 : index
    %c0_67 = arith.constant 0 : index
    %62 = vector.load %arg9[%c0_64, %c0_65, %c0_66, %c0_67] : memref<1x8x16x32xf32, #tpu.memory_space<vmem>>, vector<1x8x16x32xf32>
    %63 = vector.shape_cast %62 : vector<1x8x16x32xf32> to vector<8x16x32xf32>
    %64 = vector.shape_cast %61 : vector<8x16x32xf32> to vector<1x8x16x32xf32>
    tpu.vector_store %arg9[%c0_64, %c0_65, %c0_66, %c0_67], %64 {strides = array<i32>} : memref<1x8x16x32xf32, #tpu.memory_space<vmem>>, vector<1x8x16x32xf32>,
    return
  }
  func.func @transform_0(%arg0: i32, %arg1: i32) -> (i32, i32, i32, i32) {
    %c0_i32 = arith.constant 0 : i32
    %c0_i32_0 = arith.constant 0 : i32
    %c0_i32_1 = arith.constant 0 : i32
    return %arg0, %arg1, %c0_i32, %c0_i32_0 : i32, i32, i32, i32
  }
  func.func @transform_1(%arg0: i32, %arg1: i32) -> (i32, i32, i32, i32) {
    %c8_i32 = arith.constant 8 : i32
    %0 = arith.muli %arg1, %c8_i32 : i32
    %c1_i32 = arith.constant 1 : i32
    %1 = arith.subi %0, %c1_i32 : i32
    %c0_i32 = arith.constant 0 : i32
    %2 = arith.maxsi %1, %c0_i32 : i32
    %c0_i32_0 = arith.constant 0 : i32
    %c0_i32_1 = arith.constant 0 : i32
    %c0_i32_2 = arith.constant 0 : i32
    return %arg0, %2, %c0_i32_0, %c0_i32_1 : i32, i32, i32, i32
  }
  func.func @transform_2(%arg0: i32, %arg1: i32) -> (i32, i32, i32, i32) {
    %c1_i32 = arith.constant 1 : i32
    %0 = arith.addi %arg1, %c1_i32 : i32
    %c8_i32 = arith.constant 8 : i32
    %1 = arith.muli %0, %c8_i32 : i32
    %c15_i32 = arith.constant 15 : i32
    %2 = arith.minsi %1, %c15_i32 : i32
    %c0_i32 = arith.constant 0 : i32
    %c0_i32_0 = arith.constant 0 : i32
    %c0_i32_1 = arith.constant 0 : i32
    return %arg0, %2, %c0_i32, %c0_i32_0 : i32, i32, i32, i32
  }
  func.func @transform_3(%arg0: i32, %arg1: i32) -> (i32, i32) {
    %c0_i32 = arith.constant 0 : i32
    %c0_i32_0 = arith.constant 0 : i32
    %c0_i32_1 = arith.constant 0 : i32
    return %c0_i32, %c0_i32_0 : i32, i32
  }
  func.func @transform_4(%arg0: i32, %arg1: i32) -> (i32, i32) {
    %c0_i32 = arith.constant 0 : i32
    %c0_i32_0 = arith.constant 0 : i32
    %c0_i32_1 = arith.constant 0 : i32
    return %c0_i32, %c0_i32_0 : i32, i32
  }
  func.func @transform_5(%arg0: i32, %arg1: i32) -> (i32, i32) {
    %c0_i32 = arith.constant 0 : i32
    %c0_i32_0 = arith.constant 0 : i32
    %c0_i32_1 = arith.constant 0 : i32
    return %c0_i32, %c0_i32_0 : i32, i32
  }
  func.func @transform_6(%arg0: i32, %arg1: i32) -> (i32, i32) {
    %c0_i32 = arith.constant 0 : i32
    %c0_i32_0 = arith.constant 0 : i32
    %c0_i32_1 = arith.constant 0 : i32
    return %c0_i32, %c0_i32_0 : i32, i32
  }
  func.func @transform_7(%arg0: i32, %arg1: i32) -> (i32, i32, i32, i32) {
    %c0_i32 = arith.constant 0 : i32
    %c0_i32_0 = arith.constant 0 : i32
    %c0_i32_1 = arith.constant 0 : i32
    return %arg0, %arg1, %c0_i32, %c0_i32_0 : i32, i32, i32, i32
  }
}

</mosaic_0001>

<llo_original>
// kernel: tpu_custom_call.1
$region0: #{tpu_custom_call.1}
  #allocation0 [shape = 'u32[]', space=smem, size = 0x4, offset = 0x4, fixed_abs, tag = 'smem constant byte address 0x4 - core index']
  #allocation1 [shape = 'u32[144,128]{1,0:T(1,128)}', space=vmem, size = 0x12000, scoped, tag = 'internal scratch']
  #allocation2 [shape = 'f32[10,18,16]{2,1,0:T(8,128)}', space=vmem, size = 0x1e000, scoped, tag = 'scratch operand']
  %s0 = inlined_call_operand.hbm [shape: f32[2,16,16,32], index: 0, kind: input, shape index: {}]
  %s1 = inlined_call_operand.hbm [shape: f32[2,16,16,32], index: 1, kind: input, shape index: {}]
  %s2 = inlined_call_operand.hbm [shape: f32[2,16,16,32], index: 2, kind: input, shape index: {}]
  %s3 = inlined_call_operand.vmem [shape: f32[32,16], index: 3, kind: input, shape index: {}]
  %s4 = inlined_call_operand.vmem [shape: f32[1,16], index: 4, kind: input, shape index: {}]
  %s5 = inlined_call_operand.vmem [shape: f32[144,32], index: 5, kind: input, shape index: {}]
  %s6 = inlined_call_operand.vmem [shape: f32[1,32], index: 6, kind: input, shape index: {}]
  %s7 = inlined_call_operand.hbm [shape: f32[2,16,16,32], index: 7, kind: output, shape index: {}]
  %s8 = sld [smem:[#allocation0]]
  $region81: #{tpu_custom_call.1} parent=0
    _
  %s10 = ssub.s32 1, %s8
  %s11 = scalar_select 0, %s10, %s8
  $region1: #{tpu_custom_call.1} parent=0
    #allocation3 [shape = 'u8[131072]{0}', space=vmem, size = 0x20000, scoped, tag = 'input window, operand 0']
    #allocation4 [shape = 's32[2]{0}', space=sflag, size = 0x8, scoped, tag = 'scoped memory for tpu_custom_call.1']
    #allocation5 [shape = 's32[2]{0}', space=sflag, size = 0x8, scoped, tag = 'scoped memory for tpu_custom_call.1']
    #allocation6 [shape = 'u8[16384]{0}', space=vmem, size = 0x4000, scoped, tag = 'input window, operand 1']
    #allocation7 [shape = 's32[2]{0}', space=sflag, size = 0x8, scoped, tag = 'scoped memory for tpu_custom_call.1']
    #allocation8 [shape = 'u8[16384]{0}', space=vmem, size = 0x4000, scoped, tag = 'input window, operand 2']
    #allocation9 [shape = 'u8[131072]{0}', space=vmem, size = 0x20000, scoped, tag = 'output window, operand 0']
    %12 = vsyncpa [#allocation4], 0
    %s13 = scalar_lea.sflag [#allocation4], 1
    %14 = vsyncpa %s13, 0
    %15 = vsyncpa [#allocation7], 0
    %s16 = scalar_lea.sflag [#allocation7], 1
    %17 = vsyncpa %s16, 0
    %18 = vsyncpa [#allocation5], 0
    %s19 = scalar_lea.sflag [#allocation5], 1
    %20 = vsyncpa %s19, 0
    loop: start=0, step=1, limit=6
    $region2: #{tpu_custom_call.1} parent=1 // loop_pre_header
      _
    $region3: #{tpu_custom_call.1} parent=1 // loop_header
      %s22 = sphi 0, %s26
      %p23 = scmp.ge.s32.totalorder %s22, 6
      %s29 = sphi 0, %s41
      %s30 = sphi 0, %s37
      %s31 = sphi 0, %s29
      %s32 = sphi 0, %s30
      %s33 = sphi 0, %s31
      %s34 = sphi 0, %s32
      %s46 = sphi 0, %s48
      %s49 = sphi 0, %s46
      %s50 = sphi 0, %s49
      %s66 = sphi 0, %s50
      %s82 = sphi 0, %s84
      %s85 = sphi 0, %s82
      %s86 = sphi 0, %s85
      %s102 = sphi 0, %s86
      %s118 = sphi 0, %s120
      %s121 = sphi 0, %s118
      %s122 = sphi 0, %s121
      %s138 = sphi 0, %s122
      %s142 = sphi 0, %s142
      %s144 = sphi 0, %s142
      %s145 = sphi 0, %s144
      %s159 = sphi 0, %s145
      %s163 = sphi 0, %s163
      %s165 = sphi 0, %s163
      %s166 = sphi 0, %s165
      %s180 = sphi 0, %s166
      %s184 = sphi 0, %s184
      %s186 = sphi 0, %s184
      %s187 = sphi 0, %s186
      %s201 = sphi 0, %s187
      %s205 = sphi 0, %s205
      %s207 = sphi 0, %s205
      %s208 = sphi 0, %s207
      %s222 = sphi 0, %s208
      %s230 = sphi 0, %s232
      %s233 = sphi 0, %s230
      %s234 = sphi 0, %s233
      %s250 = sphi 0, %s234
    $region4: #{tpu_custom_call.1} parent=1 // loop_header_branch
      %25 = sbr.rel (%p23) target = $region8
    $region5: #{tpu_custom_call.1} parent=1 // loop_body
      %s27 = ssub.s32 %s22, 1
      %s28 = ssub.s32 %s22, 2
      %s35 = sadd.s32 1, %s30
      %p36 = scmp.ge.s32.totalorder %s35, 2
      %s37 = scalar_select %p36, 0, %s35
      %s38 = sadd.s32 1, %s29
      %s39 = scalar_select %p36, %s38, %s29
      %p40 = scmp.ge.s32.totalorder %s39, 2
      %s41 = scalar_select %p40, 0, %s39
      %s42 = ssub.s32 %s29, %s41
      %s43 = ssub.s32 %s30, %s37
      %s44 = sor.u32 %s42, %s43
      %p45 = scmp.eq.s32.totalorder %s44, 0
      %s47 = sadd.s32 %s46, 1
      %s48 = scalar_select %p45, %s46, %s47
      %p51 = pneg %p45
      %p52 = scmp.eq.s32.totalorder %s22, 3
      %p53 = por %p51, %p52
      %p54 = scmp.ne.s32.totalorder %s46, %s49
      %p55 = scmp.eq.s32.totalorder %s22, 0
      %p56 = por %p54, %p55
      %p57 = scmp.ne.s32.totalorder %s46, %s49
      %p58 = scmp.eq.s32.totalorder %s27, 3
      %p59 = por %p57, %p58
      %p60 = scmp.ne.s32.totalorder %s49, %s50
      %p61 = scmp.eq.s32.totalorder %s27, 0
      %p62 = por %p60, %p61
      %p63 = scmp.ne.s32.totalorder %s49, %s50
      %p64 = scmp.eq.s32.totalorder %s28, 3
      %p65 = por %p63, %p64
      %p67 = scmp.ne.s32.totalorder %s50, %s66
      %p68 = scmp.eq.s32.totalorder %s28, 0
      %p69 = por %p67, %p68
      %s70 = smul.u32 %s30, 8
      %s71 = ssub.s32 %s70, 1
      %p72 = scmp.gt.s32.totalorder %s71, 0
      %s73 = scalar_select %p72, %s71, 0
      %s74 = smul.u32 %s37, 8
      %s75 = ssub.s32 %s74, 1
      %p76 = scmp.gt.s32.totalorder %s75, 0
      %s77 = scalar_select %p76, %s75, 0
      %s78 = ssub.s32 %s29, %s41
      %s79 = ssub.s32 %s73, %s77
      %s80 = sor.u32 %s78, %s79
      %p81 = scmp.eq.s32.totalorder %s80, 0
      %s83 = sadd.s32 %s82, 1
      %s84 = scalar_select %p81, %s82, %s83
      %p87 = pneg %p81
      %p88 = scmp.eq.s32.totalorder %s22, 3
      %p89 = por %p87, %p88
      %p90 = scmp.ne.s32.totalorder %s82, %s85
      %p91 = scmp.eq.s32.totalorder %s22, 0
      %p92 = por %p90, %p91
      %p93 = scmp.ne.s32.totalorder %s82, %s85
      %p94 = scmp.eq.s32.totalorder %s27, 3
      %p95 = por %p93, %p94
      %p96 = scmp.ne.s32.totalorder %s85, %s86
      %p97 = scmp.eq.s32.totalorder %s27, 0
      %p98 = por %p96, %p97
      %p99 = scmp.ne.s32.totalorder %s85, %s86
      %p100 = scmp.eq.s32.totalorder %s28, 3
      %p101 = por %p99, %p100
      %p103 = scmp.ne.s32.totalorder %s86, %s102
      %p104 = scmp.eq.s32.totalorder %s28, 0
      %p105 = por %p103, %p104
      %s106 = sadd.s32 %s30, 1
      %s107 = smul.u32 %s106, 8
      %p108 = scmp.lt.s32.totalorder %s107, 15
      %s109 = scalar_select %p108, %s107, 15
      %s110 = sadd.s32 %s37, 1
      %s111 = smul.u32 %s110, 8
      %p112 = scmp.lt.s32.totalorder %s111, 15
      %s113 = scalar_select %p112, %s111, 15
      %s114 = ssub.s32 %s29, %s41
      %s115 = ssub.s32 %s109, %s113
      %s116 = sor.u32 %s114, %s115
      %p117 = scmp.eq.s32.totalorder %s116, 0
      %s119 = sadd.s32 %s118, 1
      %s120 = scalar_select %p117, %s118, %s119
      %p123 = pneg %p117
      %p124 = scmp.eq.s32.totalorder %s22, 3
      %p125 = por %p123, %p124
      %p126 = scmp.ne.s32.totalorder %s118, %s121
      %p127 = scmp.eq.s32.totalorder %s22, 0
      %p128 = por %p126, %p127
      %p129 = scmp.ne.s32.totalorder %s118, %s121
      %p130 = scmp.eq.s32.totalorder %s27, 3
      %p131 = por %p129, %p130
      %p132 = scmp.ne.s32.totalorder %s121, %s122
      %p133 = scmp.eq.s32.totalorder %s27, 0
      %p134 = por %p132, %p133
      %p135 = scmp.ne.s32.totalorder %s121, %s122
      %p136 = scmp.eq.s32.totalorder %s28, 3
      %p137 = por %p135, %p136
      %p139 = scmp.ne.s32.totalorder %s122, %s138
      %p140 = scmp.eq.s32.totalorder %s28, 0
      %p141 = por %p139, %p140
      %s143 = sadd.s32 %s142, 1
      %p146 = scmp.eq.s32.totalorder %s22, 3
      %p147 = scmp.ne.s32.totalorder %s142, %s144
      %p148 = scmp.eq.s32.totalorder %s22, 0
      %p149 = por %p147, %p148
      %p150 = scmp.ne.s32.totalorder %s142, %s144
      %p151 = scmp.eq.s32.totalorder %s27, 3
      %p152 = por %p150, %p151
      %p153 = scmp.ne.s32.totalorder %s144, %s145
      %p154 = scmp.eq.s32.totalorder %s27, 0
      %p155 = por %p153, %p154
      %p156 = scmp.ne.s32.totalorder %s144, %s145
      %p157 = scmp.eq.s32.totalorder %s28, 3
      %p158 = por %p156, %p157
      %p160 = scmp.ne.s32.totalorder %s145, %s159
      %p161 = scmp.eq.s32.totalorder %s28, 0
      %p162 = por %p160, %p161
      %s164 = sadd.s32 %s163, 1
      %p167 = scmp.eq.s32.totalorder %s22, 3
      %p168 = scmp.ne.s32.totalorder %s163, %s165
      %p169 = scmp.eq.s32.totalorder %s22, 0
      %p170 = por %p168, %p169
      %p171 = scmp.ne.s32.totalorder %s163, %s165
      %p172 = scmp.eq.s32.totalorder %s27, 3
      %p173 = por %p171, %p172
      %p174 = scmp.ne.s32.totalorder %s165, %s166
      %p175 = scmp.eq.s32.totalorder %s27, 0
      %p176 = por %p174, %p175
      %p177 = scmp.ne.s32.totalorder %s165, %s166
      %p178 = scmp.eq.s32.totalorder %s28, 3
      %p179 = por %p177, %p178
      %p181 = scmp.ne.s32.totalorder %s166, %s180
      %p182 = scmp.eq.s32.totalorder %s28, 0
      %p183 = por %p181, %p182
      %s185 = sadd.s32 %s184, 1
      %p188 = scmp.eq.s32.totalorder %s22, 3
      %p189 = scmp.ne.s32.totalorder %s184, %s186
      %p190 = scmp.eq.s32.totalorder %s22, 0
      %p191 = por %p189, %p190
      %p192 = scmp.ne.s32.totalorder %s184, %s186
      %p193 = scmp.eq.s32.totalorder %s27, 3
      %p194 = por %p192, %p193
      %p195 = scmp.ne.s32.totalorder %s186, %s187
      %p196 = scmp.eq.s32.totalorder %s27, 0
      %p197 = por %p195, %p196
      %p198 = scmp.ne.s32.totalorder %s186, %s187
      %p199 = scmp.eq.s32.totalorder %s28, 3
      %p200 = por %p198, %p199
      %p202 = scmp.ne.s32.totalorder %s187, %s201
      %p203 = scmp.eq.s32.totalorder %s28, 0
      %p204 = por %p202, %p203
      %s206 = sadd.s32 %s205, 1
      %p209 = scmp.eq.s32.totalorder %s22, 3
      %p210 = scmp.ne.s32.totalorder %s205, %s207
      %p211 = scmp.eq.s32.totalorder %s22, 0
      %p212 = por %p210, %p211
      %p213 = scmp.ne.s32.totalorder %s205, %s207
      %p214 = scmp.eq.s32.totalorder %s27, 3
      %p215 = por %p213, %p214
      %p216 = scmp.ne.s32.totalorder %s207, %s208
      %p217 = scmp.eq.s32.totalorder %s27, 0
      %p218 = por %p216, %p217
      %p219 = scmp.ne.s32.totalorder %s207, %s208
      %p220 = scmp.eq.s32.totalorder %s28, 3
      %p221 = por %p219, %p220
      %p223 = scmp.ne.s32.totalorder %s208, %s222
      %p224 = scmp.eq.s32.totalorder %s28, 0
      %p225 = por %p223, %p224
      %s226 = ssub.s32 %s29, %s41
      %s227 = ssub.s32 %s30, %s37
      %s228 = sor.u32 %s226, %s227
      %p229 = scmp.eq.s32.totalorder %s228, 0
      %s231 = sadd.s32 %s230, 1
      %s232 = scalar_select %p229, %s230, %s231
      %p235 = pneg %p229
      %p236 = scmp.eq.s32.totalorder %s22, 3
      %p237 = por %p235, %p236
      %p238 = scmp.ne.s32.totalorder %s230, %s233
      %p239 = scmp.eq.s32.totalorder %s22, 0
      %p240 = por %p238, %p239
      %p241 = scmp.ne.s32.totalorder %s230, %s233
      %p242 = scmp.eq.s32.totalorder %s27, 3
      %p243 = por %p241, %p242
      %p244 = scmp.ne.s32.totalorder %s233, %s234
      %p245 = scmp.eq.s32.totalorder %s27, 0
      %p246 = por %p244, %p245
      %p247 = scmp.ne.s32.totalorder %s233, %s234
      %p248 = scmp.eq.s32.totalorder %s28, 3
      %p249 = por %p247, %p248
      %p251 = scmp.ne.s32.totalorder %s234, %s250
      %p252 = scmp.eq.s32.totalorder %s28, 0
      %p253 = por %p251, %p252
      %p254 = scmp.le.s32.totalorder 1, %s22
      %p255 = scmp.lt.s32.totalorder %s22, 5
      %p256 = pnand %p254, %p255
      %p257 = pneg %p256
      // Predicated region
      $region9: #{tpu_custom_call.1} parent=5 // pred_check
        _
      $region10: #{tpu_custom_call.1} parent=5 // pred_check_branch
        %259 = sbr.rel (%p256) target = $region12
      $region11: #{tpu_custom_call.1} parent=5 // pred_region
        %s260 = ssub.s32 %s22, 1
        // Predicated region
        $region13: #{tpu_custom_call.1} parent=11 // pred_check
          %p261 = pneg %p155
        $region14: #{tpu_custom_call.1} parent=11 // pred_check_branch
          %263 = sbr.rel (%p261) target = $region16
        $region15: #{tpu_custom_call.1} parent=11 // pred_region
          _
        $region16: #{tpu_custom_call.1} parent=11 // pred_fallthru
          _
        // Predicated region
        $region17: #{tpu_custom_call.1} parent=11 // pred_check
          %p264 = pneg %p176
        $region18: #{tpu_custom_call.1} parent=11 // pred_check_branch
          %266 = sbr.rel (%p264) target = $region20
        $region19: #{tpu_custom_call.1} parent=11 // pred_region
          _
        $region20: #{tpu_custom_call.1} parent=11 // pred_fallthru
          _
        // Predicated region
        $region21: #{tpu_custom_call.1} parent=11 // pred_check
          %p267 = pneg %p197
        $region22: #{tpu_custom_call.1} parent=11 // pred_check_branch
          %269 = sbr.rel (%p267) target = $region24
        $region23: #{tpu_custom_call.1} parent=11 // pred_region
          _
        $region24: #{tpu_custom_call.1} parent=11 // pred_fallthru
          _
        // Predicated region
        $region25: #{tpu_custom_call.1} parent=11 // pred_check
          %p270 = pneg %p218
        $region26: #{tpu_custom_call.1} parent=11 // pred_check_branch
          %272 = sbr.rel (%p270) target = $region28
        $region27: #{tpu_custom_call.1} parent=11 // pred_region
          _
        $region28: #{tpu_custom_call.1} parent=11 // pred_fallthru
          _
      $region12: #{tpu_custom_call.1} parent=5 // pred_fallthru
        _
      %p273 = scmp.lt.s32.totalorder %s22, 4
      // Predicated region
      $region29: #{tpu_custom_call.1} parent=5 // pred_check
        %p274 = pneg %p273
      $region30: #{tpu_custom_call.1} parent=5 // pred_check_branch
        %276 = sbr.rel (%p274) target = $region32
      $region31: #{tpu_custom_call.1} parent=5 // pred_region
        // Predicated region
        $region33: #{tpu_custom_call.1} parent=31 // pred_check
          %p277 = pneg %p56
        $region34: #{tpu_custom_call.1} parent=31 // pred_check_branch
          %279 = sbr.rel (%p277) target = $region36
        $region35: #{tpu_custom_call.1} parent=31 // pred_region
          %s280 = sand.u32 %s46, 1
          %s281 = scalar_lea.sflag [#allocation4], %s280
          %s282 = sand.u32 %s46, 1
          %s283 = smul.addr %s282, 128
          %s284 = scalar_lea.vmem [#allocation3], %s283
          %s285 = smul.u32 8, %s30
          %s287 = ssub.s32 2048, 2048
          %288 = vsyncadd %s281, %s287
          %s289 = smul.addr %s285, 2
          %s290 = smul.addr %s29, 32
          %s291 = sadd.s32 %s289, %s290
          %s292 = smul.addr %s291, 128
          %s293 = scalar_lea.hbm %s0, %s292
          %s294 = sshll.u32 %s284, 4
          %s295 = int_to_ptr.vmem [resolvable:$true] %s294
          %300 = dma.hbm_to_vmem [thread:$0]  %s293, 2048, %s295, %s281, 128, 128, 8
        $region36: #{tpu_custom_call.1} parent=31 // pred_fallthru
          _
        // Predicated region
        $region37: #{tpu_custom_call.1} parent=31 // pred_check
          %p301 = pneg %p92
        $region38: #{tpu_custom_call.1} parent=31 // pred_check_branch
          %303 = sbr.rel (%p301) target = $region40
        $region39: #{tpu_custom_call.1} parent=31 // pred_region
          %s304 = sand.u32 %s22, 1
          %s305 = scalar_lea.sflag [#allocation7], %s304
          %s306 = sand.u32 %s82, 1
          %s307 = smul.addr %s306, 16
          %s308 = scalar_lea.vmem [#allocation6], %s307
          %s309 = smul.u32 %s30, 8
          %s310 = ssub.s32 %s309, 1
          %p311 = scmp.gt.s32.totalorder %s310, 0
          %s312 = scalar_select %p311, %s310, 0
          %s314 = ssub.s32 256, 256
          %315 = vsyncadd %s305, %s314
          %s316 = smul.addr %s312, 2
          %s317 = smul.addr %s29, 32
          %s318 = sadd.s32 %s316, %s317
          %s319 = smul.addr %s318, 128
          %s320 = scalar_lea.hbm %s1, %s319
          %s321 = sshll.u32 %s308, 4
          %s322 = int_to_ptr.vmem [resolvable:$true] %s321
          %327 = dma.hbm_to_vmem [thread:$0]  %s320, 256, %s322, %s305, 128, 128, 8
        $region40: #{tpu_custom_call.1} parent=31 // pred_fallthru
          _
        // Predicated region
        $region41: #{tpu_custom_call.1} parent=31 // pred_check
          %p328 = pneg %p128
        $region42: #{tpu_custom_call.1} parent=31 // pred_check_branch
          %330 = sbr.rel (%p328) target = $region44
        $region43: #{tpu_custom_call.1} parent=31 // pred_region
          %s331 = sand.u32 %s22, 1
          %s332 = scalar_lea.sflag [#allocation7], %s331
          %s333 = sand.u32 %s118, 1
          %s334 = smul.addr %s333, 16
          %s335 = scalar_lea.vmem [#allocation8], %s334
          %s336 = sadd.s32 %s30, 1
          %s337 = smul.u32 %s336, 8
          %p338 = scmp.lt.s32.totalorder %s337, 15
          %s339 = scalar_select %p338, %s337, 15
          %s341 = ssub.s32 256, 256
          %342 = vsyncadd %s332, %s341
          %s343 = smul.addr %s339, 2
          %s344 = smul.addr %s29, 32
          %s345 = sadd.s32 %s343, %s344
          %s346 = smul.addr %s345, 128
          %s347 = scalar_lea.hbm %s2, %s346
          %s348 = sshll.u32 %s335, 4
          %s349 = int_to_ptr.vmem [resolvable:$true] %s348
          %354 = dma.hbm_to_vmem [thread:$0]  %s347, 256, %s349, %s332, 128, 128, 8
        $region44: #{tpu_custom_call.1} parent=31 // pred_fallthru
          _
      $region32: #{tpu_custom_call.1} parent=5 // pred_fallthru
        _
      %p355 = scmp.le.s32.totalorder 1, %s22
      %p356 = scmp.lt.s32.totalorder %s22, 5
      %p357 = pnand %p355, %p356
      %p358 = pneg %p357
      // Predicated region
      $region45: #{tpu_custom_call.1} parent=5 // pred_check
        _
      $region46: #{tpu_custom_call.1} parent=5 // pred_check_branch
        %360 = sbr.rel (%p357) target = $region48
      $region47: #{tpu_custom_call.1} parent=5 // pred_region
        %s361 = ssub.s32 %s22, 1
        %s362 = sand.u32 %s49, 1
        %s363 = scalar_lea.sflag [#allocation4], %s362
        %s364 = sand.u32 %s49, 1
        %s365 = smul.addr %s364, 128
        %s366 = scalar_lea.vmem [#allocation3], %s365
        // Predicated region
        $region49: #{tpu_custom_call.1} parent=47 // pred_check
          %p367 = pneg %p62
        $region50: #{tpu_custom_call.1} parent=47 // pred_check_branch
          %369 = sbr.rel (%p367) target = $region52
        $region51: #{tpu_custom_call.1} parent=47 // pred_region
          %370 = dma.done %s363, 2048
        $region52: #{tpu_custom_call.1} parent=47 // pred_fallthru
          _
        %s371 = sand.u32 %s27, 1
        %s372 = scalar_lea.sflag [#allocation7], %s371
        %s373 = sand.u32 %s85, 1
        %s374 = smul.addr %s373, 16
        %s375 = scalar_lea.vmem [#allocation6], %s374
        // Predicated region
        $region53: #{tpu_custom_call.1} parent=47 // pred_check
          %p376 = pneg %p98
        $region54: #{tpu_custom_call.1} parent=47 // pred_check_branch
          %378 = sbr.rel (%p376) target = $region56
        $region55: #{tpu_custom_call.1} parent=47 // pred_region
          %379 = dma.done %s372, 256
        $region56: #{tpu_custom_call.1} parent=47 // pred_fallthru
          _
        %s380 = sand.u32 %s27, 1
        %s381 = scalar_lea.sflag [#allocation7], %s380
        %s382 = sand.u32 %s121, 1
        %s383 = smul.addr %s382, 16
        %s384 = scalar_lea.vmem [#allocation8], %s383
        // Predicated region
        $region57: #{tpu_custom_call.1} parent=47 // pred_check
          %p385 = pneg %p134
        $region58: #{tpu_custom_call.1} parent=47 // pred_check_branch
          %387 = sbr.rel (%p385) target = $region60
        $region59: #{tpu_custom_call.1} parent=47 // pred_region
          %388 = dma.done %s381, 256
        $region60: #{tpu_custom_call.1} parent=47 // pred_fallthru
          _
        %s389 = sand.u32 %s49, 1
        %s390 = scalar_lea.sflag [#allocation4], %s389
        %s391 = sand.u32 %s49, 1
        %s392 = smul.addr %s391, 128
        %s393 = scalar_lea.vmem [#allocation3], %s392
        %p394 = pneg %p62
        %p395 = pneg %p59
        %s396 = sand.u32 %s27, 1
        %s397 = scalar_lea.sflag [#allocation7], %s396
        %s398 = sand.u32 %s85, 1
        %s399 = smul.addr %s398, 16
        %s400 = scalar_lea.vmem [#allocation6], %s399
        %p401 = pneg %p98
        %p402 = pneg %p95
        %s403 = sand.u32 %s27, 1
        %s404 = scalar_lea.sflag [#allocation7], %s403
        %s405 = sand.u32 %s121, 1
        %s406 = smul.addr %s405, 16
        %s407 = scalar_lea.vmem [#allocation8], %s406
        %p408 = pneg %p134
        %p409 = pneg %p131
        %p410 = pneg %p155
        %p411 = pneg %p152
        %p412 = pneg %p176
        %p413 = pneg %p173
        %p414 = pneg %p197
        %p415 = pneg %p194
        %p416 = pneg %p218
        %p417 = pneg %p215
        %p418 = pneg %p246
        %p419 = pneg %p243
        %s420 = sand.u32 %s233, 1
        %s421 = scalar_lea.sflag [#allocation5], %s420
        %s422 = sand.u32 %s233, 1
        %s423 = smul.addr %s422, 128
        %s424 = scalar_lea.vmem [#allocation9], %s423
        %s425 = smul.u32 8, %s32
        %s426 = smul.u32 %s32, 8
        %s427 = ssub.s32 %s426, 1
        %p428 = scmp.gt.s32.totalorder %s427, 0
        %s429 = scalar_select %p428, %s427, 0
        %s430 = sadd.s32 %s32, 1
        %s431 = smul.u32 %s430, 8
        %p432 = scmp.lt.s32.totalorder %s431, 15
        %s433 = scalar_select %p432, %s431, 15
        %s434 = smul.u32 8, %s32
        %v435 = vld [vmem:[%s375] sm:$0xff]
        %v436 = vld [vmem:[%s375 + $0x8] sm:$0xff]
        %v437 = vld [vmem:[%s366] sm:$0xff]
        %v438 = vld [vmem:[%s366 + $0x8] sm:$0xff]
        %v439 = vld [vmem:[%s366 + $0x10] sm:$0xff]
        %v440 = vld [vmem:[%s366 + $0x18] sm:$0xff]
        %v441 = vld [vmem:[%s366 + $0x20] sm:$0xff]
        %v442 = vld [vmem:[%s366 + $0x28] sm:$0xff]
        %v443 = vld [vmem:[%s366 + $0x30] sm:$0xff]
        %v444 = vld [vmem:[%s366 + $0x38] sm:$0xff]
        %v445 = vld [vmem:[%s366 + $0x40] sm:$0xff]
        %v446 = vld [vmem:[%s366 + $0x48] sm:$0xff]
        %v447 = vld [vmem:[%s366 + $0x50] sm:$0xff]
        %v448 = vld [vmem:[%s366 + $0x58] sm:$0xff]
        %v449 = vld [vmem:[%s366 + $0x60] sm:$0xff]
        %v450 = vld [vmem:[%s366 + $0x68] sm:$0xff]
        %v451 = vld [vmem:[%s366 + $0x70] sm:$0xff]
        %v452 = vld [vmem:[%s366 + $0x78] sm:$0xff]
        %v453 = vld [vmem:[%s384] sm:$0xff]
        %v454 = vld [vmem:[%s384 + $0x8] sm:$0xff]
        %v455 = vld [vmem:[%s3] sm:$0xff]
        %v456 = vld [vmem:[%s3 + $0x8] sm:$0xff]
        %v457 = vld [vmem:[%s3 + $0x10] sm:$0xff]
        %v458 = vld [vmem:[%s3 + $0x18] sm:$0xff]
        %v459 = vld [vmem:[%s4] sm:$0x1]
        %v461 = vlaneseq
        %v462 = vshrl.u32 %v461, 7
        %v463 = vsub.s32 0, %v462
        %v464 = vrot.slane %v459, %v463
        %vm466 = vcmask 261120
        %v468 = vsel %vm466, %v435, 0
        %v471 = vsel %vm466, %v436, 0
        %v474 = vsel %vm466, %v437, 0
        %v477 = vsel %vm466, %v438, 0
        %v480 = vsel %vm466, %v439, 0
        %v483 = vsel %vm466, %v440, 0
        %v486 = vsel %vm466, %v441, 0
        %v489 = vsel %vm466, %v442, 0
        %v492 = vsel %vm466, %v443, 0
        %v495 = vsel %vm466, %v444, 0
        %v498 = vsel %vm466, %v445, 0
        %v501 = vsel %vm466, %v446, 0
        %v504 = vsel %vm466, %v447, 0
        %v507 = vsel %vm466, %v448, 0
        %v510 = vsel %vm466, %v449, 0
        %v513 = vsel %vm466, %v450, 0
        %v516 = vsel %vm466, %v451, 0
        %v519 = vsel %vm466, %v452, 0
        %v522 = vsel %vm466, %v453, 0
        %v525 = vsel %vm466, %v454, 0
        %527 = vmatprep.subr.mxu0 0.0
        %528 = vmatpush1.msra.mxu0 0.0
        %529 = vmatprep.subr.mxu0 0.0
        %530 = vmatpush1.msra.mxu0 0.0
        %531 = vmatprep.subr.mxu0 0.0
        %532 = vmatpush1.msra.mxu0 0.0
        %533 = vmatprep.subr.mxu0 0.0
        %534 = vmatpush1.msra.mxu0 0.0
        %535 = vmatprep.subr.mxu0 0.0
        %536 = vmatpush1.msra.mxu0 0.0
        %537 = vmatprep.subr.mxu0 0.0
        %538 = vmatpush1.msra.mxu0 0.0
        %539 = vmatprep.subr.mxu0 0.0
        %540 = vmatpush1.msra.mxu0 0.0
        %541 = vmatprep.subr.mxu0 0.0
        %542 = vmatpush1.msra.mxu0 0.0
        %543 = vmatprep.subr.mxu0 0.0
        %544 = vmatpush1.msra.mxu0 0.0
        %545 = vmatprep.subr.mxu0 0.0
        %546 = vmatpush1.msra.mxu0 0.0
        %547 = vmatprep.subr.mxu0 0.0
        %548 = vmatpush1.msra.mxu0 0.0
        %549 = vmatprep.subr.mxu0 0.0
        %550 = vmatpush1.msra.mxu0 0.0
        %551 = vmatprep.subr.mxu0 0.0
        %552 = vmatpush1.msra.mxu0 %v458
        %553 = vmatprep.subr.mxu0 0.0
        %554 = vmatpush1.msra.mxu0 %v457
        %555 = vmatprep.subr.mxu0 0.0
        %556 = vmatpush1.msra.mxu0 %v456
        %557 = vmatprep.subr.mxu0 0.0
        %558 = vmatpush1.msra.mxu0 %v455
        %559 = vmatprep.subr.mxu0 0.0
        %560 = vmatpush2.msra.mxu0 0.0
        %561 = vmatprep.subr.mxu0 0.0
        %562 = vmatpush2.msra.mxu0 0.0
        %563 = vmatprep.subr.mxu0 0.0
        %564 = vmatpush2.msra.mxu0 0.0
        %565 = vmatprep.subr.mxu0 0.0
        %566 = vmatpush2.msra.mxu0 0.0
        %567 = vmatprep.subr.mxu0 0.0
        %568 = vmatpush2.msra.mxu0 0.0
        %569 = vmatprep.subr.mxu0 0.0
        %570 = vmatpush2.msra.mxu0 0.0
        %571 = vmatprep.subr.mxu0 0.0
        %572 = vmatpush2.msra.mxu0 0.0
        %573 = vmatprep.subr.mxu0 0.0
        %574 = vmatpush2.msra.mxu0 0.0
        %575 = vmatprep.subr.mxu0 0.0
        %576 = vmatpush2.msra.mxu0 0.0
        %577 = vmatprep.subr.mxu0 0.0
        %578 = vmatpush2.msra.mxu0 0.0
        %579 = vmatprep.subr.mxu0 0.0
        %580 = vmatpush2.msra.mxu0 0.0
        %581 = vmatprep.subr.mxu0 0.0
        %582 = vmatpush2.msra.mxu0 0.0
        %583 = vmatprep.subr.mxu0 0.0
        %584 = vmatpush2.msra.mxu0 0.0
        %585 = vmatprep.subr.mxu0 0.0
        %586 = vmatpush2.msra.mxu0 0.0
        %587 = vmatprep.subr.mxu0 0.0
        %588 = vmatpush2.msra.mxu0 0.0
        %589 = vmatprep.subr.mxu0 0.0
        %590 = vmatpush2.msra.mxu0 0.0
        %591 = vmatprep.mubr.f32.mxu0 0.0
        %592 = vmatmul.mubr.f32.gmra.mxu0 %v468
        %v593 = vpop.f32.mrf.mxu0
        %v594 = vadd.f32 %v464, %v593
        %v595 = vpop.f32.mrf.mxu0
        %596 = vmatprep.mubr.f32.mxu0 0.0
        %597 = vmatmul.mubr.f32.gmra.mxu0 %v471
        %v598 = vpop.f32.mrf.mxu0
        %v599 = vadd.f32 %v464, %v598
        %v600 = vpop.f32.mrf.mxu0
        %601 = vmatprep.mubr.f32.mxu0 0.0
        %602 = vmatmul.mubr.f32.gmra.mxu0 %v474
        %v603 = vpop.f32.mrf.mxu0
        %v604 = vadd.f32 %v464, %v603
        %v605 = vpop.f32.mrf.mxu0
        %606 = vmatprep.mubr.f32.mxu0 0.0
        %607 = vmatmul.mubr.f32.gmra.mxu0 %v477
        %v608 = vpop.f32.mrf.mxu0
        %v609 = vadd.f32 %v464, %v608
        %v610 = vpop.f32.mrf.mxu0
        %611 = vmatprep.mubr.f32.mxu0 0.0
        %612 = vmatmul.mubr.f32.gmra.mxu0 %v480
        %v613 = vpop.f32.mrf.mxu0
        %v614 = vadd.f32 %v464, %v613
        %v615 = vpop.f32.mrf.mxu0
        %616 = vmatprep.mubr.f32.mxu0 0.0
        %617 = vmatmul.mubr.f32.gmra.mxu0 %v483
        %v618 = vpop.f32.mrf.mxu0
        %v619 = vadd.f32 %v464, %v618
        %v620 = vpop.f32.mrf.mxu0
        %621 = vmatprep.mubr.f32.mxu0 0.0
        %622 = vmatmul.mubr.f32.gmra.mxu0 %v486
        %v623 = vpop.f32.mrf.mxu0
        %v624 = vadd.f32 %v464, %v623
        %v625 = vpop.f32.mrf.mxu0
        %626 = vmatprep.mubr.f32.mxu0 0.0
        %627 = vmatmul.mubr.f32.gmra.mxu0 %v489
        %v628 = vpop.f32.mrf.mxu0
        %v629 = vadd.f32 %v464, %v628
        %v630 = vpop.f32.mrf.mxu0
        %631 = vmatprep.mubr.f32.mxu0 0.0
        %632 = vmatmul.mubr.f32.gmra.mxu0 %v492
        %v633 = vpop.f32.mrf.mxu0
        %v634 = vadd.f32 %v464, %v633
        %v635 = vpop.f32.mrf.mxu0
        %636 = vmatprep.mubr.f32.mxu0 0.0
        %637 = vmatmul.mubr.f32.gmra.mxu0 %v495
        %v638 = vpop.f32.mrf.mxu0
        %v639 = vadd.f32 %v464, %v638
        %v640 = vpop.f32.mrf.mxu0
        %641 = vmatprep.mubr.f32.mxu0 0.0
        %642 = vmatmul.mubr.f32.gmra.mxu0 %v498
        %v643 = vpop.f32.mrf.mxu0
        %v644 = vadd.f32 %v464, %v643
        %v645 = vpop.f32.mrf.mxu0
        %646 = vmatprep.mubr.f32.mxu0 0.0
        %647 = vmatmul.mubr.f32.gmra.mxu0 %v501
        %v648 = vpop.f32.mrf.mxu0
        %v649 = vadd.f32 %v464, %v648
        %v650 = vpop.f32.mrf.mxu0
        %651 = vmatprep.mubr.f32.mxu0 0.0
        %652 = vmatmul.mubr.f32.gmra.mxu0 %v504
        %v653 = vpop.f32.mrf.mxu0
        %v654 = vadd.f32 %v464, %v653
        %v655 = vpop.f32.mrf.mxu0
        %656 = vmatprep.mubr.f32.mxu0 0.0
        %657 = vmatmul.mubr.f32.gmra.mxu0 %v507
        %v658 = vpop.f32.mrf.mxu0
        %v659 = vadd.f32 %v464, %v658
        %v660 = vpop.f32.mrf.mxu0
        %661 = vmatprep.mubr.f32.mxu0 0.0
        %662 = vmatmul.mubr.f32.gmra.mxu0 %v510
        %v663 = vpop.f32.mrf.mxu0
        %v664 = vadd.f32 %v464, %v663
        %v665 = vpop.f32.mrf.mxu0
        %666 = vmatprep.mubr.f32.mxu0 0.0
        %667 = vmatmul.mubr.f32.gmra.mxu0 %v513
        %v668 = vpop.f32.mrf.mxu0
        %v669 = vadd.f32 %v464, %v668
        %v670 = vpop.f32.mrf.mxu0
        %671 = vmatprep.mubr.f32.mxu0 0.0
        %672 = vmatmul.mubr.f32.gmra.mxu0 %v516
        %v673 = vpop.f32.mrf.mxu0
        %v674 = vadd.f32 %v464, %v673
        %v675 = vpop.f32.mrf.mxu0
        %676 = vmatprep.mubr.f32.mxu0 0.0
        %677 = vmatmul.mubr.f32.gmra.mxu0 %v519
        %v678 = vpop.f32.mrf.mxu0
        %v679 = vadd.f32 %v464, %v678
        %v680 = vpop.f32.mrf.mxu0
        %681 = vmatprep.mubr.f32.mxu0 0.0
        %682 = vmatmul.mubr.f32.gmra.mxu0 %v522
        %v683 = vpop.f32.mrf.mxu0
        %v684 = vadd.f32 %v464, %v683
        %v685 = vpop.f32.mrf.mxu0
        %686 = vmatprep.mubr.f32.mxu0 0.0
        %687 = vmatmul.mubr.f32.gmra.mxu0 %v525
        %v688 = vpop.f32.mrf.mxu0
        %v689 = vadd.f32 %v464, %v688
        %v690 = vpop.f32.mrf.mxu0
        %691 = vdwg.mxu0
        %vm692 = vcmp.gt.f32.partialorder %v594, 0.0
        %vm693 = vcmp.gt.f32.partialorder %v599, 0.0
        %vm694 = vcmp.gt.f32.partialorder %v604, 0.0
        %vm695 = vcmp.gt.f32.partialorder %v609, 0.0
        %vm696 = vcmp.gt.f32.partialorder %v614, 0.0
        %vm697 = vcmp.gt.f32.partialorder %v619, 0.0
        %vm698 = vcmp.gt.f32.partialorder %v624, 0.0
        %vm699 = vcmp.gt.f32.partialorder %v629, 0.0
        %vm700 = vcmp.gt.f32.partialorder %v634, 0.0
        %vm701 = vcmp.gt.f32.partialorder %v639, 0.0
        %vm702 = vcmp.gt.f32.partialorder %v644, 0.0
        %vm703 = vcmp.gt.f32.partialorder %v649, 0.0
        %vm704 = vcmp.gt.f32.partialorder %v654, 0.0
        %vm705 = vcmp.gt.f32.partialorder %v659, 0.0
        %vm706 = vcmp.gt.f32.partialorder %v664, 0.0
        %vm707 = vcmp.gt.f32.partialorder %v669, 0.0
        %vm708 = vcmp.gt.f32.partialorder %v674, 0.0
        %vm709 = vcmp.gt.f32.partialorder %v679, 0.0
        %vm710 = vcmp.gt.f32.partialorder %v684, 0.0
        %vm711 = vcmp.gt.f32.partialorder %v689, 0.0
        %v712 = vmul.f32 %v594, 0.1
        %v713 = vmul.f32 %v599, 0.1
        %v714 = vmul.f32 %v604, 0.1
        %v715 = vmul.f32 %v609, 0.1
        %v716 = vmul.f32 %v614, 0.1
        %v717 = vmul.f32 %v619, 0.1
        %v718 = vmul.f32 %v624, 0.1
        %v719 = vmul.f32 %v629, 0.1
        %v720 = vmul.f32 %v634, 0.1
        %v721 = vmul.f32 %v639, 0.1
        %v722 = vmul.f32 %v644, 0.1
        %v723 = vmul.f32 %v649, 0.1
        %v724 = vmul.f32 %v654, 0.1
        %v725 = vmul.f32 %v659, 0.1
        %v726 = vmul.f32 %v664, 0.1
        %v727 = vmul.f32 %v669, 0.1
        %v728 = vmul.f32 %v674, 0.1
        %v729 = vmul.f32 %v679, 0.1
        %v730 = vmul.f32 %v684, 0.1
        %v731 = vmul.f32 %v689, 0.1
        %v732 = vsel %vm692, %v594, %v712
        %v733 = vsel %vm693, %v599, %v713
        %v734 = vsel %vm694, %v604, %v714
        %v735 = vsel %vm695, %v609, %v715
        %v736 = vsel %vm696, %v614, %v716
        %v737 = vsel %vm697, %v619, %v717
        %v738 = vsel %vm698, %v624, %v718
        %v739 = vsel %vm699, %v629, %v719
        %v740 = vsel %vm700, %v634, %v720
        %v741 = vsel %vm701, %v639, %v721
        %v742 = vsel %vm702, %v644, %v722
        %v743 = vsel %vm703, %v649, %v723
        %v744 = vsel %vm704, %v654, %v724
        %v745 = vsel %vm705, %v659, %v725
        %v746 = vsel %vm706, %v664, %v726
        %v747 = vsel %vm707, %v669, %v727
        %v748 = vsel %vm708, %v674, %v728
        %v749 = vsel %vm709, %v679, %v729
        %v750 = vsel %vm710, %v684, %v730
        %v751 = vsel %vm711, %v689, %v731
        %vm752 = vcmask 130048
        %753 = vst.msk [vmem:[#allocation2 + $0x1] sm:$0xff] %vm752, %v732
        %754 = vst.msk [vmem:[#allocation2 + $0x9] sm:$0xff] %vm752, %v733
        %755 = vst.msk [vmem:[#allocation2 + $0x19] sm:$0xff] %vm752, %v734
        %756 = vst.msk [vmem:[#allocation2 + $0x21] sm:$0xff] %vm752, %v735
        %757 = vst.msk [vmem:[#allocation2 + $0x31] sm:$0xff] %vm752, %v736
        %758 = vst.msk [vmem:[#allocation2 + $0x39] sm:$0xff] %vm752, %v737
        %759 = vst.msk [vmem:[#allocation2 + $0x49] sm:$0xff] %vm752, %v738
        %760 = vst.msk [vmem:[#allocation2 + $0x51] sm:$0xff] %vm752, %v739
        %761 = vst.msk [vmem:[#allocation2 + $0x61] sm:$0xff] %vm752, %v740
        %762 = vst.msk [vmem:[#allocation2 + $0x69] sm:$0xff] %vm752, %v741
        %763 = vst.msk [vmem:[#allocation2 + $0x79] sm:$0xff] %vm752, %v742
        %764 = vst.msk [vmem:[#allocation2 + $0x81] sm:$0xff] %vm752, %v743
        %765 = vst.msk [vmem:[#allocation2 + $0x91] sm:$0xff] %vm752, %v744
        %766 = vst.msk [vmem:[#allocation2 + $0x99] sm:$0xff] %vm752, %v745
        %767 = vst.msk [vmem:[#allocation2 + $0xa9] sm:$0xff] %vm752, %v746
        %768 = vst.msk [vmem:[#allocation2 + $0xb1] sm:$0xff] %vm752, %v747
        %769 = vst.msk [vmem:[#allocation2 + $0xc1] sm:$0xff] %vm752, %v748
        %770 = vst.msk [vmem:[#allocation2 + $0xc9] sm:$0xff] %vm752, %v749
        %771 = vst.msk [vmem:[#allocation2 + $0xd9] sm:$0xff] %vm752, %v750
        %772 = vst.msk [vmem:[#allocation2 + $0xe1] sm:$0xff] %vm752, %v751
        %vm773 = vcmask 122880
        %774 = vst.msk [vmem:[#allocation2] sm:$0x1] %vm773, 0.0
        %775 = vst.msk [vmem:[#allocation2 + $0x18] sm:$0x1] %vm773, 0.0
        %776 = vst.msk [vmem:[#allocation2 + $0x30] sm:$0x1] %vm773, 0.0
        %777 = vst.msk [vmem:[#allocation2 + $0x48] sm:$0x1] %vm773, 0.0
        %778 = vst.msk [vmem:[#allocation2 + $0x60] sm:$0x1] %vm773, 0.0
        %779 = vst.msk [vmem:[#allocation2 + $0x78] sm:$0x1] %vm773, 0.0
        %780 = vst.msk [vmem:[#allocation2 + $0x90] sm:$0x1] %vm773, 0.0
        %781 = vst.msk [vmem:[#allocation2 + $0xa8] sm:$0x1] %vm773, 0.0
        %782 = vst.msk [vmem:[#allocation2 + $0xc0] sm:$0x1] %vm773, 0.0
        %783 = vst.msk [vmem:[#allocation2 + $0xd8] sm:$0x1] %vm773, 0.0
        %784 = vst.msk [vmem:[#allocation2 + $0x11] sm:$0x1] %vm773, 0.0
        %785 = vst.msk [vmem:[#allocation2 + $0x29] sm:$0x1] %vm773, 0.0
        %786 = vst.msk [vmem:[#allocation2 + $0x41] sm:$0x1] %vm773, 0.0
        %787 = vst.msk [vmem:[#allocation2 + $0x59] sm:$0x1] %vm773, 0.0
        %788 = vst.msk [vmem:[#allocation2 + $0x71] sm:$0x1] %vm773, 0.0
        %789 = vst.msk [vmem:[#allocation2 + $0x89] sm:$0x1] %vm773, 0.0
        %790 = vst.msk [vmem:[#allocation2 + $0xa1] sm:$0x1] %vm773, 0.0
        %791 = vst.msk [vmem:[#allocation2 + $0xb9] sm:$0x1] %vm773, 0.0
        %792 = vst.msk [vmem:[#allocation2 + $0xd1] sm:$0x1] %vm773, 0.0
        %793 = vst.msk [vmem:[#allocation2 + $0xe9] sm:$0x1] %vm773, 0.0
        %p794 = scmp.eq.s32.totalorder %s32, 0
        // Predicated region
        $region61: #{tpu_custom_call.1} parent=47 // pred_check
          %p795 = pneg %p794
        $region62: #{tpu_custom_call.1} parent=47 // pred_check_branch
          %797 = sbr.rel (%p795) target = $region64
        $region63: #{tpu_custom_call.1} parent=47 // pred_region
          %798 = vst.msk [vmem:[#allocation2] sm:$0xff] %vm752, 0.0
          %799 = vst.msk [vmem:[#allocation2 + $0x8] sm:$0xff] %vm752, 0.0
          %vm800 = vcmask 123904
          %801 = vst.msk [vmem:[#allocation2 + $0x10] sm:$0x3] %vm800, 0.0
        $region64: #{tpu_custom_call.1} parent=47 // pred_fallthru
          _
        %p802 = scmp.eq.s32.totalorder %s32, 1
        // Predicated region
        $region65: #{tpu_custom_call.1} parent=47 // pred_check
          %p803 = pneg %p802
        $region66: #{tpu_custom_call.1} parent=47 // pred_check_branch
          %805 = sbr.rel (%p803) target = $region68
        $region67: #{tpu_custom_call.1} parent=47 // pred_region
          %s806 = scalar_lea.vmem [#allocation2], 216
          %807 = vst.msk [vmem:[%s806] sm:$0xff] %vm752, 0.0
          %808 = vst.msk [vmem:[%s806 + $0x8] sm:$0xff] %vm752, 0.0
          %vm809 = vcmask 123904
          %810 = vst.msk [vmem:[%s806 + $0x10] sm:$0x3] %vm809, 0.0
        $region68: #{tpu_custom_call.1} parent=47 // pred_fallthru
          _
        %v811 = vld [vmem:[#allocation2] sm:$0xff]
        %v812 = vld [vmem:[#allocation2 + $0x8] sm:$0xff]
        %v813 = vld [vmem:[#allocation2 + $0x18] sm:$0xff]
        %v814 = vld [vmem:[#allocation2 + $0x20] sm:$0xff]
        %v815 = vld [vmem:[#allocation2 + $0x30] sm:$0xff]
        %v816 = vld [vmem:[#allocation2 + $0x38] sm:$0xff]
        %v817 = vld [vmem:[#allocation2 + $0x48] sm:$0xff]
        %v818 = vld [vmem:[#allocation2 + $0x50] sm:$0xff]
        %v819 = vld [vmem:[#allocation2 + $0x60] sm:$0xff]
        %v820 = vld [vmem:[#allocation2 + $0x68] sm:$0xff]
        %v821 = vld [vmem:[#allocation2 + $0x78] sm:$0xff]
        %v822 = vld [vmem:[#allocation2 + $0x80] sm:$0xff]
        %v823 = vld [vmem:[#allocation2 + $0x90] sm:$0xff]
        %v824 = vld [vmem:[#allocation2 + $0x98] sm:$0xff]
        %v825 = vld [vmem:[#allocation2 + $0xa8] sm:$0xff]
        %v826 = vld [vmem:[#allocation2 + $0xb0] sm:$0xff]
        %v827 = vld [vmem:[#allocation2 + $0x1] sm:$0xff]
        %v828 = vld [vmem:[#allocation2 + $0x9] sm:$0xff]
        %v829 = vld [vmem:[#allocation2 + $0x19] sm:$0xff]
        %v830 = vld [vmem:[#allocation2 + $0x21] sm:$0xff]
        %v831 = vld [vmem:[#allocation2 + $0x31] sm:$0xff]
        %v832 = vld [vmem:[#allocation2 + $0x39] sm:$0xff]
        %v833 = vld [vmem:[#allocation2 + $0x49] sm:$0xff]
        %v834 = vld [vmem:[#allocation2 + $0x51] sm:$0xff]
        %v835 = vld [vmem:[#allocation2 + $0x61] sm:$0xff]
        %v836 = vld [vmem:[#allocation2 + $0x69] sm:$0xff]
        %v837 = vld [vmem:[#allocation2 + $0x79] sm:$0xff]
        %v838 = vld [vmem:[#allocation2 + $0x81] sm:$0xff]
        %v839 = vld [vmem:[#allocation2 + $0x91] sm:$0xff]
        %v840 = vld [vmem:[#allocation2 + $0x99] sm:$0xff]
        %v841 = vld [vmem:[#allocation2 + $0xa9] sm:$0xff]
        %v842 = vld [vmem:[#allocation2 + $0xb1] sm:$0xff]
        %v843 = vld [vmem:[#allocation2 + $0x2] sm:$0xff]
        %v844 = vld [vmem:[#allocation2 + $0xa] sm:$0xff]
        %v845 = vld [vmem:[#allocation2 + $0x1a] sm:$0xff]
        %v846 = vld [vmem:[#allocation2 + $0x22] sm:$0xff]
        %v847 = vld [vmem:[#allocation2 + $0x32] sm:$0xff]
        %v848 = vld [vmem:[#allocation2 + $0x3a] sm:$0xff]
        %v849 = vld [vmem:[#allocation2 + $0x4a] sm:$0xff]
        %v850 = vld [vmem:[#allocation2 + $0x52] sm:$0xff]
        %v851 = vld [vmem:[#allocation2 + $0x62] sm:$0xff]
        %v852 = vld [vmem:[#allocation2 + $0x6a] sm:$0xff]
        %v853 = vld [vmem:[#allocation2 + $0x7a] sm:$0xff]
        %v854 = vld [vmem:[#allocation2 + $0x82] sm:$0xff]
        %v855 = vld [vmem:[#allocation2 + $0x92] sm:$0xff]
        %v856 = vld [vmem:[#allocation2 + $0x9a] sm:$0xff]
        %v857 = vld [vmem:[#allocation2 + $0xaa] sm:$0xff]
        %v858 = vld [vmem:[#allocation2 + $0xb2] sm:$0xff]
        %s859 = scalar_lea.vmem [#allocation2], 24
        %v860 = vld [vmem:[%s859] sm:$0xff]
        %v861 = vld [vmem:[%s859 + $0x8] sm:$0xff]
        %v862 = vld [vmem:[%s859 + $0x18] sm:$0xff]
        %v863 = vld [vmem:[%s859 + $0x20] sm:$0xff]
        %v864 = vld [vmem:[%s859 + $0x30] sm:$0xff]
        %v865 = vld [vmem:[%s859 + $0x38] sm:$0xff]
        %v866 = vld [vmem:[%s859 + $0x48] sm:$0xff]
        %v867 = vld [vmem:[%s859 + $0x50] sm:$0xff]
        %v868 = vld [vmem:[%s859 + $0x60] sm:$0xff]
        %v869 = vld [vmem:[%s859 + $0x68] sm:$0xff]
        %v870 = vld [vmem:[%s859 + $0x78] sm:$0xff]
        %v871 = vld [vmem:[%s859 + $0x80] sm:$0xff]
        %v872 = vld [vmem:[%s859 + $0x90] sm:$0xff]
        %v873 = vld [vmem:[%s859 + $0x98] sm:$0xff]
        %v874 = vld [vmem:[%s859 + $0xa8] sm:$0xff]
        %v875 = vld [vmem:[%s859 + $0xb0] sm:$0xff]
        %v876 = vld [vmem:[%s859 + $0x1] sm:$0xff]
        %v877 = vld [vmem:[%s859 + $0x9] sm:$0xff]
        %v878 = vld [vmem:[%s859 + $0x19] sm:$0xff]
        %v879 = vld [vmem:[%s859 + $0x21] sm:$0xff]
        %v880 = vld [vmem:[%s859 + $0x31] sm:$0xff]
        %v881 = vld [vmem:[%s859 + $0x39] sm:$0xff]
        %v882 = vld [vmem:[%s859 + $0x49] sm:$0xff]
        %v883 = vld [vmem:[%s859 + $0x51] sm:$0xff]
        %v884 = vld [vmem:[%s859 + $0x61] sm:$0xff]
        %v885 = vld [vmem:[%s859 + $0x69] sm:$0xff]
        %v886 = vld [vmem:[%s859 + $0x79] sm:$0xff]
        %v887 = vld [vmem:[%s859 + $0x81] sm:$0xff]
        %v888 = vld [vmem:[%s859 + $0x91] sm:$0xff]
        %v889 = vld [vmem:[%s859 + $0x99] sm:$0xff]
        %v890 = vld [vmem:[%s859 + $0xa9] sm:$0xff]
        %v891 = vld [vmem:[%s859 + $0xb1] sm:$0xff]
        %v892 = vld [vmem:[%s859 + $0x2] sm:$0xff]
        %v893 = vld [vmem:[%s859 + $0xa] sm:$0xff]
        %v894 = vld [vmem:[%s859 + $0x1a] sm:$0xff]
        %v895 = vld [vmem:[%s859 + $0x22] sm:$0xff]
        %v896 = vld [vmem:[%s859 + $0x32] sm:$0xff]
        %v897 = vld [vmem:[%s859 + $0x3a] sm:$0xff]
        %v898 = vld [vmem:[%s859 + $0x4a] sm:$0xff]
        %v899 = vld [vmem:[%s859 + $0x52] sm:$0xff]
        %v900 = vld [vmem:[%s859 + $0x62] sm:$0xff]
        %v901 = vld [vmem:[%s859 + $0x6a] sm:$0xff]
        %v902 = vld [vmem:[%s859 + $0x7a] sm:$0xff]
        %v903 = vld [vmem:[%s859 + $0x82] sm:$0xff]
        %v904 = vld [vmem:[%s859 + $0x92] sm:$0xff]
        %v905 = vld [vmem:[%s859 + $0x9a] sm:$0xff]
        %v906 = vld [vmem:[%s859 + $0xaa] sm:$0xff]
        %v907 = vld [vmem:[%s859 + $0xb2] sm:$0xff]
        %s908 = scalar_lea.vmem [#allocation2], 48
        %v909 = vld [vmem:[%s908] sm:$0xff]
        %v910 = vld [vmem:[%s908 + $0x8] sm:$0xff]
        %v911 = vld [vmem:[%s908 + $0x18] sm:$0xff]
        %v912 = vld [vmem:[%s908 + $0x20] sm:$0xff]
        %v913 = vld [vmem:[%s908 + $0x30] sm:$0xff]
        %v914 = vld [vmem:[%s908 + $0x38] sm:$0xff]
        %v915 = vld [vmem:[%s908 + $0x48] sm:$0xff]
        %v916 = vld [vmem:[%s908 + $0x50] sm:$0xff]
        %v917 = vld [vmem:[%s908 + $0x60] sm:$0xff]
        %v918 = vld [vmem:[%s908 + $0x68] sm:$0xff]
        %v919 = vld [vmem:[%s908 + $0x78] sm:$0xff]
        %v920 = vld [vmem:[%s908 + $0x80] sm:$0xff]
        %v921 = vld [vmem:[%s908 + $0x90] sm:$0xff]
        %v922 = vld [vmem:[%s908 + $0x98] sm:$0xff]
        %v923 = vld [vmem:[%s908 + $0xa8] sm:$0xff]
        %v924 = vld [vmem:[%s908 + $0xb0] sm:$0xff]
        %v925 = vld [vmem:[%s908 + $0x1] sm:$0xff]
        %v926 = vld [vmem:[%s908 + $0x9] sm:$0xff]
        %v927 = vld [vmem:[%s908 + $0x19] sm:$0xff]
        %v928 = vld [vmem:[%s908 + $0x21] sm:$0xff]
        %v929 = vld [vmem:[%s908 + $0x31] sm:$0xff]
        %v930 = vld [vmem:[%s908 + $0x39] sm:$0xff]
        %v931 = vld [vmem:[%s908 + $0x49] sm:$0xff]
        %v932 = vld [vmem:[%s908 + $0x51] sm:$0xff]
        %v933 = vld [vmem:[%s908 + $0x61] sm:$0xff]
        %v934 = vld [vmem:[%s908 + $0x69] sm:$0xff]
        %v935 = vld [vmem:[%s908 + $0x79] sm:$0xff]
        %v936 = vld [vmem:[%s908 + $0x81] sm:$0xff]
        %v937 = vld [vmem:[%s908 + $0x91] sm:$0xff]
        %v938 = vld [vmem:[%s908 + $0x99] sm:$0xff]
        %v939 = vld [vmem:[%s908 + $0xa9] sm:$0xff]
        %v940 = vld [vmem:[%s908 + $0xb1] sm:$0xff]
        %v941 = vld [vmem:[%s908 + $0x2] sm:$0xff]
        %v942 = vld [vmem:[%s908 + $0xa] sm:$0xff]
        %v943 = vld [vmem:[%s908 + $0x1a] sm:$0xff]
        %v944 = vld [vmem:[%s908 + $0x22] sm:$0xff]
        %v945 = vld [vmem:[%s908 + $0x32] sm:$0xff]
        %v946 = vld [vmem:[%s908 + $0x3a] sm:$0xff]
        %v947 = vld [vmem:[%s908 + $0x4a] sm:$0xff]
        %v948 = vld [vmem:[%s908 + $0x52] sm:$0xff]
        %v949 = vld [vmem:[%s908 + $0x62] sm:$0xff]
        %v950 = vld [vmem:[%s908 + $0x6a] sm:$0xff]
        %v951 = vld [vmem:[%s908 + $0x7a] sm:$0xff]
        %v952 = vld [vmem:[%s908 + $0x82] sm:$0xff]
        %v953 = vld [vmem:[%s908 + $0x92] sm:$0xff]
        %v954 = vld [vmem:[%s908 + $0x9a] sm:$0xff]
        %v955 = vld [vmem:[%s908 + $0xaa] sm:$0xff]
        %v956 = vld [vmem:[%s908 + $0xb2] sm:$0xff]
        %973 = vrot.lane.b32.xlu0 %v827, 16
        %v974 = vpop.permute.xlu0 %973
        %975 = vrot.lane.b32.xlu0 %v828, 16
        %v976 = vpop.permute.xlu0 %975
        %977 = vrot.lane.b32.xlu0 %v829, 16
        %v978 = vpop.permute.xlu0 %977
        %979 = vrot.lane.b32.xlu0 %v830, 16
        %v980 = vpop.permute.xlu0 %979
        %981 = vrot.lane.b32.xlu0 %v831, 16
        %v982 = vpop.permute.xlu0 %981
        %983 = vrot.lane.b32.xlu0 %v832, 16
        %v984 = vpop.permute.xlu0 %983
        %985 = vrot.lane.b32.xlu0 %v833, 16
        %v986 = vpop.permute.xlu0 %985
        %987 = vrot.lane.b32.xlu0 %v834, 16
        %v988 = vpop.permute.xlu0 %987
        %989 = vrot.lane.b32.xlu0 %v835, 16
        %v990 = vpop.permute.xlu0 %989
        %991 = vrot.lane.b32.xlu0 %v836, 16
        %v992 = vpop.permute.xlu0 %991
        %993 = vrot.lane.b32.xlu0 %v837, 16
        %v994 = vpop.permute.xlu0 %993
        %995 = vrot.lane.b32.xlu0 %v838, 16
        %v996 = vpop.permute.xlu0 %995
        %997 = vrot.lane.b32.xlu0 %v839, 16
        %v998 = vpop.permute.xlu0 %997
        %999 = vrot.lane.b32.xlu0 %v840, 16
        %v1000 = vpop.permute.xlu0 %999
        %1001 = vrot.lane.b32.xlu0 %v841, 16
        %v1002 = vpop.permute.xlu0 %1001
        %1003 = vrot.lane.b32.xlu0 %v842, 16
        %v1004 = vpop.permute.xlu0 %1003
        %1037 = vrot.lane.b32.xlu0 %v843, 32
        %v1038 = vpop.permute.xlu0 %1037
        %1039 = vrot.lane.b32.xlu0 %v844, 32
        %v1040 = vpop.permute.xlu0 %1039
        %1041 = vrot.lane.b32.xlu0 %v845, 32
        %v1042 = vpop.permute.xlu0 %1041
        %1043 = vrot.lane.b32.xlu0 %v846, 32
        %v1044 = vpop.permute.xlu0 %1043
        %1045 = vrot.lane.b32.xlu0 %v847, 32
        %v1046 = vpop.permute.xlu0 %1045
        %1047 = vrot.lane.b32.xlu0 %v848, 32
        %v1048 = vpop.permute.xlu0 %1047
        %1049 = vrot.lane.b32.xlu0 %v849, 32
        %v1050 = vpop.permute.xlu0 %1049
        %1051 = vrot.lane.b32.xlu0 %v850, 32
        %v1052 = vpop.permute.xlu0 %1051
        %1053 = vrot.lane.b32.xlu0 %v851, 32
        %v1054 = vpop.permute.xlu0 %1053
        %1055 = vrot.lane.b32.xlu0 %v852, 32
        %v1056 = vpop.permute.xlu0 %1055
        %1057 = vrot.lane.b32.xlu0 %v853, 32
        %v1058 = vpop.permute.xlu0 %1057
        %1059 = vrot.lane.b32.xlu0 %v854, 32
        %v1060 = vpop.permute.xlu0 %1059
        %1061 = vrot.lane.b32.xlu0 %v855, 32
        %v1062 = vpop.permute.xlu0 %1061
        %1063 = vrot.lane.b32.xlu0 %v856, 32
        %v1064 = vpop.permute.xlu0 %1063
        %1065 = vrot.lane.b32.xlu0 %v857, 32
        %v1066 = vpop.permute.xlu0 %1065
        %1067 = vrot.lane.b32.xlu0 %v858, 32
        %v1068 = vpop.permute.xlu0 %1067
        %1101 = vrot.lane.b32.xlu0 %v860, 48
        %v1102 = vpop.permute.xlu0 %1101
        %1103 = vrot.lane.b32.xlu0 %v861, 48
        %v1104 = vpop.permute.xlu0 %1103
        %1105 = vrot.lane.b32.xlu0 %v862, 48
        %v1106 = vpop.permute.xlu0 %1105
        %1107 = vrot.lane.b32.xlu0 %v863, 48
        %v1108 = vpop.permute.xlu0 %1107
        %1109 = vrot.lane.b32.xlu0 %v864, 48
        %v1110 = vpop.permute.xlu0 %1109
        %1111 = vrot.lane.b32.xlu0 %v865, 48
        %v1112 = vpop.permute.xlu0 %1111
        %1113 = vrot.lane.b32.xlu0 %v866, 48
        %v1114 = vpop.permute.xlu0 %1113
        %1115 = vrot.lane.b32.xlu0 %v867, 48
        %v1116 = vpop.permute.xlu0 %1115
        %1117 = vrot.lane.b32.xlu0 %v868, 48
        %v1118 = vpop.permute.xlu0 %1117
        %1119 = vrot.lane.b32.xlu0 %v869, 48
        %v1120 = vpop.permute.xlu0 %1119
        %1121 = vrot.lane.b32.xlu0 %v870, 48
        %v1122 = vpop.permute.xlu0 %1121
        %1123 = vrot.lane.b32.xlu0 %v871, 48
        %v1124 = vpop.permute.xlu0 %1123
        %1125 = vrot.lane.b32.xlu0 %v872, 48
        %v1126 = vpop.permute.xlu0 %1125
        %1127 = vrot.lane.b32.xlu0 %v873, 48
        %v1128 = vpop.permute.xlu0 %1127
        %1129 = vrot.lane.b32.xlu0 %v874, 48
        %v1130 = vpop.permute.xlu0 %1129
        %1131 = vrot.lane.b32.xlu0 %v875, 48
        %v1132 = vpop.permute.xlu0 %1131
        %1165 = vrot.lane.b32.xlu0 %v876, 64
        %v1166 = vpop.permute.xlu0 %1165
        %1167 = vrot.lane.b32.xlu0 %v877, 64
        %v1168 = vpop.permute.xlu0 %1167
        %1169 = vrot.lane.b32.xlu0 %v878, 64
        %v1170 = vpop.permute.xlu0 %1169
        %1171 = vrot.lane.b32.xlu0 %v879, 64
        %v1172 = vpop.permute.xlu0 %1171
        %1173 = vrot.lane.b32.xlu0 %v880, 64
        %v1174 = vpop.permute.xlu0 %1173
        %1175 = vrot.lane.b32.xlu0 %v881, 64
        %v1176 = vpop.permute.xlu0 %1175
        %1177 = vrot.lane.b32.xlu0 %v882, 64
        %v1178 = vpop.permute.xlu0 %1177
        %1179 = vrot.lane.b32.xlu0 %v883, 64
        %v1180 = vpop.permute.xlu0 %1179
        %1181 = vrot.lane.b32.xlu0 %v884, 64
        %v1182 = vpop.permute.xlu0 %1181
        %1183 = vrot.lane.b32.xlu0 %v885, 64
        %v1184 = vpop.permute.xlu0 %1183
        %1185 = vrot.lane.b32.xlu0 %v886, 64
        %v1186 = vpop.permute.xlu0 %1185
        %1187 = vrot.lane.b32.xlu0 %v887, 64
        %v1188 = vpop.permute.xlu0 %1187
        %1189 = vrot.lane.b32.xlu0 %v888, 64
        %v1190 = vpop.permute.xlu0 %1189
        %1191 = vrot.lane.b32.xlu0 %v889, 64
        %v1192 = vpop.permute.xlu0 %1191
        %1193 = vrot.lane.b32.xlu0 %v890, 64
        %v1194 = vpop.permute.xlu0 %1193
        %1195 = vrot.lane.b32.xlu0 %v891, 64
        %v1196 = vpop.permute.xlu0 %1195
        %1229 = vrot.lane.b32.xlu0 %v892, 80
        %v1230 = vpop.permute.xlu0 %1229
        %1231 = vrot.lane.b32.xlu0 %v893, 80
        %v1232 = vpop.permute.xlu0 %1231
        %1233 = vrot.lane.b32.xlu0 %v894, 80
        %v1234 = vpop.permute.xlu0 %1233
        %1235 = vrot.lane.b32.xlu0 %v895, 80
        %v1236 = vpop.permute.xlu0 %1235
        %1237 = vrot.lane.b32.xlu0 %v896, 80
        %v1238 = vpop.permute.xlu0 %1237
        %1239 = vrot.lane.b32.xlu0 %v897, 80
        %v1240 = vpop.permute.xlu0 %1239
        %1241 = vrot.lane.b32.xlu0 %v898, 80
        %v1242 = vpop.permute.xlu0 %1241
        %1243 = vrot.lane.b32.xlu0 %v899, 80
        %v1244 = vpop.permute.xlu0 %1243
        %1245 = vrot.lane.b32.xlu0 %v900, 80
        %v1246 = vpop.permute.xlu0 %1245
        %1247 = vrot.lane.b32.xlu0 %v901, 80
        %v1248 = vpop.permute.xlu0 %1247
        %1249 = vrot.lane.b32.xlu0 %v902, 80
        %v1250 = vpop.permute.xlu0 %1249
        %1251 = vrot.lane.b32.xlu0 %v903, 80
        %v1252 = vpop.permute.xlu0 %1251
        %1253 = vrot.lane.b32.xlu0 %v904, 80
        %v1254 = vpop.permute.xlu0 %1253
        %1255 = vrot.lane.b32.xlu0 %v905, 80
        %v1256 = vpop.permute.xlu0 %1255
        %1257 = vrot.lane.b32.xlu0 %v906, 80
        %v1258 = vpop.permute.xlu0 %1257
        %1259 = vrot.lane.b32.xlu0 %v907, 80
        %v1260 = vpop.permute.xlu0 %1259
        %1293 = vrot.lane.b32.xlu0 %v909, 96
        %v1294 = vpop.permute.xlu0 %1293
        %1295 = vrot.lane.b32.xlu0 %v910, 96
        %v1296 = vpop.permute.xlu0 %1295
        %1297 = vrot.lane.b32.xlu0 %v911, 96
        %v1298 = vpop.permute.xlu0 %1297
        %1299 = vrot.lane.b32.xlu0 %v912, 96
        %v1300 = vpop.permute.xlu0 %1299
        %1301 = vrot.lane.b32.xlu0 %v913, 96
        %v1302 = vpop.permute.xlu0 %1301
        %1303 = vrot.lane.b32.xlu0 %v914, 96
        %v1304 = vpop.permute.xlu0 %1303
        %1305 = vrot.lane.b32.xlu0 %v915, 96
        %v1306 = vpop.permute.xlu0 %1305
        %1307 = vrot.lane.b32.xlu0 %v916, 96
        %v1308 = vpop.permute.xlu0 %1307
        %1309 = vrot.lane.b32.xlu0 %v917, 96
        %v1310 = vpop.permute.xlu0 %1309
        %1311 = vrot.lane.b32.xlu0 %v918, 96
        %v1312 = vpop.permute.xlu0 %1311
        %1313 = vrot.lane.b32.xlu0 %v919, 96
        %v1314 = vpop.permute.xlu0 %1313
        %1315 = vrot.lane.b32.xlu0 %v920, 96
        %v1316 = vpop.permute.xlu0 %1315
        %1317 = vrot.lane.b32.xlu0 %v921, 96
        %v1318 = vpop.permute.xlu0 %1317
        %1319 = vrot.lane.b32.xlu0 %v922, 96
        %v1320 = vpop.permute.xlu0 %1319
        %1321 = vrot.lane.b32.xlu0 %v923, 96
        %v1322 = vpop.permute.xlu0 %1321
        %1323 = vrot.lane.b32.xlu0 %v924, 96
        %v1324 = vpop.permute.xlu0 %1323
        %1357 = vrot.lane.b32.xlu0 %v925, 112
        %v1358 = vpop.permute.xlu0 %1357
        %1359 = vrot.lane.b32.xlu0 %v926, 112
        %v1360 = vpop.permute.xlu0 %1359
        %1361 = vrot.lane.b32.xlu0 %v927, 112
        %v1362 = vpop.permute.xlu0 %1361
        %1363 = vrot.lane.b32.xlu0 %v928, 112
        %v1364 = vpop.permute.xlu0 %1363
        %1365 = vrot.lane.b32.xlu0 %v929, 112
        %v1366 = vpop.permute.xlu0 %1365
        %1367 = vrot.lane.b32.xlu0 %v930, 112
        %v1368 = vpop.permute.xlu0 %1367
        %1369 = vrot.lane.b32.xlu0 %v931, 112
        %v1370 = vpop.permute.xlu0 %1369
        %1371 = vrot.lane.b32.xlu0 %v932, 112
        %v1372 = vpop.permute.xlu0 %1371
        %1373 = vrot.lane.b32.xlu0 %v933, 112
        %v1374 = vpop.permute.xlu0 %1373
        %1375 = vrot.lane.b32.xlu0 %v934, 112
        %v1376 = vpop.permute.xlu0 %1375
        %1377 = vrot.lane.b32.xlu0 %v935, 112
        %v1378 = vpop.permute.xlu0 %1377
        %1379 = vrot.lane.b32.xlu0 %v936, 112
        %v1380 = vpop.permute.xlu0 %1379
        %1381 = vrot.lane.b32.xlu0 %v937, 112
        %v1382 = vpop.permute.xlu0 %1381
        %1383 = vrot.lane.b32.xlu0 %v938, 112
        %v1384 = vpop.permute.xlu0 %1383
        %1385 = vrot.lane.b32.xlu0 %v939, 112
        %v1386 = vpop.permute.xlu0 %1385
        %1387 = vrot.lane.b32.xlu0 %v940, 112
        %v1388 = vpop.permute.xlu0 %1387
        %v1405 = vsel %vm752, %v811, %v974
        %v1406 = vsel %vm752, %v812, %v976
        %v1407 = vsel %vm752, %v813, %v978
        %v1408 = vsel %vm752, %v814, %v980
        %v1409 = vsel %vm752, %v815, %v982
        %v1410 = vsel %vm752, %v816, %v984
        %v1411 = vsel %vm752, %v817, %v986
        %v1412 = vsel %vm752, %v818, %v988
        %v1413 = vsel %vm752, %v819, %v990
        %v1414 = vsel %vm752, %v820, %v992
        %v1415 = vsel %vm752, %v821, %v994
        %v1416 = vsel %vm752, %v822, %v996
        %v1417 = vsel %vm752, %v823, %v998
        %v1418 = vsel %vm752, %v824, %v1000
        %v1419 = vsel %vm752, %v825, %v1002
        %v1420 = vsel %vm752, %v826, %v1004
        %v1421 = vsel %vm466, %v1405, %v1038
        %v1422 = vsel %vm466, %v1406, %v1040
        %v1423 = vsel %vm466, %v1407, %v1042
        %v1424 = vsel %vm466, %v1408, %v1044
        %v1425 = vsel %vm466, %v1409, %v1046
        %v1426 = vsel %vm466, %v1410, %v1048
        %v1427 = vsel %vm466, %v1411, %v1050
        %v1428 = vsel %vm466, %v1412, %v1052
        %v1429 = vsel %vm466, %v1413, %v1054
        %v1430 = vsel %vm466, %v1414, %v1056
        %v1431 = vsel %vm466, %v1415, %v1058
        %v1432 = vsel %vm466, %v1416, %v1060
        %v1433 = vsel %vm466, %v1417, %v1062
        %v1434 = vsel %vm466, %v1418, %v1064
        %v1435 = vsel %vm466, %v1419, %v1066
        %v1436 = vsel %vm466, %v1420, %v1068
        %vm1437 = vcmask 392192
        %v1438 = vsel %vm1437, %v1421, %v1102
        %v1439 = vsel %vm1437, %v1422, %v1104
        %v1440 = vsel %vm1437, %v1423, %v1106
        %v1441 = vsel %vm1437, %v1424, %v1108
        %v1442 = vsel %vm1437, %v1425, %v1110
        %v1443 = vsel %vm1437, %v1426, %v1112
        %v1444 = vsel %vm1437, %v1427, %v1114
        %v1445 = vsel %vm1437, %v1428, %v1116
        %v1446 = vsel %vm1437, %v1429, %v1118
        %v1447 = vsel %vm1437, %v1430, %v1120
        %v1448 = vsel %vm1437, %v1431, %v1122
        %v1449 = vsel %vm1437, %v1432, %v1124
        %v1450 = vsel %vm1437, %v1433, %v1126
        %v1451 = vsel %vm1437, %v1434, %v1128
        %v1452 = vsel %vm1437, %v1435, %v1130
        %v1453 = vsel %vm1437, %v1436, %v1132
        %vm1454 = vcmask 523264
        %v1455 = vsel %vm1454, %v1438, %v1166
        %v1456 = vsel %vm1454, %v1439, %v1168
        %v1457 = vsel %vm1454, %v1440, %v1170
        %v1458 = vsel %vm1454, %v1441, %v1172
        %v1459 = vsel %vm1454, %v1442, %v1174
        %v1460 = vsel %vm1454, %v1443, %v1176
        %v1461 = vsel %vm1454, %v1444, %v1178
        %v1462 = vsel %vm1454, %v1445, %v1180
        %v1463 = vsel %vm1454, %v1446, %v1182
        %v1464 = vsel %vm1454, %v1447, %v1184
        %v1465 = vsel %vm1454, %v1448, %v1186
        %v1466 = vsel %vm1454, %v1449, %v1188
        %v1467 = vsel %vm1454, %v1450, %v1190
        %v1468 = vsel %vm1454, %v1451, %v1192
        %v1469 = vsel %vm1454, %v1452, %v1194
        %v1470 = vsel %vm1454, %v1453, %v1196
        %vm1471 = vcmask 654336
        %v1472 = vsel %vm1471, %v1455, %v1230
        %v1473 = vsel %vm1471, %v1456, %v1232
        %v1474 = vsel %vm1471, %v1457, %v1234
        %v1475 = vsel %vm1471, %v1458, %v1236
        %v1476 = vsel %vm1471, %v1459, %v1238
        %v1477 = vsel %vm1471, %v1460, %v1240
        %v1478 = vsel %vm1471, %v1461, %v1242
        %v1479 = vsel %vm1471, %v1462, %v1244
        %v1480 = vsel %vm1471, %v1463, %v1246
        %v1481 = vsel %vm1471, %v1464, %v1248
        %v1482 = vsel %vm1471, %v1465, %v1250
        %v1483 = vsel %vm1471, %v1466, %v1252
        %v1484 = vsel %vm1471, %v1467, %v1254
        %v1485 = vsel %vm1471, %v1468, %v1256
        %v1486 = vsel %vm1471, %v1469, %v1258
        %v1487 = vsel %vm1471, %v1470, %v1260
        %vm1488 = vcmask 785408
        %v1489 = vsel %vm1488, %v1472, %v1294
        %v1490 = vsel %vm1488, %v1473, %v1296
        %v1491 = vsel %vm1488, %v1474, %v1298
        %v1492 = vsel %vm1488, %v1475, %v1300
        %v1493 = vsel %vm1488, %v1476, %v1302
        %v1494 = vsel %vm1488, %v1477, %v1304
        %v1495 = vsel %vm1488, %v1478, %v1306
        %v1496 = vsel %vm1488, %v1479, %v1308
        %v1497 = vsel %vm1488, %v1480, %v1310
        %v1498 = vsel %vm1488, %v1481, %v1312
        %v1499 = vsel %vm1488, %v1482, %v1314
        %v1500 = vsel %vm1488, %v1483, %v1316
        %v1501 = vsel %vm1488, %v1484, %v1318
        %v1502 = vsel %vm1488, %v1485, %v1320
        %v1503 = vsel %vm1488, %v1486, %v1322
        %v1504 = vsel %vm1488, %v1487, %v1324
        %vm1505 = vcmask 916480
        %v1506 = vsel %vm1505, %v1489, %v1358
        %v1507 = vsel %vm1505, %v1490, %v1360
        %v1508 = vsel %vm1505, %v1491, %v1362
        %v1509 = vsel %vm1505, %v1492, %v1364
        %v1510 = vsel %vm1505, %v1493, %v1366
        %v1511 = vsel %vm1505, %v1494, %v1368
        %v1512 = vsel %vm1505, %v1495, %v1370
        %v1513 = vsel %vm1505, %v1496, %v1372
        %v1514 = vsel %vm1505, %v1497, %v1374
        %v1515 = vsel %vm1505, %v1498, %v1376
        %v1516 = vsel %vm1505, %v1499, %v1378
        %v1517 = vsel %vm1505, %v1500, %v1380
        %v1518 = vsel %vm1505, %v1501, %v1382
        %v1519 = vsel %vm1505, %v1502, %v1384
        %v1520 = vsel %vm1505, %v1503, %v1386
        %v1521 = vsel %vm1505, %v1504, %v1388
        %v1522 = vld [vmem:[%s5] sm:$0xff]
        %v1523 = vld [vmem:[%s5 + $0x8] sm:$0xff]
        %v1524 = vld [vmem:[%s5 + $0x10] sm:$0xff]
        %v1525 = vld [vmem:[%s5 + $0x18] sm:$0xff]
        %v1526 = vld [vmem:[%s5 + $0x20] sm:$0xff]
        %v1527 = vld [vmem:[%s5 + $0x28] sm:$0xff]
        %v1528 = vld [vmem:[%s5 + $0x30] sm:$0xff]
        %v1529 = vld [vmem:[%s5 + $0x38] sm:$0xff]
        %v1530 = vld [vmem:[%s5 + $0x40] sm:$0xff]
        %v1531 = vld [vmem:[%s5 + $0x48] sm:$0xff]
        %v1532 = vld [vmem:[%s5 + $0x50] sm:$0xff]
        %v1533 = vld [vmem:[%s5 + $0x58] sm:$0xff]
        %v1534 = vld [vmem:[%s5 + $0x60] sm:$0xff]
        %v1535 = vld [vmem:[%s5 + $0x68] sm:$0xff]
        %v1536 = vld [vmem:[%s5 + $0x70] sm:$0xff]
        %v1537 = vld [vmem:[%s5 + $0x78] sm:$0xff]
        %v1538 = vld [vmem:[%s5 + $0x80] sm:$0xff]
        %v1539 = vld [vmem:[%s5 + $0x88] sm:$0xff]
        %v1540 = vld [vmem:[%s6] sm:$0x1]
        %v1542 = vlaneseq
        %v1543 = vshrl.u32 %v1542, 7
        %v1544 = vsub.s32 0, %v1543
        %v1545 = vrot.slane %v1540, %v1544
        %v1548 = vsel %vm752, %v941, 0
        %v1551 = vsel %vm752, %v942, 0
        %v1554 = vsel %vm752, %v943, 0
        %v1557 = vsel %vm752, %v944, 0
        %v1560 = vsel %vm752, %v945, 0
        %v1563 = vsel %vm752, %v946, 0
        %v1566 = vsel %vm752, %v947, 0
        %v1569 = vsel %vm752, %v948, 0
        %v1572 = vsel %vm752, %v949, 0
        %v1575 = vsel %vm752, %v950, 0
        %v1578 = vsel %vm752, %v951, 0
        %v1581 = vsel %vm752, %v952, 0
        %v1584 = vsel %vm752, %v953, 0
        %v1587 = vsel %vm752, %v954, 0
        %v1590 = vsel %vm752, %v955, 0
        %v1593 = vsel %vm752, %v956, 0
        %1595 = vmatprep.subr.mxu0 0.0
        %1596 = vmatpush1.msra.mxu0 %v1537
        %1597 = vmatprep.subr.mxu0 0.0
        %1598 = vmatpush1.msra.mxu0 %v1536
        %1599 = vmatprep.subr.mxu0 0.0
        %1600 = vmatpush1.msra.mxu0 %v1535
        %1601 = vmatprep.subr.mxu0 0.0
        %1602 = vmatpush1.msra.mxu0 %v1534
        %1603 = vmatprep.subr.mxu0 0.0
        %1604 = vmatpush1.msra.mxu0 %v1533
        %1605 = vmatprep.subr.mxu0 0.0
        %1606 = vmatpush1.msra.mxu0 %v1532
        %1607 = vmatprep.subr.mxu0 0.0
        %1608 = vmatpush1.msra.mxu0 %v1531
        %1609 = vmatprep.subr.mxu0 0.0
        %1610 = vmatpush1.msra.mxu0 %v1530
        %1611 = vmatprep.subr.mxu0 0.0
        %1612 = vmatpush1.msra.mxu0 %v1529
        %1613 = vmatprep.subr.mxu0 0.0
        %1614 = vmatpush1.msra.mxu0 %v1528
        %1615 = vmatprep.subr.mxu0 0.0
        %1616 = vmatpush1.msra.mxu0 %v1527
        %1617 = vmatprep.subr.mxu0 0.0
        %1618 = vmatpush1.msra.mxu0 %v1526
        %1619 = vmatprep.subr.mxu0 0.0
        %1620 = vmatpush1.msra.mxu0 %v1525
        %1621 = vmatprep.subr.mxu0 0.0
        %1622 = vmatpush1.msra.mxu0 %v1524
        %1623 = vmatprep.subr.mxu0 0.0
        %1624 = vmatpush1.msra.mxu0 %v1523
        %1625 = vmatprep.subr.mxu0 0.0
        %1626 = vmatpush1.msra.mxu0 %v1522
        %1627 = vmatprep.subr.mxu0 0.0
        %1628 = vmatpush2.msra.mxu0 0.0
        %1629 = vmatprep.subr.mxu0 0.0
        %1630 = vmatpush2.msra.mxu0 0.0
        %1631 = vmatprep.subr.mxu0 0.0
        %1632 = vmatpush2.msra.mxu0 0.0
        %1633 = vmatprep.subr.mxu0 0.0
        %1634 = vmatpush2.msra.mxu0 0.0
        %1635 = vmatprep.subr.mxu0 0.0
        %1636 = vmatpush2.msra.mxu0 0.0
        %1637 = vmatprep.subr.mxu0 0.0
        %1638 = vmatpush2.msra.mxu0 0.0
        %1639 = vmatprep.subr.mxu0 0.0
        %1640 = vmatpush2.msra.mxu0 0.0
        %1641 = vmatprep.subr.mxu0 0.0
        %1642 = vmatpush2.msra.mxu0 0.0
        %1643 = vmatprep.subr.mxu0 0.0
        %1644 = vmatpush2.msra.mxu0 0.0
        %1645 = vmatprep.subr.mxu0 0.0
        %1646 = vmatpush2.msra.mxu0 0.0
        %1647 = vmatprep.subr.mxu0 0.0
        %1648 = vmatpush2.msra.mxu0 0.0
        %1649 = vmatprep.subr.mxu0 0.0
        %1650 = vmatpush2.msra.mxu0 0.0
        %1651 = vmatprep.subr.mxu0 0.0
        %1652 = vmatpush2.msra.mxu0 0.0
        %1653 = vmatprep.subr.mxu0 0.0
        %1654 = vmatpush2.msra.mxu0 0.0
        %1655 = vmatprep.subr.mxu0 0.0
        %1656 = vmatpush2.msra.mxu0 %v1539
        %1657 = vmatprep.subr.mxu0 0.0
        %1658 = vmatpush2.msra.mxu0 %v1538
        %1659 = vmatprep.mubr.f32.mxu0 %v1548
        %1660 = vmatmul.mubr.f32.gmra.mxu0 %v1506
        %v1661 = vpop.f32.mrf.mxu0
        %v1662 = vadd.f32 %v1545, %v1661
        %v1663 = vpop.f32.mrf.mxu0
        %1664 = vmatprep.mubr.f32.mxu0 %v1551
        %1665 = vmatmul.mubr.f32.gmra.mxu0 %v1507
        %v1666 = vpop.f32.mrf.mxu0
        %v1667 = vadd.f32 %v1545, %v1666
        %v1668 = vpop.f32.mrf.mxu0
        %1669 = vmatprep.mubr.f32.mxu0 %v1554
        %1670 = vmatmul.mubr.f32.gmra.mxu0 %v1508
        %v1671 = vpop.f32.mrf.mxu0
        %v1672 = vadd.f32 %v1545, %v1671
        %v1673 = vpop.f32.mrf.mxu0
        %1674 = vmatprep.mubr.f32.mxu0 %v1557
        %1675 = vmatmul.mubr.f32.gmra.mxu0 %v1509
        %v1676 = vpop.f32.mrf.mxu0
        %v1677 = vadd.f32 %v1545, %v1676
        %v1678 = vpop.f32.mrf.mxu0
        %1679 = vmatprep.mubr.f32.mxu0 %v1560
        %1680 = vmatmul.mubr.f32.gmra.mxu0 %v1510
        %v1681 = vpop.f32.mrf.mxu0
        %v1682 = vadd.f32 %v1545, %v1681
        %v1683 = vpop.f32.mrf.mxu0
        %1684 = vmatprep.mubr.f32.mxu0 %v1563
        %1685 = vmatmul.mubr.f32.gmra.mxu0 %v1511
        %v1686 = vpop.f32.mrf.mxu0
        %v1687 = vadd.f32 %v1545, %v1686
        %v1688 = vpop.f32.mrf.mxu0
        %1689 = vmatprep.mubr.f32.mxu0 %v1566
        %1690 = vmatmul.mubr.f32.gmra.mxu0 %v1512
        %v1691 = vpop.f32.mrf.mxu0
        %v1692 = vadd.f32 %v1545, %v1691
        %v1693 = vpop.f32.mrf.mxu0
        %1694 = vmatprep.mubr.f32.mxu0 %v1569
        %1695 = vmatmul.mubr.f32.gmra.mxu0 %v1513
        %v1696 = vpop.f32.mrf.mxu0
        %v1697 = vadd.f32 %v1545, %v1696
        %v1698 = vpop.f32.mrf.mxu0
        %1699 = vmatprep.mubr.f32.mxu0 %v1572
        %1700 = vmatmul.mubr.f32.gmra.mxu0 %v1514
        %v1701 = vpop.f32.mrf.mxu0
        %v1702 = vadd.f32 %v1545, %v1701
        %v1703 = vpop.f32.mrf.mxu0
        %1704 = vmatprep.mubr.f32.mxu0 %v1575
        %1705 = vmatmul.mubr.f32.gmra.mxu0 %v1515
        %v1706 = vpop.f32.mrf.mxu0
        %v1707 = vadd.f32 %v1545, %v1706
        %v1708 = vpop.f32.mrf.mxu0
        %1709 = vmatprep.mubr.f32.mxu0 %v1578
        %1710 = vmatmul.mubr.f32.gmra.mxu0 %v1516
        %v1711 = vpop.f32.mrf.mxu0
        %v1712 = vadd.f32 %v1545, %v1711
        %v1713 = vpop.f32.mrf.mxu0
        %1714 = vmatprep.mubr.f32.mxu0 %v1581
        %1715 = vmatmul.mubr.f32.gmra.mxu0 %v1517
        %v1716 = vpop.f32.mrf.mxu0
        %v1717 = vadd.f32 %v1545, %v1716
        %v1718 = vpop.f32.mrf.mxu0
        %1719 = vmatprep.mubr.f32.mxu0 %v1584
        %1720 = vmatmul.mubr.f32.gmra.mxu0 %v1518
        %v1721 = vpop.f32.mrf.mxu0
        %v1722 = vadd.f32 %v1545, %v1721
        %v1723 = vpop.f32.mrf.mxu0
        %1724 = vmatprep.mubr.f32.mxu0 %v1587
        %1725 = vmatmul.mubr.f32.gmra.mxu0 %v1519
        %v1726 = vpop.f32.mrf.mxu0
        %v1727 = vadd.f32 %v1545, %v1726
        %v1728 = vpop.f32.mrf.mxu0
        %1729 = vmatprep.mubr.f32.mxu0 %v1590
        %1730 = vmatmul.mubr.f32.gmra.mxu0 %v1520
        %v1731 = vpop.f32.mrf.mxu0
        %v1732 = vadd.f32 %v1545, %v1731
        %v1733 = vpop.f32.mrf.mxu0
        %1734 = vmatprep.mubr.f32.mxu0 %v1593
        %1735 = vmatmul.mubr.f32.gmra.mxu0 %v1521
        %v1736 = vpop.f32.mrf.mxu0
        %v1737 = vadd.f32 %v1545, %v1736
        %v1738 = vpop.f32.mrf.mxu0
        %1739 = vdwg.mxu0
        %vm1740 = vcmp.gt.f32.partialorder %v1662, 0.0
        %vm1741 = vcmp.gt.f32.partialorder %v1667, 0.0
        %vm1742 = vcmp.gt.f32.partialorder %v1672, 0.0
        %vm1743 = vcmp.gt.f32.partialorder %v1677, 0.0
        %vm1744 = vcmp.gt.f32.partialorder %v1682, 0.0
        %vm1745 = vcmp.gt.f32.partialorder %v1687, 0.0
        %vm1746 = vcmp.gt.f32.partialorder %v1692, 0.0
        %vm1747 = vcmp.gt.f32.partialorder %v1697, 0.0
        %vm1748 = vcmp.gt.f32.partialorder %v1702, 0.0
        %vm1749 = vcmp.gt.f32.partialorder %v1707, 0.0
        %vm1750 = vcmp.gt.f32.partialorder %v1712, 0.0
        %vm1751 = vcmp.gt.f32.partialorder %v1717, 0.0
        %vm1752 = vcmp.gt.f32.partialorder %v1722, 0.0
        %vm1753 = vcmp.gt.f32.partialorder %v1727, 0.0
        %vm1754 = vcmp.gt.f32.partialorder %v1732, 0.0
        %vm1755 = vcmp.gt.f32.partialorder %v1737, 0.0
        %v1756 = vmul.f32 %v1662, 0.1
        %v1757 = vmul.f32 %v1667, 0.1
        %v1758 = vmul.f32 %v1672, 0.1
        %v1759 = vmul.f32 %v1677, 0.1
        %v1760 = vmul.f32 %v1682, 0.1
        %v1761 = vmul.f32 %v1687, 0.1
        %v1762 = vmul.f32 %v1692, 0.1
        %v1763 = vmul.f32 %v1697, 0.1
        %v1764 = vmul.f32 %v1702, 0.1
        %v1765 = vmul.f32 %v1707, 0.1
        %v1766 = vmul.f32 %v1712, 0.1
        %v1767 = vmul.f32 %v1717, 0.1
        %v1768 = vmul.f32 %v1722, 0.1
        %v1769 = vmul.f32 %v1727, 0.1
        %v1770 = vmul.f32 %v1732, 0.1
        %v1771 = vmul.f32 %v1737, 0.1
        %v1772 = vsel %vm1740, %v1662, %v1756
        %v1773 = vsel %vm1741, %v1667, %v1757
        %v1774 = vsel %vm1742, %v1672, %v1758
        %v1775 = vsel %vm1743, %v1677, %v1759
        %v1776 = vsel %vm1744, %v1682, %v1760
        %v1777 = vsel %vm1745, %v1687, %v1761
        %v1778 = vsel %vm1746, %v1692, %v1762
        %v1779 = vsel %vm1747, %v1697, %v1763
        %v1780 = vsel %vm1748, %v1702, %v1764
        %v1781 = vsel %vm1749, %v1707, %v1765
        %v1782 = vsel %vm1750, %v1712, %v1766
        %v1783 = vsel %vm1751, %v1717, %v1767
        %v1784 = vsel %vm1752, %v1722, %v1768
        %v1785 = vsel %vm1753, %v1727, %v1769
        %v1786 = vsel %vm1754, %v1732, %v1770
        %v1787 = vsel %vm1755, %v1737, %v1771
        %v1788 = vld [vmem:[%s366] sm:$0xff]
        %v1789 = vld [vmem:[%s366 + $0x8] sm:$0xff]
        %v1790 = vld [vmem:[%s366 + $0x10] sm:$0xff]
        %v1791 = vld [vmem:[%s366 + $0x18] sm:$0xff]
        %v1792 = vld [vmem:[%s366 + $0x20] sm:$0xff]
        %v1793 = vld [vmem:[%s366 + $0x28] sm:$0xff]
        %v1794 = vld [vmem:[%s366 + $0x30] sm:$0xff]
        %v1795 = vld [vmem:[%s366 + $0x38] sm:$0xff]
        %v1796 = vld [vmem:[%s366 + $0x40] sm:$0xff]
        %v1797 = vld [vmem:[%s366 + $0x48] sm:$0xff]
        %v1798 = vld [vmem:[%s366 + $0x50] sm:$0xff]
        %v1799 = vld [vmem:[%s366 + $0x58] sm:$0xff]
        %v1800 = vld [vmem:[%s366 + $0x60] sm:$0xff]
        %v1801 = vld [vmem:[%s366 + $0x68] sm:$0xff]
        %v1802 = vld [vmem:[%s366 + $0x70] sm:$0xff]
        %v1803 = vld [vmem:[%s366 + $0x78] sm:$0xff]
        %v1804 = vadd.f32 %v1772, %v1788
        %v1805 = vadd.f32 %v1773, %v1789
        %v1806 = vadd.f32 %v1774, %v1790
        %v1807 = vadd.f32 %v1775, %v1791
        %v1808 = vadd.f32 %v1776, %v1792
        %v1809 = vadd.f32 %v1777, %v1793
        %v1810 = vadd.f32 %v1778, %v1794
        %v1811 = vadd.f32 %v1779, %v1795
        %v1812 = vadd.f32 %v1780, %v1796
        %v1813 = vadd.f32 %v1781, %v1797
        %v1814 = vadd.f32 %v1782, %v1798
        %v1815 = vadd.f32 %v1783, %v1799
        %v1816 = vadd.f32 %v1784, %v1800
        %v1817 = vadd.f32 %v1785, %v1801
        %v1818 = vadd.f32 %v1786, %v1802
        %v1819 = vadd.f32 %v1787, %v1803
        %1820 = vst.msk [vmem:[%s424] sm:$0xff] %vm466, %v1804
        %1821 = vst.msk [vmem:[%s424 + $0x8] sm:$0xff] %vm466, %v1805
        %1822 = vst.msk [vmem:[%s424 + $0x10] sm:$0xff] %vm466, %v1806
        %1823 = vst.msk [vmem:[%s424 + $0x18] sm:$0xff] %vm466, %v1807
        %1824 = vst.msk [vmem:[%s424 + $0x20] sm:$0xff] %vm466, %v1808
        %1825 = vst.msk [vmem:[%s424 + $0x28] sm:$0xff] %vm466, %v1809
        %1826 = vst.msk [vmem:[%s424 + $0x30] sm:$0xff] %vm466, %v1810
        %1827 = vst.msk [vmem:[%s424 + $0x38] sm:$0xff] %vm466, %v1811
        %1828 = vst.msk [vmem:[%s424 + $0x40] sm:$0xff] %vm466, %v1812
        %1829 = vst.msk [vmem:[%s424 + $0x48] sm:$0xff] %vm466, %v1813
        %1830 = vst.msk [vmem:[%s424 + $0x50] sm:$0xff] %vm466, %v1814
        %1831 = vst.msk [vmem:[%s424 + $0x58] sm:$0xff] %vm466, %v1815
        %1832 = vst.msk [vmem:[%s424 + $0x60] sm:$0xff] %vm466, %v1816
        %1833 = vst.msk [vmem:[%s424 + $0x68] sm:$0xff] %vm466, %v1817
        %1834 = vst.msk [vmem:[%s424 + $0x70] sm:$0xff] %vm466, %v1818
        %1835 = vst.msk [vmem:[%s424 + $0x78] sm:$0xff] %vm466, %v1819
        %s1836 = sand.u32 %s233, 1
        %s1837 = scalar_lea.sflag [#allocation5], %s1836
        %s1838 = sand.u32 %s233, 1
        %s1839 = smul.addr %s1838, 128
        %s1840 = scalar_lea.vmem [#allocation9], %s1839
        // Predicated region
        $region69: #{tpu_custom_call.1} parent=47 // pred_check
          %p1841 = pneg %p243
        $region70: #{tpu_custom_call.1} parent=47 // pred_check_branch
          %1843 = sbr.rel (%p1841) target = $region72
        $region71: #{tpu_custom_call.1} parent=47 // pred_region
          %s1844 = smul.u32 8, %s32
          %s1846 = ssub.s32 2048, 2048
          %1847 = vsyncadd %s1837, %s1846
          %s1848 = smul.addr %s1844, 2
          %s1849 = smul.addr %s31, 32
          %s1850 = sadd.s32 %s1848, %s1849
          %s1851 = smul.addr %s1850, 128
          %s1852 = scalar_lea.hbm %s7, %s1851
          %s1853 = sshll.u32 %s1840, 4
          %s1854 = int_to_ptr.vmem [resolvable:$true] %s1853
          %1859 = dma.vmem_to_hbm [thread:$0]  %s1854, 2048, %s1852, %s1837, 128, 128, 8
        $region72: #{tpu_custom_call.1} parent=47 // pred_fallthru
          _
      $region48: #{tpu_custom_call.1} parent=5 // pred_fallthru
        _
      %p1860 = scmp.le.s32.totalorder 2, %s22
      // Predicated region
      $region73: #{tpu_custom_call.1} parent=5 // pred_check
        %p1861 = pneg %p1860
      $region74: #{tpu_custom_call.1} parent=5 // pred_check_branch
        %1863 = sbr.rel (%p1861) target = $region76
      $region75: #{tpu_custom_call.1} parent=5 // pred_region
        %s1864 = ssub.s32 %s22, 2
        // Predicated region
        $region77: #{tpu_custom_call.1} parent=75 // pred_check
          %p1865 = pneg %p249
        $region78: #{tpu_custom_call.1} parent=75 // pred_check_branch
          %1867 = sbr.rel (%p1865) target = $region80
        $region79: #{tpu_custom_call.1} parent=75 // pred_region
          %s1868 = sand.u32 %s234, 1
          %s1869 = scalar_lea.sflag [#allocation5], %s1868
          %s1870 = sand.u32 %s234, 1
          %s1871 = smul.addr %s1870, 128
          %s1872 = scalar_lea.vmem [#allocation9], %s1871
          %1873 = dma.done %s1869, 2048
        $region80: #{tpu_custom_call.1} parent=75 // pred_fallthru
          _
      $region76: #{tpu_custom_call.1} parent=5 // pred_fallthru
        _
    $region6: #{tpu_custom_call.1} parent=1 // loop_footer
      %s26 = sadd.s32 1, %s22
    $region7: #{tpu_custom_call.1} parent=1 // loop_footer_branch
      %21 = sbr.rel target = $region3
    $region8: #{tpu_custom_call.1} parent=1 // loop_exit
      _
    %1874 = vsyncpa [#allocation4], 1
    %s1875 = scalar_lea.sflag [#allocation4], 1
    %1876 = vsyncpa %s1875, 1
    %1877 = vsyncpa [#allocation7], 1
    %s1878 = scalar_lea.sflag [#allocation7], 1
    %1879 = vsyncpa %s1878, 1
    %1880 = vsyncpa [#allocation5], 1
    %s1881 = scalar_lea.sflag [#allocation5], 1
    %1882 = vsyncpa %s1881, 1

// kernel: tpu_custom_call.1
$region0: #{tpu_custom_call.1}
  #allocation0 [shape = 'u32[]', space=smem, size = 0x4, offset = 0x4, fixed_abs, tag = 'smem constant byte address 0x4 - core index']
  #allocation1 [shape = 'u32[144,128]{1,0:T(1,128)}', space=vmem, size = 0x12000, scoped, tag = 'internal scratch']
  #allocation2 [shape = 'f32[10,18,16]{2,1,0:T(8,128)}', space=vmem, size = 0x1e000, scoped, tag = 'scratch operand']
  %s0 = inlined_call_operand.hbm [shape: f32[2,16,16,32], index: 0, kind: input, shape index: {}]
  %s1 = inlined_call_operand.hbm [shape: f32[2,16,16,32], index: 1, kind: input, shape index: {}]
  %s2 = inlined_call_operand.hbm [shape: f32[2,16,16,32], index: 2, kind: input, shape index: {}]
  %s3 = inlined_call_operand.vmem [shape: f32[32,16], index: 3, kind: input, shape index: {}]
  %s4 = inlined_call_operand.vmem [shape: f32[1,16], index: 4, kind: input, shape index: {}]
  %s5 = inlined_call_operand.vmem [shape: f32[144,32], index: 5, kind: input, shape index: {}]
  %s6 = inlined_call_operand.vmem [shape: f32[1,32], index: 6, kind: input, shape index: {}]
  %s7 = inlined_call_operand.hbm [shape: f32[2,16,16,32], index: 7, kind: output, shape index: {}]
  %s8 = sld [smem:[#allocation0]]
  $region81: #{tpu_custom_call.1} parent=0
    _
  %s10 = ssub.s32 1, %s8
  %s11 = scalar_select 0, %s10, %s8
  $region1: #{tpu_custom_call.1} parent=0
    #allocation3 [shape = 'u8[131072]{0}', space=vmem, size = 0x20000, scoped, tag = 'input window, operand 0']
    #allocation4 [shape = 's32[2]{0}', space=sflag, size = 0x8, scoped, tag = 'scoped memory for tpu_custom_call.1']
    #allocation5 [shape = 's32[2]{0}', space=sflag, size = 0x8, scoped, tag = 'scoped memory for tpu_custom_call.1']
    #allocation6 [shape = 'u8[16384]{0}', space=vmem, size = 0x4000, scoped, tag = 'input window, operand 1']
    #allocation7 [shape = 's32[2]{0}', space=sflag, size = 0x8, scoped, tag = 'scoped memory for tpu_custom_call.1']
    #allocation8 [shape = 'u8[16384]{0}', space=vmem, size = 0x4000, scoped, tag = 'input window, operand 2']
    #allocation9 [shape = 'u8[131072]{0}', space=vmem, size = 0x20000, scoped, tag = 'output window, operand 0']
    %12 = vsyncpa [#allocation4], 0
    %s13 = scalar_lea.sflag [#allocation4], 1
    %14 = vsyncpa %s13, 0
    %15 = vsyncpa [#allocation7], 0
    %s16 = scalar_lea.sflag [#allocation7], 1
    %17 = vsyncpa %s16, 0
    %18 = vsyncpa [#allocation5], 0
    %s19 = scalar_lea.sflag [#allocation5], 1
    %20 = vsyncpa %s19, 0
    loop: start=0, step=1, limit=6
    $region2: #{tpu_custom_call.1} parent=1 // loop_pre_header
      _
    $region3: #{tpu_custom_call.1} parent=1 // loop_header
      %s22 = sphi 0, %s26
      %p23 = scmp.ge.s32.totalorder %s22, 6
      %s29 = sphi 0, %s41
      %s30 = sphi 0, %s37
      %s31 = sphi 0, %s29
      %s32 = sphi 0, %s30
      %s33 = sphi 0, %s31
      %s34 = sphi 0, %s32
      %s46 = sphi 0, %s48
      %s49 = sphi 0, %s46
      %s50 = sphi 0, %s49
      %s66 = sphi 0, %s50
      %s82 = sphi 0, %s84
      %s85 = sphi 0, %s82
      %s86 = sphi 0, %s85
      %s102 = sphi 0, %s86
      %s118 = sphi 0, %s120
      %s121 = sphi 0, %s118
      %s122 = sphi 0, %s121
      %s138 = sphi 0, %s122
      %s142 = sphi 0, %s142
      %s144 = sphi 0, %s142
      %s145 = sphi 0, %s144
      %s159 = sphi 0, %s145
      %s163 = sphi 0, %s163
      %s165 = sphi 0, %s163
      %s166 = sphi 0, %s165
      %s180 = sphi 0, %s166
      %s184 = sphi 0, %s184
      %s186 = sphi 0, %s184
      %s187 = sphi 0, %s186
      %s201 = sphi 0, %s187
      %s205 = sphi 0, %s205
      %s207 = sphi 0, %s205
      %s208 = sphi 0, %s207
      %s222 = sphi 0, %s208
      %s230 = sphi 0, %s232
      %s233 = sphi 0, %s230
      %s234 = sphi 0, %s233
      %s250 = sphi 0, %s234
    $region4: #{tpu_custom_call.1} parent=1 // loop_header_branch
      %25 = sbr.rel (%p23) target = $region8
    $region5: #{tpu_custom_call.1} parent=1 // loop_body
      %s27 = ssub.s32 %s22, 1
      %s28 = ssub.s32 %s22, 2
      %s35 = sadd.s32 1, %s30
      %p36 = scmp.ge.s32.totalorder %s35, 2
      %s37 = scalar_select %p36, 0, %s35
      %s38 = sadd.s32 1, %s29
      %s39 = scalar_select %p36, %s38, %s29
      %p40 = scmp.ge.s32.totalorder %s39, 2
      %s41 = scalar_select %p40, 0, %s39
      %s42 = ssub.s32 %s29, %s41
      %s43 = ssub.s32 %s30, %s37
      %s44 = sor.u32 %s42, %s43
      %p45 = scmp.eq.s32.totalorder %s44, 0
      %s47 = sadd.s32 %s46, 1
      %s48 = scalar_select %p45, %s46, %s47
      %p51 = pneg %p45
      %p52 = scmp.eq.s32.totalorder %s22, 3
      %p53 = por %p51, %p52
      %p54 = scmp.ne.s32.totalorder %s46, %s49
      %p55 = scmp.eq.s32.totalorder %s22, 0
      %p56 = por %p54, %p55
      %p57 = scmp.ne.s32.totalorder %s46, %s49
      %p58 = scmp.eq.s32.totalorder %s27, 3
      %p59 = por %p57, %p58
      %p60 = scmp.ne.s32.totalorder %s49, %s50
      %p61 = scmp.eq.s32.totalorder %s27, 0
      %p62 = por %p60, %p61
      %p63 = scmp.ne.s32.totalorder %s49, %s50
      %p64 = scmp.eq.s32.totalorder %s28, 3
      %p65 = por %p63, %p64
      %p67 = scmp.ne.s32.totalorder %s50, %s66
      %p68 = scmp.eq.s32.totalorder %s28, 0
      %p69 = por %p67, %p68
      %s70 = smul.u32 %s30, 8
      %s71 = ssub.s32 %s70, 1
      %p72 = scmp.gt.s32.totalorder %s71, 0
      %s73 = scalar_select %p72, %s71, 0
      %s74 = smul.u32 %s37, 8
      %s75 = ssub.s32 %s74, 1
      %p76 = scmp.gt.s32.totalorder %s75, 0
      %s77 = scalar_select %p76, %s75, 0
      %s78 = ssub.s32 %s29, %s41
      %s79 = ssub.s32 %s73, %s77
      %s80 = sor.u32 %s78, %s79
      %p81 = scmp.eq.s32.totalorder %s80, 0
      %s83 = sadd.s32 %s82, 1
      %s84 = scalar_select %p81, %s82, %s83
      %p87 = pneg %p81
      %p88 = scmp.eq.s32.totalorder %s22, 3
      %p89 = por %p87, %p88
      %p90 = scmp.ne.s32.totalorder %s82, %s85
      %p91 = scmp.eq.s32.totalorder %s22, 0
      %p92 = por %p90, %p91
      %p93 = scmp.ne.s32.totalorder %s82, %s85
      %p94 = scmp.eq.s32.totalorder %s27, 3
      %p95 = por %p93, %p94
      %p96 = scmp.ne.s32.totalorder %s85, %s86
      %p97 = scmp.eq.s32.totalorder %s27, 0
      %p98 = por %p96, %p97
      %p99 = scmp.ne.s32.totalorder %s85, %s86
      %p100 = scmp.eq.s32.totalorder %s28, 3
      %p101 = por %p99, %p100
      %p103 = scmp.ne.s32.totalorder %s86, %s102
      %p104 = scmp.eq.s32.totalorder %s28, 0
      %p105 = por %p103, %p104
      %s106 = sadd.s32 %s30, 1
      %s107 = smul.u32 %s106, 8
      %p108 = scmp.lt.s32.totalorder %s107, 15
      %s109 = scalar_select %p108, %s107, 15
      %s110 = sadd.s32 %s37, 1
      %s111 = smul.u32 %s110, 8
      %p112 = scmp.lt.s32.totalorder %s111, 15
      %s113 = scalar_select %p112, %s111, 15
      %s114 = ssub.s32 %s29, %s41
      %s115 = ssub.s32 %s109, %s113
      %s116 = sor.u32 %s114, %s115
      %p117 = scmp.eq.s32.totalorder %s116, 0
      %s119 = sadd.s32 %s118, 1
      %s120 = scalar_select %p117, %s118, %s119
      %p123 = pneg %p117
      %p124 = scmp.eq.s32.totalorder %s22, 3
      %p125 = por %p123, %p124
      %p126 = scmp.ne.s32.totalorder %s118, %s121
      %p127 = scmp.eq.s32.totalorder %s22, 0
      %p128 = por %p126, %p127
      %p129 = scmp.ne.s32.totalorder %s118, %s121
      %p130 = scmp.eq.s32.totalorder %s27, 3
      %p131 = por %p129, %p130
      %p132 = scmp.ne.s32.totalorder %s121, %s122
      %p133 = scmp.eq.s32.totalorder %s27, 0
      %p134 = por %p132, %p133
      %p135 = scmp.ne.s32.totalorder %s121, %s122
      %p136 = scmp.eq.s32.totalorder %s28, 3
      %p137 = por %p135, %p136
      %p139 = scmp.ne.s32.totalorder %s122, %s138
      %p140 = scmp.eq.s32.totalorder %s28, 0
      %p141 = por %p139, %p140
      %s143 = sadd.s32 %s142, 1
      %p146 = scmp.eq.s32.totalorder %s22, 3
      %p147 = scmp.ne.s32.totalorder %s142, %s144
      %p148 = scmp.eq.s32.totalorder %s22, 0
      %p149 = por %p147, %p148
      %p150 = scmp.ne.s32.totalorder %s142, %s144
      %p151 = scmp.eq.s32.totalorder %s27, 3
      %p152 = por %p150, %p151
      %p153 = scmp.ne.s32.totalorder %s144, %s145
      %p154 = scmp.eq.s32.totalorder %s27, 0
      %p155 = por %p153, %p154
      %p156 = scmp.ne.s32.totalorder %s144, %s145
      %p157 = scmp.eq.s32.totalorder %s28, 3
      %p158 = por %p156, %p157
      %p160 = scmp.ne.s32.totalorder %s145, %s159
      %p161 = scmp.eq.s32.totalorder %s28, 0
      %p162 = por %p160, %p161
      %s164 = sadd.s32 %s163, 1
      %p167 = scmp.eq.s32.totalorder %s22, 3
      %p168 = scmp.ne.s32.totalorder %s163, %s165
      %p169 = scmp.eq.s32.totalorder %s22, 0
      %p170 = por %p168, %p169
      %p171 = scmp.ne.s32.totalorder %s163, %s165
      %p172 = scmp.eq.s32.totalorder %s27, 3
      %p173 = por %p171, %p172
      %p174 = scmp.ne.s32.totalorder %s165, %s166
      %p175 = scmp.eq.s32.totalorder %s27, 0
      %p176 = por %p174, %p175
      %p177 = scmp.ne.s32.totalorder %s165, %s166
      %p178 = scmp.eq.s32.totalorder %s28, 3
      %p179 = por %p177, %p178
      %p181 = scmp.ne.s32.totalorder %s166, %s180
      %p182 = scmp.eq.s32.totalorder %s28, 0
      %p183 = por %p181, %p182
      %s185 = sadd.s32 %s184, 1
      %p188 = scmp.eq.s32.totalorder %s22, 3
      %p189 = scmp.ne.s32.totalorder %s184, %s186
      %p190 = scmp.eq.s32.totalorder %s22, 0
      %p191 = por %p189, %p190
      %p192 = scmp.ne.s32.totalorder %s184, %s186
      %p193 = scmp.eq.s32.totalorder %s27, 3
      %p194 = por %p192, %p193
      %p195 = scmp.ne.s32.totalorder %s186, %s187
      %p196 = scmp.eq.s32.totalorder %s27, 0
      %p197 = por %p195, %p196
      %p198 = scmp.ne.s32.totalorder %s186, %s187
      %p199 = scmp.eq.s32.totalorder %s28, 3
      %p200 = por %p198, %p199
      %p202 = scmp.ne.s32.totalorder %s187, %s201
      %p203 = scmp.eq.s32.totalorder %s28, 0
      %p204 = por %p202, %p203
      %s206 = sadd.s32 %s205, 1
      %p209 = scmp.eq.s32.totalorder %s22, 3
      %p210 = scmp.ne.s32.totalorder %s205, %s207
      %p211 = scmp.eq.s32.totalorder %s22, 0
      %p212 = por %p210, %p211
      %p213 = scmp.ne.s32.totalorder %s205, %s207
      %p214 = scmp.eq.s32.totalorder %s27, 3
      %p215 = por %p213, %p214
      %p216 = scmp.ne.s32.totalorder %s207, %s208
      %p217 = scmp.eq.s32.totalorder %s27, 0
      %p218 = por %p216, %p217
      %p219 = scmp.ne.s32.totalorder %s207, %s208
      %p220 = scmp.eq.s32.totalorder %s28, 3
      %p221 = por %p219, %p220
      %p223 = scmp.ne.s32.totalorder %s208, %s222
      %p224 = scmp.eq.s32.totalorder %s28, 0
      %p225 = por %p223, %p224
      %s226 = ssub.s32 %s29, %s41
      %s227 = ssub.s32 %s30, %s37
      %s228 = sor.u32 %s226, %s227
      %p229 = scmp.eq.s32.totalorder %s228, 0
      %s231 = sadd.s32 %s230, 1
      %s232 = scalar_select %p229, %s230, %s231
      %p235 = pneg %p229
      %p236 = scmp.eq.s32.totalorder %s22, 3
      %p237 = por %p235, %p236
      %p238 = scmp.ne.s32.totalorder %s230, %s233
      %p239 = scmp.eq.s32.totalorder %s22, 0
      %p240 = por %p238, %p239
      %p241 = scmp.ne.s32.totalorder %s230, %s233
      %p242 = scmp.eq.s32.totalorder %s27, 3
      %p243 = por %p241, %p242
      %p244 = scmp.ne.s32.totalorder %s233, %s234
      %p245 = scmp.eq.s32.totalorder %s27, 0
      %p246 = por %p244, %p245
      %p247 = scmp.ne.s32.totalorder %s233, %s234
      %p248 = scmp.eq.s32.totalorder %s28, 3
      %p249 = por %p247, %p248
      %p251 = scmp.ne.s32.totalorder %s234, %s250
      %p252 = scmp.eq.s32.totalorder %s28, 0
      %p253 = por %p251, %p252
      %p254 = scmp.le.s32.totalorder 1, %s22
      %p255 = scmp.lt.s32.totalorder %s22, 5
      %p256 = pnand %p254, %p255
      %p257 = pneg %p256
      // Predicated region
      $region9: #{tpu_custom_call.1} parent=5 // pred_check
        _
      $region10: #{tpu_custom_call.1} parent=5 // pred_check_branch
        %259 = sbr.rel (%p256) target = $region12
      $region11: #{tpu_custom_call.1} parent=5 // pred_region
        %s260 = ssub.s32 %s22, 1
        // Predicated region
        $region13: #{tpu_custom_call.1} parent=11 // pred_check
          %p261 = pneg %p155
        $region14: #{tpu_custom_call.1} parent=11 // pred_check_branch
          %263 = sbr.rel (%p261) target = $region16
        $region15: #{tpu_custom_call.1} parent=11 // pred_region
          _
        $region16: #{tpu_custom_call.1} parent=11 // pred_fallthru
          _
        // Predicated region
        $region17: #{tpu_custom_call.1} parent=11 // pred_check
          %p264 = pneg %p176
        $region18: #{tpu_custom_call.1} parent=11 // pred_check_branch
          %266 = sbr.rel (%p264) target = $region20
        $region19: #{tpu_custom_call.1} parent=11 // pred_region
          _
        $region20: #{tpu_custom_call.1} parent=11 // pred_fallthru
          _
        // Predicated region
        $region21: #{tpu_custom_call.1} parent=11 // pred_check
          %p267 = pneg %p197
        $region22: #{tpu_custom_call.1} parent=11 // pred_check_branch
          %269 = sbr.rel (%p267) target = $region24
        $region23: #{tpu_custom_call.1} parent=11 // pred_region
          _
        $region24: #{tpu_custom_call.1} parent=11 // pred_fallthru
          _
        // Predicated region
        $region25: #{tpu_custom_call.1} parent=11 // pred_check
          %p270 = pneg %p218
        $region26: #{tpu_custom_call.1} parent=11 // pred_check_branch
          %272 = sbr.rel (%p270) target = $region28
        $region27: #{tpu_custom_call.1} parent=11 // pred_region
          _
        $region28: #{tpu_custom_call.1} parent=11 // pred_fallthru
          _
      $region12: #{tpu_custom_call.1} parent=5 // pred_fallthru
        _
      %p273 = scmp.lt.s32.totalorder %s22, 4
      // Predicated region
      $region29: #{tpu_custom_call.1} parent=5 // pred_check
        %p274 = pneg %p273
      $region30: #{tpu_custom_call.1} parent=5 // pred_check_branch
        %276 = sbr.rel (%p274) target = $region32
      $region31: #{tpu_custom_call.1} parent=5 // pred_region
        // Predicated region
        $region33: #{tpu_custom_call.1} parent=31 // pred_check
          %p277 = pneg %p56
        $region34: #{tpu_custom_call.1} parent=31 // pred_check_branch
          %279 = sbr.rel (%p277) target = $region36
        $region35: #{tpu_custom_call.1} parent=31 // pred_region
          %s280 = sand.u32 %s46, 1
          %s281 = scalar_lea.sflag [#allocation4], %s280
          %s282 = sand.u32 %s46, 1
          %s283 = smul.addr %s282, 128
          %s284 = scalar_lea.vmem [#allocation3], %s283
          %s285 = smul.u32 8, %s30
          %s287 = ssub.s32 2048, 2048
          %288 = vsyncadd %s281, %s287
          %s289 = smul.addr %s285, 2
          %s290 = smul.addr %s29, 32
          %s291 = sadd.s32 %s289, %s290
          %s292 = smul.addr %s291, 128
          %s293 = scalar_lea.hbm %s0, %s292
          %s294 = sshll.u32 %s284, 4
          %s295 = int_to_ptr.vmem [resolvable:$true] %s294
          %300 = dma.hbm_to_vmem [thread:$0]  %s293, 2048, %s295, %s281, 128, 128, 8
        $region36: #{tpu_custom_call.1} parent=31 // pred_fallthru
          _
        // Predicated region
        $region37: #{tpu_custom_call.1} parent=31 // pred_check
          %p301 = pneg %p92
        $region38: #{tpu_custom_call.1} parent=31 // pred_check_branch
          %303 = sbr.rel (%p301) target = $region40
        $region39: #{tpu_custom_call.1} parent=31 // pred_region
          %s304 = sand.u32 %s22, 1
          %s305 = scalar_lea.sflag [#allocation7], %s304
          %s306 = sand.u32 %s82, 1
          %s307 = smul.addr %s306, 16
          %s308 = scalar_lea.vmem [#allocation6], %s307
          %s309 = smul.u32 %s30, 8
          %s310 = ssub.s32 %s309, 1
          %p311 = scmp.gt.s32.totalorder %s310, 0
          %s312 = scalar_select %p311, %s310, 0
          %s314 = ssub.s32 256, 256
          %315 = vsyncadd %s305, %s314
          %s316 = smul.addr %s312, 2
          %s317 = smul.addr %s29, 32
          %s318 = sadd.s32 %s316, %s317
          %s319 = smul.addr %s318, 128
          %s320 = scalar_lea.hbm %s1, %s319
          %s321 = sshll.u32 %s308, 4
          %s322 = int_to_ptr.vmem [resolvable:$true] %s321
          %327 = dma.hbm_to_vmem [thread:$0]  %s320, 256, %s322, %s305, 128, 128, 8
        $region40: #{tpu_custom_call.1} parent=31 // pred_fallthru
          _
        // Predicated region
        $region41: #{tpu_custom_call.1} parent=31 // pred_check
          %p328 = pneg %p128
        $region42: #{tpu_custom_call.1} parent=31 // pred_check_branch
          %330 = sbr.rel (%p328) target = $region44
        $region43: #{tpu_custom_call.1} parent=31 // pred_region
          %s331 = sand.u32 %s22, 1
          %s332 = scalar_lea.sflag [#allocation7], %s331
          %s333 = sand.u32 %s118, 1
          %s334 = smul.addr %s333, 16
          %s335 = scalar_lea.vmem [#allocation8], %s334
          %s336 = sadd.s32 %s30, 1
          %s337 = smul.u32 %s336, 8
          %p338 = scmp.lt.s32.totalorder %s337, 15
          %s339 = scalar_select %p338, %s337, 15
          %s341 = ssub.s32 256, 256
          %342 = vsyncadd %s332, %s341
          %s343 = smul.addr %s339, 2
          %s344 = smul.addr %s29, 32
          %s345 = sadd.s32 %s343, %s344
          %s346 = smul.addr %s345, 128
          %s347 = scalar_lea.hbm %s2, %s346
          %s348 = sshll.u32 %s335, 4
          %s349 = int_to_ptr.vmem [resolvable:$true] %s348
          %354 = dma.hbm_to_vmem [thread:$0]  %s347, 256, %s349, %s332, 128, 128, 8
        $region44: #{tpu_custom_call.1} parent=31 // pred_fallthru
          _
      $region32: #{tpu_custom_call.1} parent=5 // pred_fallthru
        _
      %p355 = scmp.le.s32.totalorder 1, %s22
      %p356 = scmp.lt.s32.totalorder %s22, 5
      %p357 = pnand %p355, %p356
      %p358 = pneg %p357
      // Predicated region
      $region45: #{tpu_custom_call.1} parent=5 // pred_check
        _
      $region46: #{tpu_custom_call.1} parent=5 // pred_check_branch
        %360 = sbr.rel (%p357) target = $region48
      $region47: #{tpu_custom_call.1} parent=5 // pred_region
        %s361 = ssub.s32 %s22, 1
        %s362 = sand.u32 %s49, 1
        %s363 = scalar_lea.sflag [#allocation4], %s362
        %s364 = sand.u32 %s49, 1
        %s365 = smul.addr %s364, 128
        %s366 = scalar_lea.vmem [#allocation3], %s365
        // Predicated region
        $region49: #{tpu_custom_call.1} parent=47 // pred_check
          %p367 = pneg %p62
        $region50: #{tpu_custom_call.1} parent=47 // pred_check_branch
          %369 = sbr.rel (%p367) target = $region52
        $region51: #{tpu_custom_call.1} parent=47 // pred_region
          %370 = dma.done %s363, 2048
        $region52: #{tpu_custom_call.1} parent=47 // pred_fallthru
          _
        %s371 = sand.u32 %s27, 1
        %s372 = scalar_lea.sflag [#allocation7], %s371
        %s373 = sand.u32 %s85, 1
        %s374 = smul.addr %s373, 16
        %s375 = scalar_lea.vmem [#allocation6], %s374
        // Predicated region
        $region53: #{tpu_custom_call.1} parent=47 // pred_check
          %p376 = pneg %p98
        $region54: #{tpu_custom_call.1} parent=47 // pred_check_branch
          %378 = sbr.rel (%p376) target = $region56
        $region55: #{tpu_custom_call.1} parent=47 // pred_region
          %379 = dma.done %s372, 256
        $region56: #{tpu_custom_call.1} parent=47 // pred_fallthru
          _
        %s380 = sand.u32 %s27, 1
        %s381 = scalar_lea.sflag [#allocation7], %s380
        %s382 = sand.u32 %s121, 1
        %s383 = smul.addr %s382, 16
        %s384 = scalar_lea.vmem [#allocation8], %s383
        // Predicated region
        $region57: #{tpu_custom_call.1} parent=47 // pred_check
          %p385 = pneg %p134
        $region58: #{tpu_custom_call.1} parent=47 // pred_check_branch
          %387 = sbr.rel (%p385) target = $region60
        $region59: #{tpu_custom_call.1} parent=47 // pred_region
          %388 = dma.done %s381, 256
        $region60: #{tpu_custom_call.1} parent=47 // pred_fallthru
          _
        %s389 = sand.u32 %s49, 1
        %s390 = scalar_lea.sflag [#allocation4], %s389
        %s391 = sand.u32 %s49, 1
        %s392 = smul.addr %s391, 128
        %s393 = scalar_lea.vmem [#allocation3], %s392
        %p394 = pneg %p62
        %p395 = pneg %p59
        %s396 = sand.u32 %s27, 1
        %s397 = scalar_lea.sflag [#allocation7], %s396
        %s398 = sand.u32 %s85, 1
        %s399 = smul.addr %s398, 16
        %s400 = scalar_lea.vmem [#allocation6], %s399
        %p401 = pneg %p98
        %p402 = pneg %p95
        %s403 = sand.u32 %s27, 1
        %s404 = scalar_lea.sflag [#allocation7], %s403
        %s405 = sand.u32 %s121, 1
        %s406 = smul.addr %s405, 16
        %s407 = scalar_lea.vmem [#allocation8], %s406
        %p408 = pneg %p134
        %p409 = pneg %p131
        %p410 = pneg %p155
        %p411 = pneg %p152
        %p412 = pneg %p176
        %p413 = pneg %p173
        %p414 = pneg %p197
        %p415 = pneg %p194
        %p416 = pneg %p218
        %p417 = pneg %p215
        %p418 = pneg %p246
        %p419 = pneg %p243
        %s420 = sand.u32 %s233, 1
        %s421 = scalar_lea.sflag [#allocation5], %s420
        %s422 = sand.u32 %s233, 1
        %s423 = smul.addr %s422, 128
        %s424 = scalar_lea.vmem [#allocation9], %s423
        %s425 = smul.u32 8, %s32
        %s426 = smul.u32 %s32, 8
        %s427 = ssub.s32 %s426, 1
        %p428 = scmp.gt.s32.totalorder %s427, 0
        %s429 = scalar_select %p428, %s427, 0
        %s430 = sadd.s32 %s32, 1
        %s431 = smul.u32 %s430, 8
        %p432 = scmp.lt.s32.totalorder %s431, 15
        %s433 = scalar_select %p432, %s431, 15
        %s434 = smul.u32 8, %s32
        %v435 = vld [vmem:[%s375] sm:$0xff]
        %v436 = vld [vmem:[%s375 + $0x8] sm:$0xff]
        %v437 = vld [vmem:[%s366] sm:$0xff]
        %v438 = vld [vmem:[%s366 + $0x8] sm:$0xff]
        %v439 = vld [vmem:[%s366 + $0x10] sm:$0xff]
        %v440 = vld [vmem:[%s366 + $0x18] sm:$0xff]
        %v441 = vld [vmem:[%s366 + $0x20] sm:$0xff]
        %v442 = vld [vmem:[%s366 + $0x28] sm:$0xff]
        %v443 = vld [vmem:[%s366 + $0x30] sm:$0xff]
        %v444 = vld [vmem:[%s366 + $0x38] sm:$0xff]
        %v445 = vld [vmem:[%s366 + $0x40] sm:$0xff]
        %v446 = vld [vmem:[%s366 + $0x48] sm:$0xff]
        %v447 = vld [vmem:[%s366 + $0x50] sm:$0xff]
        %v448 = vld [vmem:[%s366 + $0x58] sm:$0xff]
        %v449 = vld [vmem:[%s366 + $0x60] sm:$0xff]
        %v450 = vld [vmem:[%s366 + $0x68] sm:$0xff]
        %v451 = vld [vmem:[%s366 + $0x70] sm:$0xff]
        %v452 = vld [vmem:[%s366 + $0x78] sm:$0xff]
        %v453 = vld [vmem:[%s384] sm:$0xff]
        %v454 = vld [vmem:[%s384 + $0x8] sm:$0xff]
        %v455 = vld [vmem:[%s3] sm:$0xff]
        %v456 = vld [vmem:[%s3 + $0x8] sm:$0xff]
        %v457 = vld [vmem:[%s3 + $0x10] sm:$0xff]
        %v458 = vld [vmem:[%s3 + $0x18] sm:$0xff]
        %v459 = vld [vmem:[%s4] sm:$0x1]
        %v461 = vlaneseq
        %v462 = vshrl.u32 %v461, 7
        %v463 = vsub.s32 0, %v462
        %v464 = vrot.slane %v459, %v463
        %vm466 = vcmask 261120
        %v468 = vsel %vm466, %v435, 0
        %v471 = vsel %vm466, %v436, 0
        %v474 = vsel %vm466, %v437, 0
        %v477 = vsel %vm466, %v438, 0
        %v480 = vsel %vm466, %v439, 0
        %v483 = vsel %vm466, %v440, 0
        %v486 = vsel %vm466, %v441, 0
        %v489 = vsel %vm466, %v442, 0
        %v492 = vsel %vm466, %v443, 0
        %v495 = vsel %vm466, %v444, 0
        %v498 = vsel %vm466, %v445, 0
        %v501 = vsel %vm466, %v446, 0
        %v504 = vsel %vm466, %v447, 0
        %v507 = vsel %vm466, %v448, 0
        %v510 = vsel %vm466, %v449, 0
        %v513 = vsel %vm466, %v450, 0
        %v516 = vsel %vm466, %v451, 0
        %v519 = vsel %vm466, %v452, 0
        %v522 = vsel %vm466, %v453, 0
        %v525 = vsel %vm466, %v454, 0
        %527 = vmatprep.subr.mxu0 0.0
        %528 = vmatpush1.msra.mxu0 0.0
        %529 = vmatprep.subr.mxu0 0.0
        %530 = vmatpush1.msra.mxu0 0.0
        %531 = vmatprep.subr.mxu0 0.0
        %532 = vmatpush1.msra.mxu0 0.0
        %533 = vmatprep.subr.mxu0 0.0
        %534 = vmatpush1.msra.mxu0 0.0
        %535 = vmatprep.subr.mxu0 0.0
        %536 = vmatpush1.msra.mxu0 0.0
        %537 = vmatprep.subr.mxu0 0.0
        %538 = vmatpush1.msra.mxu0 0.0
        %539 = vmatprep.subr.mxu0 0.0
        %540 = vmatpush1.msra.mxu0 0.0
        %541 = vmatprep.subr.mxu0 0.0
        %542 = vmatpush1.msra.mxu0 0.0
        %543 = vmatprep.subr.mxu0 0.0
        %544 = vmatpush1.msra.mxu0 0.0
        %545 = vmatprep.subr.mxu0 0.0
        %546 = vmatpush1.msra.mxu0 0.0
        %547 = vmatprep.subr.mxu0 0.0
        %548 = vmatpush1.msra.mxu0 0.0
        %549 = vmatprep.subr.mxu0 0.0
        %550 = vmatpush1.msra.mxu0 0.0
        %551 = vmatprep.subr.mxu0 0.0
        %552 = vmatpush1.msra.mxu0 %v458
        %553 = vmatprep.subr.mxu0 0.0
        %554 = vmatpush1.msra.mxu0 %v457
        %555 = vmatprep.subr.mxu0 0.0
        %556 = vmatpush1.msra.mxu0 %v456
        %557 = vmatprep.subr.mxu0 0.0
        %558 = vmatpush1.msra.mxu0 %v455
        %559 = vmatprep.subr.mxu0 0.0
        %560 = vmatpush2.msra.mxu0 0.0
        %561 = vmatprep.subr.mxu0 0.0
        %562 = vmatpush2.msra.mxu0 0.0
        %563 = vmatprep.subr.mxu0 0.0
        %564 = vmatpush2.msra.mxu0 0.0
        %565 = vmatprep.subr.mxu0 0.0
        %566 = vmatpush2.msra.mxu0 0.0
        %567 = vmatprep.subr.mxu0 0.0
        %568 = vmatpush2.msra.mxu0 0.0
        %569 = vmatprep.subr.mxu0 0.0
        %570 = vmatpush2.msra.mxu0 0.0
        %571 = vmatprep.subr.mxu0 0.0
        %572 = vmatpush2.msra.mxu0 0.0
        %573 = vmatprep.subr.mxu0 0.0
        %574 = vmatpush2.msra.mxu0 0.0
        %575 = vmatprep.subr.mxu0 0.0
        %576 = vmatpush2.msra.mxu0 0.0
        %577 = vmatprep.subr.mxu0 0.0
        %578 = vmatpush2.msra.mxu0 0.0
        %579 = vmatprep.subr.mxu0 0.0
        %580 = vmatpush2.msra.mxu0 0.0
        %581 = vmatprep.subr.mxu0 0.0
        %582 = vmatpush2.msra.mxu0 0.0
        %583 = vmatprep.subr.mxu0 0.0
        %584 = vmatpush2.msra.mxu0 0.0
        %585 = vmatprep.subr.mxu0 0.0
        %586 = vmatpush2.msra.mxu0 0.0
        %587 = vmatprep.subr.mxu0 0.0
        %588 = vmatpush2.msra.mxu0 0.0
        %589 = vmatprep.subr.mxu0 0.0
        %590 = vmatpush2.msra.mxu0 0.0
        %591 = vmatprep.mubr.f32.mxu0 0.0
        %592 = vmatmul.mubr.f32.gmra.mxu0 %v468
        %v593 = vpop.f32.mrf.mxu0
        %v594 = vadd.f32 %v464, %v593
        %v595 = vpop.f32.mrf.mxu0
        %596 = vmatprep.mubr.f32.mxu0 0.0
        %597 = vmatmul.mubr.f32.gmra.mxu0 %v471
        %v598 = vpop.f32.mrf.mxu0
        %v599 = vadd.f32 %v464, %v598
        %v600 = vpop.f32.mrf.mxu0
        %601 = vmatprep.mubr.f32.mxu0 0.0
        %602 = vmatmul.mubr.f32.gmra.mxu0 %v474
        %v603 = vpop.f32.mrf.mxu0
        %v604 = vadd.f32 %v464, %v603
        %v605 = vpop.f32.mrf.mxu0
        %606 = vmatprep.mubr.f32.mxu0 0.0
        %607 = vmatmul.mubr.f32.gmra.mxu0 %v477
        %v608 = vpop.f32.mrf.mxu0
        %v609 = vadd.f32 %v464, %v608
        %v610 = vpop.f32.mrf.mxu0
        %611 = vmatprep.mubr.f32.mxu0 0.0
        %612 = vmatmul.mubr.f32.gmra.mxu0 %v480
        %v613 = vpop.f32.mrf.mxu0
        %v614 = vadd.f32 %v464, %v613
        %v615 = vpop.f32.mrf.mxu0
        %616 = vmatprep.mubr.f32.mxu0 0.0
        %617 = vmatmul.mubr.f32.gmra.mxu0 %v483
        %v618 = vpop.f32.mrf.mxu0
        %v619 = vadd.f32 %v464, %v618
        %v620 = vpop.f32.mrf.mxu0
        %621 = vmatprep.mubr.f32.mxu0 0.0
        %622 = vmatmul.mubr.f32.gmra.mxu0 %v486
        %v623 = vpop.f32.mrf.mxu0
        %v624 = vadd.f32 %v464, %v623
        %v625 = vpop.f32.mrf.mxu0
        %626 = vmatprep.mubr.f32.mxu0 0.0
        %627 = vmatmul.mubr.f32.gmra.mxu0 %v489
        %v628 = vpop.f32.mrf.mxu0
        %v629 = vadd.f32 %v464, %v628
        %v630 = vpop.f32.mrf.mxu0
        %631 = vmatprep.mubr.f32.mxu0 0.0
        %632 = vmatmul.mubr.f32.gmra.mxu0 %v492
        %v633 = vpop.f32.mrf.mxu0
        %v634 = vadd.f32 %v464, %v633
        %v635 = vpop.f32.mrf.mxu0
        %636 = vmatprep.mubr.f32.mxu0 0.0
        %637 = vmatmul.mubr.f32.gmra.mxu0 %v495
        %v638 = vpop.f32.mrf.mxu0
        %v639 = vadd.f32 %v464, %v638
        %v640 = vpop.f32.mrf.mxu0
        %641 = vmatprep.mubr.f32.mxu0 0.0
        %642 = vmatmul.mubr.f32.gmra.mxu0 %v498
        %v643 = vpop.f32.mrf.mxu0
        %v644 = vadd.f32 %v464, %v643
        %v645 = vpop.f32.mrf.mxu0
        %646 = vmatprep.mubr.f32.mxu0 0.0
        %647 = vmatmul.mubr.f32.gmra.mxu0 %v501
        %v648 = vpop.f32.mrf.mxu0
        %v649 = vadd.f32 %v464, %v648
        %v650 = vpop.f32.mrf.mxu0
        %651 = vmatprep.mubr.f32.mxu0 0.0
        %652 = vmatmul.mubr.f32.gmra.mxu0 %v504
        %v653 = vpop.f32.mrf.mxu0
        %v654 = vadd.f32 %v464, %v653
        %v655 = vpop.f32.mrf.mxu0
        %656 = vmatprep.mubr.f32.mxu0 0.0
        %657 = vmatmul.mubr.f32.gmra.mxu0 %v507
        %v658 = vpop.f32.mrf.mxu0
        %v659 = vadd.f32 %v464, %v658
        %v660 = vpop.f32.mrf.mxu0
        %661 = vmatprep.mubr.f32.mxu0 0.0
        %662 = vmatmul.mubr.f32.gmra.mxu0 %v510
        %v663 = vpop.f32.mrf.mxu0
        %v664 = vadd.f32 %v464, %v663
        %v665 = vpop.f32.mrf.mxu0
        %666 = vmatprep.mubr.f32.mxu0 0.0
        %667 = vmatmul.mubr.f32.gmra.mxu0 %v513
        %v668 = vpop.f32.mrf.mxu0
        %v669 = vadd.f32 %v464, %v668
        %v670 = vpop.f32.mrf.mxu0
        %671 = vmatprep.mubr.f32.mxu0 0.0
        %672 = vmatmul.mubr.f32.gmra.mxu0 %v516
        %v673 = vpop.f32.mrf.mxu0
        %v674 = vadd.f32 %v464, %v673
        %v675 = vpop.f32.mrf.mxu0
        %676 = vmatprep.mubr.f32.mxu0 0.0
        %677 = vmatmul.mubr.f32.gmra.mxu0 %v519
        %v678 = vpop.f32.mrf.mxu0
        %v679 = vadd.f32 %v464, %v678
        %v680 = vpop.f32.mrf.mxu0
        %681 = vmatprep.mubr.f32.mxu0 0.0
        %682 = vmatmul.mubr.f32.gmra.mxu0 %v522
        %v683 = vpop.f32.mrf.mxu0
        %v684 = vadd.f32 %v464, %v683
        %v685 = vpop.f32.mrf.mxu0
        %686 = vmatprep.mubr.f32.mxu0 0.0
        %687 = vmatmul.mubr.f32.gmra.mxu0 %v525
        %v688 = vpop.f32.mrf.mxu0
        %v689 = vadd.f32 %v464, %v688
        %v690 = vpop.f32.mrf.mxu0
        %691 = vdwg.mxu0
        %vm692 = vcmp.gt.f32.partialorder %v594, 0.0
        %vm693 = vcmp.gt.f32.partialorder %v599, 0.0
        %vm694 = vcmp.gt.f32.partialorder %v604, 0.0
        %vm695 = vcmp.gt.f32.partialorder %v609, 0.0
        %vm696 = vcmp.gt.f32.partialorder %v614, 0.0
        %vm697 = vcmp.gt.f32.partialorder %v619, 0.0
        %vm698 = vcmp.gt.f32.partialorder %v624, 0.0
        %vm699 = vcmp.gt.f32.partialorder %v629, 0.0
        %vm700 = vcmp.gt.f32.partialorder %v634, 0.0
        %vm701 = vcmp.gt.f32.partialorder %v639, 0.0
        %vm702 = vcmp.gt.f32.partialorder %v644, 0.0
        %vm703 = vcmp.gt.f32.partialorder %v649, 0.0
        %vm704 = vcmp.gt.f32.partialorder %v654, 0.0
        %vm705 = vcmp.gt.f32.partialorder %v659, 0.0
        %vm706 = vcmp.gt.f32.partialorder %v664, 0.0
        %vm707 = vcmp.gt.f32.partialorder %v669, 0.0
        %vm708 = vcmp.gt.f32.partialorder %v674, 0.0
        %vm709 = vcmp.gt.f32.partialorder %v679, 0.0
        %vm710 = vcmp.gt.f32.partialorder %v684, 0.0
        %vm711 = vcmp.gt.f32.partialorder %v689, 0.0
        %v712 = vmul.f32 %v594, 0.1
        %v713 = vmul.f32 %v599, 0.1
        %v714 = vmul.f32 %v604, 0.1
        %v715 = vmul.f32 %v609, 0.1
        %v716 = vmul.f32 %v614, 0.1
        %v717 = vmul.f32 %v619, 0.1
        %v718 = vmul.f32 %v624, 0.1
        %v719 = vmul.f32 %v629, 0.1
        %v720 = vmul.f32 %v634, 0.1
        %v721 = vmul.f32 %v639, 0.1
        %v722 = vmul.f32 %v644, 0.1
        %v723 = vmul.f32 %v649, 0.1
        %v724 = vmul.f32 %v654, 0.1
        %v725 = vmul.f32 %v659, 0.1
        %v726 = vmul.f32 %v664, 0.1
        %v727 = vmul.f32 %v669, 0.1
        %v728 = vmul.f32 %v674, 0.1
        %v729 = vmul.f32 %v679, 0.1
        %v730 = vmul.f32 %v684, 0.1
        %v731 = vmul.f32 %v689, 0.1
        %v732 = vsel %vm692, %v594, %v712
        %v733 = vsel %vm693, %v599, %v713
        %v734 = vsel %vm694, %v604, %v714
        %v735 = vsel %vm695, %v609, %v715
        %v736 = vsel %vm696, %v614, %v716
        %v737 = vsel %vm697, %v619, %v717
        %v738 = vsel %vm698, %v624, %v718
        %v739 = vsel %vm699, %v629, %v719
        %v740 = vsel %vm700, %v634, %v720
        %v741 = vsel %vm701, %v639, %v721
        %v742 = vsel %vm702, %v644, %v722
        %v743 = vsel %vm703, %v649, %v723
        %v744 = vsel %vm704, %v654, %v724
        %v745 = vsel %vm705, %v659, %v725
        %v746 = vsel %vm706, %v664, %v726
        %v747 = vsel %vm707, %v669, %v727
        %v748 = vsel %vm708, %v674, %v728
        %v749 = vsel %vm709, %v679, %v729
        %v750 = vsel %vm710, %v684, %v730
        %v751 = vsel %vm711, %v689, %v731
        %vm752 = vcmask 130048
        %753 = vst.msk [vmem:[#allocation2 + $0x1] sm:$0xff] %vm752, %v732
        %754 = vst.msk [vmem:[#allocation2 + $0x9] sm:$0xff] %vm752, %v733
        %755 = vst.msk [vmem:[#allocation2 + $0x19] sm:$0xff] %vm752, %v734
        %756 = vst.msk [vmem:[#allocation2 + $0x21] sm:$0xff] %vm752, %v735
        %757 = vst.msk [vmem:[#allocation2 + $0x31] sm:$0xff] %vm752, %v736
        %758 = vst.msk [vmem:[#allocation2 + $0x39] sm:$0xff] %vm752, %v737
        %759 = vst.msk [vmem:[#allocation2 + $0x49] sm:$0xff] %vm752, %v738
        %760 = vst.msk [vmem:[#allocation2 + $0x51] sm:$0xff] %vm752, %v739
        %761 = vst.msk [vmem:[#allocation2 + $0x61] sm:$0xff] %vm752, %v740
        %762 = vst.msk [vmem:[#allocation2 + $0x69] sm:$0xff] %vm752, %v741
        %763 = vst.msk [vmem:[#allocation2 + $0x79] sm:$0xff] %vm752, %v742
        %764 = vst.msk [vmem:[#allocation2 + $0x81] sm:$0xff] %vm752, %v743
        %765 = vst.msk [vmem:[#allocation2 + $0x91] sm:$0xff] %vm752, %v744
        %766 = vst.msk [vmem:[#allocation2 + $0x99] sm:$0xff] %vm752, %v745
        %767 = vst.msk [vmem:[#allocation2 + $0xa9] sm:$0xff] %vm752, %v746
        %768 = vst.msk [vmem:[#allocation2 + $0xb1] sm:$0xff] %vm752, %v747
        %769 = vst.msk [vmem:[#allocation2 + $0xc1] sm:$0xff] %vm752, %v748
        %770 = vst.msk [vmem:[#allocation2 + $0xc9] sm:$0xff] %vm752, %v749
        %771 = vst.msk [vmem:[#allocation2 + $0xd9] sm:$0xff] %vm752, %v750
        %772 = vst.msk [vmem:[#allocation2 + $0xe1] sm:$0xff] %vm752, %v751
        %vm773 = vcmask 122880
        %774 = vst.msk [vmem:[#allocation2] sm:$0x1] %vm773, 0.0
        %775 = vst.msk [vmem:[#allocation2 + $0x18] sm:$0x1] %vm773, 0.0
        %776 = vst.msk [vmem:[#allocation2 + $0x30] sm:$0x1] %vm773, 0.0
        %777 = vst.msk [vmem:[#allocation2 + $0x48] sm:$0x1] %vm773, 0.0
        %778 = vst.msk [vmem:[#allocation2 + $0x60] sm:$0x1] %vm773, 0.0
        %779 = vst.msk [vmem:[#allocation2 + $0x78] sm:$0x1] %vm773, 0.0
        %780 = vst.msk [vmem:[#allocation2 + $0x90] sm:$0x1] %vm773, 0.0
        %781 = vst.msk [vmem:[#allocation2 + $0xa8] sm:$0x1] %vm773, 0.0
        %782 = vst.msk [vmem:[#allocation2 + $0xc0] sm:$0x1] %vm773, 0.0
        %783 = vst.msk [vmem:[#allocation2 + $0xd8] sm:$0x1] %vm773, 0.0
        %784 = vst.msk [vmem:[#allocation2 + $0x11] sm:$0x1] %vm773, 0.0
        %785 = vst.msk [vmem:[#allocation2 + $0x29] sm:$0x1] %vm773, 0.0
        %786 = vst.msk [vmem:[#allocation2 + $0x41] sm:$0x1] %vm773, 0.0
        %787 = vst.msk [vmem:[#allocation2 + $0x59] sm:$0x1] %vm773, 0.0
        %788 = vst.msk [vmem:[#allocation2 + $0x71] sm:$0x1] %vm773, 0.0
        %789 = vst.msk [vmem:[#allocation2 + $0x89] sm:$0x1] %vm773, 0.0
        %790 = vst.msk [vmem:[#allocation2 + $0xa1] sm:$0x1] %vm773, 0.0
        %791 = vst.msk [vmem:[#allocation2 + $0xb9] sm:$0x1] %vm773, 0.0
        %792 = vst.msk [vmem:[#allocation2 + $0xd1] sm:$0x1] %vm773, 0.0
        %793 = vst.msk [vmem:[#allocation2 + $0xe9] sm:$0x1] %vm773, 0.0
        %p794 = scmp.eq.s32.totalorder %s32, 0
        // Predicated region
        $region61: #{tpu_custom_call.1} parent=47 // pred_check
          %p795 = pneg %p794
        $region62: #{tpu_custom_call.1} parent=47 // pred_check_branch
          %797 = sbr.rel (%p795) target = $region64
        $region63: #{tpu_custom_call.1} parent=47 // pred_region
          %798 = vst.msk [vmem:[#allocation2] sm:$0xff] %vm752, 0.0
          %799 = vst.msk [vmem:[#allocation2 + $0x8] sm:$0xff] %vm752, 0.0
          %vm800 = vcmask 123904
          %801 = vst.msk [vmem:[#allocation2 + $0x10] sm:$0x3] %vm800, 0.0
        $region64: #{tpu_custom_call.1} parent=47 // pred_fallthru
          _
        %p802 = scmp.eq.s32.totalorder %s32, 1
        // Predicated region
        $region65: #{tpu_custom_call.1} parent=47 // pred_check
          %p803 = pneg %p802
        $region66: #{tpu_custom_call.1} parent=47 // pred_check_branch
          %805 = sbr.rel (%p803) target = $region68
        $region67: #{tpu_custom_call.1} parent=47 // pred_region
          %s806 = scalar_lea.vmem [#allocation2], 216
          %807 = vst.msk [vmem:[%s806] sm:$0xff] %vm752, 0.0
          %808 = vst.msk [vmem:[%s806 + $0x8] sm:$0xff] %vm752, 0.0
          %vm809 = vcmask 123904
          %810 = vst.msk [vmem:[%s806 + $0x10] sm:$0x3] %vm809, 0.0
        $region68: #{tpu_custom_call.1} parent=47 // pred_fallthru
          _
        %v811 = vld [vmem:[#allocation2] sm:$0xff]
        %v812 = vld [vmem:[#allocation2 + $0x8] sm:$0xff]
        %v813 = vld [vmem:[#allocation2 + $0x18] sm:$0xff]
        %v814 = vld [vmem:[#allocation2 + $0x20] sm:$0xff]
        %v815 = vld [vmem:[#allocation2 + $0x30] sm:$0xff]
        %v816 = vld [vmem:[#allocation2 + $0x38] sm:$0xff]
        %v817 = vld [vmem:[#allocation2 + $0x48] sm:$0xff]
        %v818 = vld [vmem:[#allocation2 + $0x50] sm:$0xff]
        %v819 = vld [vmem:[#allocation2 + $0x60] sm:$0xff]
        %v820 = vld [vmem:[#allocation2 + $0x68] sm:$0xff]
        %v821 = vld [vmem:[#allocation2 + $0x78] sm:$0xff]
        %v822 = vld [vmem:[#allocation2 + $0x80] sm:$0xff]
        %v823 = vld [vmem:[#allocation2 + $0x90] sm:$0xff]
        %v824 = vld [vmem:[#allocation2 + $0x98] sm:$0xff]
        %v825 = vld [vmem:[#allocation2 + $0xa8] sm:$0xff]
        %v826 = vld [vmem:[#allocation2 + $0xb0] sm:$0xff]
        %v827 = vld [vmem:[#allocation2 + $0x1] sm:$0xff]
        %v828 = vld [vmem:[#allocation2 + $0x9] sm:$0xff]
        %v829 = vld [vmem:[#allocation2 + $0x19] sm:$0xff]
        %v830 = vld [vmem:[#allocation2 + $0x21] sm:$0xff]
        %v831 = vld [vmem:[#allocation2 + $0x31] sm:$0xff]
        %v832 = vld [vmem:[#allocation2 + $0x39] sm:$0xff]
        %v833 = vld [vmem:[#allocation2 + $0x49] sm:$0xff]
        %v834 = vld [vmem:[#allocation2 + $0x51] sm:$0xff]
        %v835 = vld [vmem:[#allocation2 + $0x61] sm:$0xff]
        %v836 = vld [vmem:[#allocation2 + $0x69] sm:$0xff]
        %v837 = vld [vmem:[#allocation2 + $0x79] sm:$0xff]
        %v838 = vld [vmem:[#allocation2 + $0x81] sm:$0xff]
        %v839 = vld [vmem:[#allocation2 + $0x91] sm:$0xff]
        %v840 = vld [vmem:[#allocation2 + $0x99] sm:$0xff]
        %v841 = vld [vmem:[#allocation2 + $0xa9] sm:$0xff]
        %v842 = vld [vmem:[#allocation2 + $0xb1] sm:$0xff]
        %v843 = vld [vmem:[#allocation2 + $0x2] sm:$0xff]
        %v844 = vld [vmem:[#allocation2 + $0xa] sm:$0xff]
        %v845 = vld [vmem:[#allocation2 + $0x1a] sm:$0xff]
        %v846 = vld [vmem:[#allocation2 + $0x22] sm:$0xff]
        %v847 = vld [vmem:[#allocation2 + $0x32] sm:$0xff]
        %v848 = vld [vmem:[#allocation2 + $0x3a] sm:$0xff]
        %v849 = vld [vmem:[#allocation2 + $0x4a] sm:$0xff]
        %v850 = vld [vmem:[#allocation2 + $0x52] sm:$0xff]
        %v851 = vld [vmem:[#allocation2 + $0x62] sm:$0xff]
        %v852 = vld [vmem:[#allocation2 + $0x6a] sm:$0xff]
        %v853 = vld [vmem:[#allocation2 + $0x7a] sm:$0xff]
        %v854 = vld [vmem:[#allocation2 + $0x82] sm:$0xff]
        %v855 = vld [vmem:[#allocation2 + $0x92] sm:$0xff]
        %v856 = vld [vmem:[#allocation2 + $0x9a] sm:$0xff]
        %v857 = vld [vmem:[#allocation2 + $0xaa] sm:$0xff]
        %v858 = vld [vmem:[#allocation2 + $0xb2] sm:$0xff]
        %s859 = scalar_lea.vmem [#allocation2], 24
        %v860 = vld [vmem:[%s859] sm:$0xff]
        %v861 = vld [vmem:[%s859 + $0x8] sm:$0xff]
        %v862 = vld [vmem:[%s859 + $0x18] sm:$0xff]
        %v863 = vld [vmem:[%s859 + $0x20] sm:$0xff]
        %v864 = vld [vmem:[%s859 + $0x30] sm:$0xff]
        %v865 = vld [vmem:[%s859 + $0x38] sm:$0xff]
        %v866 = vld [vmem:[%s859 + $0x48] sm:$0xff]
        %v867 = vld [vmem:[%s859 + $0x50] sm:$0xff]
        %v868 = vld [vmem:[%s859 + $0x60] sm:$0xff]
        %v869 = vld [vmem:[%s859 + $0x68] sm:$0xff]
        %v870 = vld [vmem:[%s859 + $0x78] sm:$0xff]
        %v871 = vld [vmem:[%s859 + $0x80] sm:$0xff]
        %v872 = vld [vmem:[%s859 + $0x90] sm:$0xff]
        %v873 = vld [vmem:[%s859 + $0x98] sm:$0xff]
        %v874 = vld [vmem:[%s859 + $0xa8] sm:$0xff]
        %v875 = vld [vmem:[%s859 + $0xb0] sm:$0xff]
        %v876 = vld [vmem:[%s859 + $0x1] sm:$0xff]
        %v877 = vld [vmem:[%s859 + $0x9] sm:$0xff]
        %v878 = vld [vmem:[%s859 + $0x19] sm:$0xff]
        %v879 = vld [vmem:[%s859 + $0x21] sm:$0xff]
        %v880 = vld [vmem:[%s859 + $0x31] sm:$0xff]
        %v881 = vld [vmem:[%s859 + $0x39] sm:$0xff]
        %v882 = vld [vmem:[%s859 + $0x49] sm:$0xff]
        %v883 = vld [vmem:[%s859 + $0x51] sm:$0xff]
        %v884 = vld [vmem:[%s859 + $0x61] sm:$0xff]
        %v885 = vld [vmem:[%s859 + $0x69] sm:$0xff]
        %v886 = vld [vmem:[%s859 + $0x79] sm:$0xff]
        %v887 = vld [vmem:[%s859 + $0x81] sm:$0xff]
        %v888 = vld [vmem:[%s859 + $0x91] sm:$0xff]
        %v889 = vld [vmem:[%s859 + $0x99] sm:$0xff]
        %v890 = vld [vmem:[%s859 + $0xa9] sm:$0xff]
        %v891 = vld [vmem:[%s859 + $0xb1] sm:$0xff]
        %v892 = vld [vmem:[%s859 + $0x2] sm:$0xff]
        %v893 = vld [vmem:[%s859 + $0xa] sm:$0xff]
        %v894 = vld [vmem:[%s859 + $0x1a] sm:$0xff]
        %v895 = vld [vmem:[%s859 + $0x22] sm:$0xff]
        %v896 = vld [vmem:[%s859 + $0x32] sm:$0xff]
        %v897 = vld [vmem:[%s859 + $0x3a] sm:$0xff]
        %v898 = vld [vmem:[%s859 + $0x4a] sm:$0xff]
        %v899 = vld [vmem:[%s859 + $0x52] sm:$0xff]
        %v900 = vld [vmem:[%s859 + $0x62] sm:$0xff]
        %v901 = vld [vmem:[%s859 + $0x6a] sm:$0xff]
        %v902 = vld [vmem:[%s859 + $0x7a] sm:$0xff]
        %v903 = vld [vmem:[%s859 + $0x82] sm:$0xff]
        %v904 = vld [vmem:[%s859 + $0x92] sm:$0xff]
        %v905 = vld [vmem:[%s859 + $0x9a] sm:$0xff]
        %v906 = vld [vmem:[%s859 + $0xaa] sm:$0xff]
        %v907 = vld [vmem:[%s859 + $0xb2] sm:$0xff]
        %s908 = scalar_lea.vmem [#allocation2], 48
        %v909 = vld [vmem:[%s908] sm:$0xff]
        %v910 = vld [vmem:[%s908 + $0x8] sm:$0xff]
        %v911 = vld [vmem:[%s908 + $0x18] sm:$0xff]
        %v912 = vld [vmem:[%s908 + $0x20] sm:$0xff]
        %v913 = vld [vmem:[%s908 + $0x30] sm:$0xff]
        %v914 = vld [vmem:[%s908 + $0x38] sm:$0xff]
        %v915 = vld [vmem:[%s908 + $0x48] sm:$0xff]
        %v916 = vld [vmem:[%s908 + $0x50] sm:$0xff]
        %v917 = vld [vmem:[%s908 + $0x60] sm:$0xff]
        %v918 = vld [vmem:[%s908 + $0x68] sm:$0xff]
        %v919 = vld [vmem:[%s908 + $0x78] sm:$0xff]
        %v920 = vld [vmem:[%s908 + $0x80] sm:$0xff]
        %v921 = vld [vmem:[%s908 + $0x90] sm:$0xff]
        %v922 = vld [vmem:[%s908 + $0x98] sm:$0xff]
        %v923 = vld [vmem:[%s908 + $0xa8] sm:$0xff]
        %v924 = vld [vmem:[%s908 + $0xb0] sm:$0xff]
        %v925 = vld [vmem:[%s908 + $0x1] sm:$0xff]
        %v926 = vld [vmem:[%s908 + $0x9] sm:$0xff]
        %v927 = vld [vmem:[%s908 + $0x19] sm:$0xff]
        %v928 = vld [vmem:[%s908 + $0x21] sm:$0xff]
        %v929 = vld [vmem:[%s908 + $0x31] sm:$0xff]
        %v930 = vld [vmem:[%s908 + $0x39] sm:$0xff]
        %v931 = vld [vmem:[%s908 + $0x49] sm:$0xff]
        %v932 = vld [vmem:[%s908 + $0x51] sm:$0xff]
        %v933 = vld [vmem:[%s908 + $0x61] sm:$0xff]
        %v934 = vld [vmem:[%s908 + $0x69] sm:$0xff]
        %v935 = vld [vmem:[%s908 + $0x79] sm:$0xff]
        %v936 = vld [vmem:[%s908 + $0x81] sm:$0xff]
        %v937 = vld [vmem:[%s908 + $0x91] sm:$0xff]
        %v938 = vld [vmem:[%s908 + $0x99] sm:$0xff]
        %v939 = vld [vmem:[%s908 + $0xa9] sm:$0xff]
        %v940 = vld [vmem:[%s908 + $0xb1] sm:$0xff]
        %v941 = vld [vmem:[%s908 + $0x2] sm:$0xff]
        %v942 = vld [vmem:[%s908 + $0xa] sm:$0xff]
        %v943 = vld [vmem:[%s908 + $0x1a] sm:$0xff]
        %v944 = vld [vmem:[%s908 + $0x22] sm:$0xff]
        %v945 = vld [vmem:[%s908 + $0x32] sm:$0xff]
        %v946 = vld [vmem:[%s908 + $0x3a] sm:$0xff]
        %v947 = vld [vmem:[%s908 + $0x4a] sm:$0xff]
        %v948 = vld [vmem:[%s908 + $0x52] sm:$0xff]
        %v949 = vld [vmem:[%s908 + $0x62] sm:$0xff]
        %v950 = vld [vmem:[%s908 + $0x6a] sm:$0xff]
        %v951 = vld [vmem:[%s908 + $0x7a] sm:$0xff]
        %v952 = vld [vmem:[%s908 + $0x82] sm:$0xff]
        %v953 = vld [vmem:[%s908 + $0x92] sm:$0xff]
        %v954 = vld [vmem:[%s908 + $0x9a] sm:$0xff]
        %v955 = vld [vmem:[%s908 + $0xaa] sm:$0xff]
        %v956 = vld [vmem:[%s908 + $0xb2] sm:$0xff]
        %973 = vrot.lane.b32.xlu0 %v827, 16
        %v974 = vpop.permute.xlu0 %973
        %975 = vrot.lane.b32.xlu0 %v828, 16
        %v976 = vpop.permute.xlu0 %975
        %977 = vrot.lane.b32.xlu0 %v829, 16
        %v978 = vpop.permute.xlu0 %977
        %979 = vrot.lane.b32.xlu0 %v830, 16
        %v980 = vpop.permute.xlu0 %979
        %981 = vrot.lane.b32.xlu0 %v831, 16
        %v982 = vpop.permute.xlu0 %981
        %983 = vrot.lane.b32.xlu0 %v832, 16
        %v984 = vpop.permute.xlu0 %983
        %985 = vrot.lane.b32.xlu0 %v833, 16
        %v986 = vpop.permute.xlu0 %985
        %987 = vrot.lane.b32.xlu0 %v834, 16
        %v988 = vpop.permute.xlu0 %987
        %989 = vrot.lane.b32.xlu0 %v835, 16
        %v990 = vpop.permute.xlu0 %989
        %991 = vrot.lane.b32.xlu0 %v836, 16
        %v992 = vpop.permute.xlu0 %991
        %993 = vrot.lane.b32.xlu0 %v837, 16
        %v994 = vpop.permute.xlu0 %993
        %995 = vrot.lane.b32.xlu0 %v838, 16
        %v996 = vpop.permute.xlu0 %995
        %997 = vrot.lane.b32.xlu0 %v839, 16
        %v998 = vpop.permute.xlu0 %997
        %999 = vrot.lane.b32.xlu0 %v840, 16
        %v1000 = vpop.permute.xlu0 %999
        %1001 = vrot.lane.b32.xlu0 %v841, 16
        %v1002 = vpop.permute.xlu0 %1001
        %1003 = vrot.lane.b32.xlu0 %v842, 16
        %v1004 = vpop.permute.xlu0 %1003
        %1037 = vrot.lane.b32.xlu0 %v843, 32
        %v1038 = vpop.permute.xlu0 %1037
        %1039 = vrot.lane.b32.xlu0 %v844, 32
        %v1040 = vpop.permute.xlu0 %1039
        %1041 = vrot.lane.b32.xlu0 %v845, 32
        %v1042 = vpop.permute.xlu0 %1041
        %1043 = vrot.lane.b32.xlu0 %v846, 32
        %v1044 = vpop.permute.xlu0 %1043
        %1045 = vrot.lane.b32.xlu0 %v847, 32
        %v1046 = vpop.permute.xlu0 %1045
        %1047 = vrot.lane.b32.xlu0 %v848, 32
        %v1048 = vpop.permute.xlu0 %1047
        %1049 = vrot.lane.b32.xlu0 %v849, 32
        %v1050 = vpop.permute.xlu0 %1049
        %1051 = vrot.lane.b32.xlu0 %v850, 32
        %v1052 = vpop.permute.xlu0 %1051
        %1053 = vrot.lane.b32.xlu0 %v851, 32
        %v1054 = vpop.permute.xlu0 %1053
        %1055 = vrot.lane.b32.xlu0 %v852, 32
        %v1056 = vpop.permute.xlu0 %1055
        %1057 = vrot.lane.b32.xlu0 %v853, 32
        %v1058 = vpop.permute.xlu0 %1057
        %1059 = vrot.lane.b32.xlu0 %v854, 32
        %v1060 = vpop.permute.xlu0 %1059
        %1061 = vrot.lane.b32.xlu0 %v855, 32
        %v1062 = vpop.permute.xlu0 %1061
        %1063 = vrot.lane.b32.xlu0 %v856, 32
        %v1064 = vpop.permute.xlu0 %1063
        %1065 = vrot.lane.b32.xlu0 %v857, 32
        %v1066 = vpop.permute.xlu0 %1065
        %1067 = vrot.lane.b32.xlu0 %v858, 32
        %v1068 = vpop.permute.xlu0 %1067
        %1101 = vrot.lane.b32.xlu0 %v860, 48
        %v1102 = vpop.permute.xlu0 %1101
        %1103 = vrot.lane.b32.xlu0 %v861, 48
        %v1104 = vpop.permute.xlu0 %1103
        %1105 = vrot.lane.b32.xlu0 %v862, 48
        %v1106 = vpop.permute.xlu0 %1105
        %1107 = vrot.lane.b32.xlu0 %v863, 48
        %v1108 = vpop.permute.xlu0 %1107
        %1109 = vrot.lane.b32.xlu0 %v864, 48
        %v1110 = vpop.permute.xlu0 %1109
        %1111 = vrot.lane.b32.xlu0 %v865, 48
        %v1112 = vpop.permute.xlu0 %1111
        %1113 = vrot.lane.b32.xlu0 %v866, 48
        %v1114 = vpop.permute.xlu0 %1113
        %1115 = vrot.lane.b32.xlu0 %v867, 48
        %v1116 = vpop.permute.xlu0 %1115
        %1117 = vrot.lane.b32.xlu0 %v868, 48
        %v1118 = vpop.permute.xlu0 %1117
        %1119 = vrot.lane.b32.xlu0 %v869, 48
        %v1120 = vpop.permute.xlu0 %1119
        %1121 = vrot.lane.b32.xlu0 %v870, 48
        %v1122 = vpop.permute.xlu0 %1121
        %1123 = vrot.lane.b32.xlu0 %v871, 48
        %v1124 = vpop.permute.xlu0 %1123
        %1125 = vrot.lane.b32.xlu0 %v872, 48
        %v1126 = vpop.permute.xlu0 %1125
        %1127 = vrot.lane.b32.xlu0 %v873, 48
        %v1128 = vpop.permute.xlu0 %1127
        %1129 = vrot.lane.b32.xlu0 %v874, 48
        %v1130 = vpop.permute.xlu0 %1129
        %1131 = vrot.lane.b32.xlu0 %v875, 48
        %v1132 = vpop.permute.xlu0 %1131
        %1165 = vrot.lane.b32.xlu0 %v876, 64
        %v1166 = vpop.permute.xlu0 %1165
        %1167 = vrot.lane.b32.xlu0 %v877, 64
        %v1168 = vpop.permute.xlu0 %1167
        %1169 = vrot.lane.b32.xlu0 %v878, 64
        %v1170 = vpop.permute.xlu0 %1169
        %1171 = vrot.lane.b32.xlu0 %v879, 64
        %v1172 = vpop.permute.xlu0 %1171
        %1173 = vrot.lane.b32.xlu0 %v880, 64
        %v1174 = vpop.permute.xlu0 %1173
        %1175 = vrot.lane.b32.xlu0 %v881, 64
        %v1176 = vpop.permute.xlu0 %1175
        %1177 = vrot.lane.b32.xlu0 %v882, 64
        %v1178 = vpop.permute.xlu0 %1177
        %1179 = vrot.lane.b32.xlu0 %v883, 64
        %v1180 = vpop.permute.xlu0 %1179
        %1181 = vrot.lane.b32.xlu0 %v884, 64
        %v1182 = vpop.permute.xlu0 %1181
        %1183 = vrot.lane.b32.xlu0 %v885, 64
        %v1184 = vpop.permute.xlu0 %1183
        %1185 = vrot.lane.b32.xlu0 %v886, 64
        %v1186 = vpop.permute.xlu0 %1185
        %1187 = vrot.lane.b32.xlu0 %v887, 64
        %v1188 = vpop.permute.xlu0 %1187
        %1189 = vrot.lane.b32.xlu0 %v888, 64
        %v1190 = vpop.permute.xlu0 %1189
        %1191 = vrot.lane.b32.xlu0 %v889, 64
        %v1192 = vpop.permute.xlu0 %1191
        %1193 = vrot.lane.b32.xlu0 %v890, 64
        %v1194 = vpop.permute.xlu0 %1193
        %1195 = vrot.lane.b32.xlu0 %v891, 64
        %v1196 = vpop.permute.xlu0 %1195
        %1229 = vrot.lane.b32.xlu0 %v892, 80
        %v1230 = vpop.permute.xlu0 %1229
        %1231 = vrot.lane.b32.xlu0 %v893, 80
        %v1232 = vpop.permute.xlu0 %1231
        %1233 = vrot.lane.b32.xlu0 %v894, 80
        %v1234 = vpop.permute.xlu0 %1233
        %1235 = vrot.lane.b32.xlu0 %v895, 80
        %v1236 = vpop.permute.xlu0 %1235
        %1237 = vrot.lane.b32.xlu0 %v896, 80
        %v1238 = vpop.permute.xlu0 %1237
        %1239 = vrot.lane.b32.xlu0 %v897, 80
        %v1240 = vpop.permute.xlu0 %1239
        %1241 = vrot.lane.b32.xlu0 %v898, 80
        %v1242 = vpop.permute.xlu0 %1241
        %1243 = vrot.lane.b32.xlu0 %v899, 80
        %v1244 = vpop.permute.xlu0 %1243
        %1245 = vrot.lane.b32.xlu0 %v900, 80
        %v1246 = vpop.permute.xlu0 %1245
        %1247 = vrot.lane.b32.xlu0 %v901, 80
        %v1248 = vpop.permute.xlu0 %1247
        %1249 = vrot.lane.b32.xlu0 %v902, 80
        %v1250 = vpop.permute.xlu0 %1249
        %1251 = vrot.lane.b32.xlu0 %v903, 80
        %v1252 = vpop.permute.xlu0 %1251
        %1253 = vrot.lane.b32.xlu0 %v904, 80
        %v1254 = vpop.permute.xlu0 %1253
        %1255 = vrot.lane.b32.xlu0 %v905, 80
        %v1256 = vpop.permute.xlu0 %1255
        %1257 = vrot.lane.b32.xlu0 %v906, 80
        %v1258 = vpop.permute.xlu0 %1257
        %1259 = vrot.lane.b32.xlu0 %v907, 80
        %v1260 = vpop.permute.xlu0 %1259
        %1293 = vrot.lane.b32.xlu0 %v909, 96
        %v1294 = vpop.permute.xlu0 %1293
        %1295 = vrot.lane.b32.xlu0 %v910, 96
        %v1296 = vpop.permute.xlu0 %1295
        %1297 = vrot.lane.b32.xlu0 %v911, 96
        %v1298 = vpop.permute.xlu0 %1297
        %1299 = vrot.lane.b32.xlu0 %v912, 96
        %v1300 = vpop.permute.xlu0 %1299
        %1301 = vrot.lane.b32.xlu0 %v913, 96
        %v1302 = vpop.permute.xlu0 %1301
        %1303 = vrot.lane.b32.xlu0 %v914, 96
        %v1304 = vpop.permute.xlu0 %1303
        %1305 = vrot.lane.b32.xlu0 %v915, 96
        %v1306 = vpop.permute.xlu0 %1305
        %1307 = vrot.lane.b32.xlu0 %v916, 96
        %v1308 = vpop.permute.xlu0 %1307
        %1309 = vrot.lane.b32.xlu0 %v917, 96
        %v1310 = vpop.permute.xlu0 %1309
        %1311 = vrot.lane.b32.xlu0 %v918, 96
        %v1312 = vpop.permute.xlu0 %1311
        %1313 = vrot.lane.b32.xlu0 %v919, 96
        %v1314 = vpop.permute.xlu0 %1313
        %1315 = vrot.lane.b32.xlu0 %v920, 96
        %v1316 = vpop.permute.xlu0 %1315
        %1317 = vrot.lane.b32.xlu0 %v921, 96
        %v1318 = vpop.permute.xlu0 %1317
        %1319 = vrot.lane.b32.xlu0 %v922, 96
        %v1320 = vpop.permute.xlu0 %1319
        %1321 = vrot.lane.b32.xlu0 %v923, 96
        %v1322 = vpop.permute.xlu0 %1321
        %1323 = vrot.lane.b32.xlu0 %v924, 96
        %v1324 = vpop.permute.xlu0 %1323
        %1357 = vrot.lane.b32.xlu0 %v925, 112
        %v1358 = vpop.permute.xlu0 %1357
        %1359 = vrot.lane.b32.xlu0 %v926, 112
        %v1360 = vpop.permute.xlu0 %1359
        %1361 = vrot.lane.b32.xlu0 %v927, 112
        %v1362 = vpop.permute.xlu0 %1361
        %1363 = vrot.lane.b32.xlu0 %v928, 112
        %v1364 = vpop.permute.xlu0 %1363
        %1365 = vrot.lane.b32.xlu0 %v929, 112
        %v1366 = vpop.permute.xlu0 %1365
        %1367 = vrot.lane.b32.xlu0 %v930, 112
        %v1368 = vpop.permute.xlu0 %1367
        %1369 = vrot.lane.b32.xlu0 %v931, 112
        %v1370 = vpop.permute.xlu0 %1369
        %1371 = vrot.lane.b32.xlu0 %v932, 112
        %v1372 = vpop.permute.xlu0 %1371
        %1373 = vrot.lane.b32.xlu0 %v933, 112
        %v1374 = vpop.permute.xlu0 %1373
        %1375 = vrot.lane.b32.xlu0 %v934, 112
        %v1376 = vpop.permute.xlu0 %1375
        %1377 = vrot.lane.b32.xlu0 %v935, 112
        %v1378 = vpop.permute.xlu0 %1377
        %1379 = vrot.lane.b32.xlu0 %v936, 112
        %v1380 = vpop.permute.xlu0 %1379
        %1381 = vrot.lane.b32.xlu0 %v937, 112
        %v1382 = vpop.permute.xlu0 %1381
        %1383 = vrot.lane.b32.xlu0 %v938, 112
        %v1384 = vpop.permute.xlu0 %1383
        %1385 = vrot.lane.b32.xlu0 %v939, 112
        %v1386 = vpop.permute.xlu0 %1385
        %1387 = vrot.lane.b32.xlu0 %v940, 112
        %v1388 = vpop.permute.xlu0 %1387
        %v1405 = vsel %vm752, %v811, %v974
        %v1406 = vsel %vm752, %v812, %v976
        %v1407 = vsel %vm752, %v813, %v978
        %v1408 = vsel %vm752, %v814, %v980
        %v1409 = vsel %vm752, %v815, %v982
        %v1410 = vsel %vm752, %v816, %v984
        %v1411 = vsel %vm752, %v817, %v986
        %v1412 = vsel %vm752, %v818, %v988
        %v1413 = vsel %vm752, %v819, %v990
        %v1414 = vsel %vm752, %v820, %v992
        %v1415 = vsel %vm752, %v821, %v994
        %v1416 = vsel %vm752, %v822, %v996
        %v1417 = vsel %vm752, %v823, %v998
        %v1418 = vsel %vm752, %v824, %v1000
        %v1419 = vsel %vm752, %v825, %v1002
        %v1420 = vsel %vm752, %v826, %v1004
        %v1421 = vsel %vm466, %v1405, %v1038
        %v1422 = vsel %vm466, %v1406, %v1040
        %v1423 = vsel %vm466, %v1407, %v1042
        %v1424 = vsel %vm466, %v1408, %v1044
        %v1425 = vsel %vm466, %v1409, %v1046
        %v1426 = vsel %vm466, %v1410, %v1048
        %v1427 = vsel %vm466, %v1411, %v1050
        %v1428 = vsel %vm466, %v1412, %v1052
        %v1429 = vsel %vm466, %v1413, %v1054
        %v1430 = vsel %vm466, %v1414, %v1056
        %v1431 = vsel %vm466, %v1415, %v1058
        %v1432 = vsel %vm466, %v1416, %v1060
        %v1433 = vsel %vm466, %v1417, %v1062
        %v1434 = vsel %vm466, %v1418, %v1064
        %v1435 = vsel %vm466, %v1419, %v1066
        %v1436 = vsel %vm466, %v1420, %v1068
        %vm1437 = vcmask 392192
        %v1438 = vsel %vm1437, %v1421, %v1102
        %v1439 = vsel %vm1437, %v1422, %v1104
        %v1440 = vsel %vm1437, %v1423, %v1106
        %v1441 = vsel %vm1437, %v1424, %v1108
        %v1442 = vsel %vm1437, %v1425, %v1110
        %v1443 = vsel %vm1437, %v1426, %v1112
        %v1444 = vsel %vm1437, %v1427, %v1114
        %v1445 = vsel %vm1437, %v1428, %v1116
        %v1446 = vsel %vm1437, %v1429, %v1118
        %v1447 = vsel %vm1437, %v1430, %v1120
        %v1448 = vsel %vm1437, %v1431, %v1122
        %v1449 = vsel %vm1437, %v1432, %v1124
        %v1450 = vsel %vm1437, %v1433, %v1126
        %v1451 = vsel %vm1437, %v1434, %v1128
        %v1452 = vsel %vm1437, %v1435, %v1130
        %v1453 = vsel %vm1437, %v1436, %v1132
        %vm1454 = vcmask 523264
        %v1455 = vsel %vm1454, %v1438, %v1166
        %v1456 = vsel %vm1454, %v1439, %v1168
        %v1457 = vsel %vm1454, %v1440, %v1170
        %v1458 = vsel %vm1454, %v1441, %v1172
        %v1459 = vsel %vm1454, %v1442, %v1174
        %v1460 = vsel %vm1454, %v1443, %v1176
        %v1461 = vsel %vm1454, %v1444, %v1178
        %v1462 = vsel %vm1454, %v1445, %v1180
        %v1463 = vsel %vm1454, %v1446, %v1182
        %v1464 = vsel %vm1454, %v1447, %v1184
        %v1465 = vsel %vm1454, %v1448, %v1186
        %v1466 = vsel %vm1454, %v1449, %v1188
        %v1467 = vsel %vm1454, %v1450, %v1190
        %v1468 = vsel %vm1454, %v1451, %v1192
        %v1469 = vsel %vm1454, %v1452, %v1194
        %v1470 = vsel %vm1454, %v1453, %v1196
        %vm1471 = vcmask 654336
        %v1472 = vsel %vm1471, %v1455, %v1230
        %v1473 = vsel %vm1471, %v1456, %v1232
        %v1474 = vsel %vm1471, %v1457, %v1234
        %v1475 = vsel %vm1471, %v1458, %v1236
        %v1476 = vsel %vm1471, %v1459, %v1238
        %v1477 = vsel %vm1471, %v1460, %v1240
        %v1478 = vsel %vm1471, %v1461, %v1242
        %v1479 = vsel %vm1471, %v1462, %v1244
        %v1480 = vsel %vm1471, %v1463, %v1246
        %v1481 = vsel %vm1471, %v1464, %v1248
        %v1482 = vsel %vm1471, %v1465, %v1250
        %v1483 = vsel %vm1471, %v1466, %v1252
        %v1484 = vsel %vm1471, %v1467, %v1254
        %v1485 = vsel %vm1471, %v1468, %v1256
        %v1486 = vsel %vm1471, %v1469, %v1258
        %v1487 = vsel %vm1471, %v1470, %v1260
        %vm1488 = vcmask 785408
        %v1489 = vsel %vm1488, %v1472, %v1294
        %v1490 = vsel %vm1488, %v1473, %v1296
        %v1491 = vsel %vm1488, %v1474, %v1298
        %v1492 = vsel %vm1488, %v1475, %v1300
        %v1493 = vsel %vm1488, %v1476, %v1302
        %v1494 = vsel %vm1488, %v1477, %v1304
        %v1495 = vsel %vm1488, %v1478, %v1306
        %v1496 = vsel %vm1488, %v1479, %v1308
        %v1497 = vsel %vm1488, %v1480, %v1310
        %v1498 = vsel %vm1488, %v1481, %v1312
        %v1499 = vsel %vm1488, %v1482, %v1314
        %v1500 = vsel %vm1488, %v1483, %v1316
        %v1501 = vsel %vm1488, %v1484, %v1318
        %v1502 = vsel %vm1488, %v1485, %v1320
        %v1503 = vsel %vm1488, %v1486, %v1322
        %v1504 = vsel %vm1488, %v1487, %v1324
        %vm1505 = vcmask 916480
        %v1506 = vsel %vm1505, %v1489, %v1358
        %v1507 = vsel %vm1505, %v1490, %v1360
        %v1508 = vsel %vm1505, %v1491, %v1362
        %v1509 = vsel %vm1505, %v1492, %v1364
        %v1510 = vsel %vm1505, %v1493, %v1366
        %v1511 = vsel %vm1505, %v1494, %v1368
        %v1512 = vsel %vm1505, %v1495, %v1370
        %v1513 = vsel %vm1505, %v1496, %v1372
        %v1514 = vsel %vm1505, %v1497, %v1374
        %v1515 = vsel %vm1505, %v1498, %v1376
        %v1516 = vsel %vm1505, %v1499, %v1378
        %v1517 = vsel %vm1505, %v1500, %v1380
        %v1518 = vsel %vm1505, %v1501, %v1382
        %v1519 = vsel %vm1505, %v1502, %v1384
        %v1520 = vsel %vm1505, %v1503, %v1386
        %v1521 = vsel %vm1505, %v1504, %v1388
        %v1522 = vld [vmem:[%s5] sm:$0xff]
        %v1523 = vld [vmem:[%s5 + $0x8] sm:$0xff]
        %v1524 = vld [vmem:[%s5 + $0x10] sm:$0xff]
        %v1525 = vld [vmem:[%s5 + $0x18] sm:$0xff]
        %v1526 = vld [vmem:[%s5 + $0x20] sm:$0xff]
        %v1527 = vld [vmem:[%s5 + $0x28] sm:$0xff]
        %v1528 = vld [vmem:[%s5 + $0x30] sm:$0xff]
        %v1529 = vld [vmem:[%s5 + $0x38] sm:$0xff]
        %v1530 = vld [vmem:[%s5 + $0x40] sm:$0xff]
        %v1531 = vld [vmem:[%s5 + $0x48] sm:$0xff]
        %v1532 = vld [vmem:[%s5 + $0x50] sm:$0xff]
        %v1533 = vld [vmem:[%s5 + $0x58] sm:$0xff]
        %v1534 = vld [vmem:[%s5 + $0x60] sm:$0xff]
        %v1535 = vld [vmem:[%s5 + $0x68] sm:$0xff]
        %v1536 = vld [vmem:[%s5 + $0x70] sm:$0xff]
        %v1537 = vld [vmem:[%s5 + $0x78] sm:$0xff]
        %v1538 = vld [vmem:[%s5 + $0x80] sm:$0xff]
        %v1539 = vld [vmem:[%s5 + $0x88] sm:$0xff]
        %v1540 = vld [vmem:[%s6] sm:$0x1]
        %v1542 = vlaneseq
        %v1543 = vshrl.u32 %v1542, 7
        %v1544 = vsub.s32 0, %v1543
        %v1545 = vrot.slane %v1540, %v1544
        %v1548 = vsel %vm752, %v941, 0
        %v1551 = vsel %vm752, %v942, 0
        %v1554 = vsel %vm752, %v943, 0
        %v1557 = vsel %vm752, %v944, 0
        %v1560 = vsel %vm752, %v945, 0
        %v1563 = vsel %vm752, %v946, 0
        %v1566 = vsel %vm752, %v947, 0
        %v1569 = vsel %vm752, %v948, 0
        %v1572 = vsel %vm752, %v949, 0
        %v1575 = vsel %vm752, %v950, 0
        %v1578 = vsel %vm752, %v951, 0
        %v1581 = vsel %vm752, %v952, 0
        %v1584 = vsel %vm752, %v953, 0
        %v1587 = vsel %vm752, %v954, 0
        %v1590 = vsel %vm752, %v955, 0
        %v1593 = vsel %vm752, %v956, 0
        %1595 = vmatprep.subr.mxu0 0.0
        %1596 = vmatpush1.msra.mxu0 %v1537
        %1597 = vmatprep.subr.mxu0 0.0
        %1598 = vmatpush1.msra.mxu0 %v1536
        %1599 = vmatprep.subr.mxu0 0.0
        %1600 = vmatpush1.msra.mxu0 %v1535
        %1601 = vmatprep.subr.mxu0 0.0
        %1602 = vmatpush1.msra.mxu0 %v1534
        %1603 = vmatprep.subr.mxu0 0.0
        %1604 = vmatpush1.msra.mxu0 %v1533
        %1605 = vmatprep.subr.mxu0 0.0
        %1606 = vmatpush1.msra.mxu0 %v1532
        %1607 = vmatprep.subr.mxu0 0.0
        %1608 = vmatpush1.msra.mxu0 %v1531
        %1609 = vmatprep.subr.mxu0 0.0
        %1610 = vmatpush1.msra.mxu0 %v1530
        %1611 = vmatprep.subr.mxu0 0.0
        %1612 = vmatpush1.msra.mxu0 %v1529
        %1613 = vmatprep.subr.mxu0 0.0
        %1614 = vmatpush1.msra.mxu0 %v1528
        %1615 = vmatprep.subr.mxu0 0.0
        %1616 = vmatpush1.msra.mxu0 %v1527
        %1617 = vmatprep.subr.mxu0 0.0
        %1618 = vmatpush1.msra.mxu0 %v1526
        %1619 = vmatprep.subr.mxu0 0.0
        %1620 = vmatpush1.msra.mxu0 %v1525
        %1621 = vmatprep.subr.mxu0 0.0
        %1622 = vmatpush1.msra.mxu0 %v1524
        %1623 = vmatprep.subr.mxu0 0.0
        %1624 = vmatpush1.msra.mxu0 %v1523
        %1625 = vmatprep.subr.mxu0 0.0
        %1626 = vmatpush1.msra.mxu0 %v1522
        %1627 = vmatprep.subr.mxu0 0.0
        %1628 = vmatpush2.msra.mxu0 0.0
        %1629 = vmatprep.subr.mxu0 0.0
        %1630 = vmatpush2.msra.mxu0 0.0
        %1631 = vmatprep.subr.mxu0 0.0
        %1632 = vmatpush2.msra.mxu0 0.0
        %1633 = vmatprep.subr.mxu0 0.0
        %1634 = vmatpush2.msra.mxu0 0.0
        %1635 = vmatprep.subr.mxu0 0.0
        %1636 = vmatpush2.msra.mxu0 0.0
        %1637 = vmatprep.subr.mxu0 0.0
        %1638 = vmatpush2.msra.mxu0 0.0
        %1639 = vmatprep.subr.mxu0 0.0
        %1640 = vmatpush2.msra.mxu0 0.0
        %1641 = vmatprep.subr.mxu0 0.0
        %1642 = vmatpush2.msra.mxu0 0.0
        %1643 = vmatprep.subr.mxu0 0.0
        %1644 = vmatpush2.msra.mxu0 0.0
        %1645 = vmatprep.subr.mxu0 0.0
        %1646 = vmatpush2.msra.mxu0 0.0
        %1647 = vmatprep.subr.mxu0 0.0
        %1648 = vmatpush2.msra.mxu0 0.0
        %1649 = vmatprep.subr.mxu0 0.0
        %1650 = vmatpush2.msra.mxu0 0.0
        %1651 = vmatprep.subr.mxu0 0.0
        %1652 = vmatpush2.msra.mxu0 0.0
        %1653 = vmatprep.subr.mxu0 0.0
        %1654 = vmatpush2.msra.mxu0 0.0
        %1655 = vmatprep.subr.mxu0 0.0
        %1656 = vmatpush2.msra.mxu0 %v1539
        %1657 = vmatprep.subr.mxu0 0.0
        %1658 = vmatpush2.msra.mxu0 %v1538
        %1659 = vmatprep.mubr.f32.mxu0 %v1548
        %1660 = vmatmul.mubr.f32.gmra.mxu0 %v1506
        %v1661 = vpop.f32.mrf.mxu0
        %v1662 = vadd.f32 %v1545, %v1661
        %v1663 = vpop.f32.mrf.mxu0
        %1664 = vmatprep.mubr.f32.mxu0 %v1551
        %1665 = vmatmul.mubr.f32.gmra.mxu0 %v1507
        %v1666 = vpop.f32.mrf.mxu0
        %v1667 = vadd.f32 %v1545, %v1666
        %v1668 = vpop.f32.mrf.mxu0
        %1669 = vmatprep.mubr.f32.mxu0 %v1554
        %1670 = vmatmul.mubr.f32.gmra.mxu0 %v1508
        %v1671 = vpop.f32.mrf.mxu0
        %v1672 = vadd.f32 %v1545, %v1671
        %v1673 = vpop.f32.mrf.mxu0
        %1674 = vmatprep.mubr.f32.mxu0 %v1557
        %1675 = vmatmul.mubr.f32.gmra.mxu0 %v1509
        %v1676 = vpop.f32.mrf.mxu0
        %v1677 = vadd.f32 %v1545, %v1676
        %v1678 = vpop.f32.mrf.mxu0
        %1679 = vmatprep.mubr.f32.mxu0 %v1560
        %1680 = vmatmul.mubr.f32.gmra.mxu0 %v1510
        %v1681 = vpop.f32.mrf.mxu0
        %v1682 = vadd.f32 %v1545, %v1681
        %v1683 = vpop.f32.mrf.mxu0
        %1684 = vmatprep.mubr.f32.mxu0 %v1563
        %1685 = vmatmul.mubr.f32.gmra.mxu0 %v1511
        %v1686 = vpop.f32.mrf.mxu0
        %v1687 = vadd.f32 %v1545, %v1686
        %v1688 = vpop.f32.mrf.mxu0
        %1689 = vmatprep.mubr.f32.mxu0 %v1566
        %1690 = vmatmul.mubr.f32.gmra.mxu0 %v1512
        %v1691 = vpop.f32.mrf.mxu0
        %v1692 = vadd.f32 %v1545, %v1691
        %v1693 = vpop.f32.mrf.mxu0
        %1694 = vmatprep.mubr.f32.mxu0 %v1569
        %1695 = vmatmul.mubr.f32.gmra.mxu0 %v1513
        %v1696 = vpop.f32.mrf.mxu0
        %v1697 = vadd.f32 %v1545, %v1696
        %v1698 = vpop.f32.mrf.mxu0
        %1699 = vmatprep.mubr.f32.mxu0 %v1572
        %1700 = vmatmul.mubr.f32.gmra.mxu0 %v1514
        %v1701 = vpop.f32.mrf.mxu0
        %v1702 = vadd.f32 %v1545, %v1701
        %v1703 = vpop.f32.mrf.mxu0
        %1704 = vmatprep.mubr.f32.mxu0 %v1575
        %1705 = vmatmul.mubr.f32.gmra.mxu0 %v1515
        %v1706 = vpop.f32.mrf.mxu0
        %v1707 = vadd.f32 %v1545, %v1706
        %v1708 = vpop.f32.mrf.mxu0
        %1709 = vmatprep.mubr.f32.mxu0 %v1578
        %1710 = vmatmul.mubr.f32.gmra.mxu0 %v1516
        %v1711 = vpop.f32.mrf.mxu0
        %v1712 = vadd.f32 %v1545, %v1711
        %v1713 = vpop.f32.mrf.mxu0
        %1714 = vmatprep.mubr.f32.mxu0 %v1581
        %1715 = vmatmul.mubr.f32.gmra.mxu0 %v1517
        %v1716 = vpop.f32.mrf.mxu0
        %v1717 = vadd.f32 %v1545, %v1716
        %v1718 = vpop.f32.mrf.mxu0
        %1719 = vmatprep.mubr.f32.mxu0 %v1584
        %1720 = vmatmul.mubr.f32.gmra.mxu0 %v1518
        %v1721 = vpop.f32.mrf.mxu0
        %v1722 = vadd.f32 %v1545, %v1721
        %v1723 = vpop.f32.mrf.mxu0
        %1724 = vmatprep.mubr.f32.mxu0 %v1587
        %1725 = vmatmul.mubr.f32.gmra.mxu0 %v1519
        %v1726 = vpop.f32.mrf.mxu0
        %v1727 = vadd.f32 %v1545, %v1726
        %v1728 = vpop.f32.mrf.mxu0
        %1729 = vmatprep.mubr.f32.mxu0 %v1590
        %1730 = vmatmul.mubr.f32.gmra.mxu0 %v1520
        %v1731 = vpop.f32.mrf.mxu0
        %v1732 = vadd.f32 %v1545, %v1731
        %v1733 = vpop.f32.mrf.mxu0
        %1734 = vmatprep.mubr.f32.mxu0 %v1593
        %1735 = vmatmul.mubr.f32.gmra.mxu0 %v1521
        %v1736 = vpop.f32.mrf.mxu0
        %v1737 = vadd.f32 %v1545, %v1736
        %v1738 = vpop.f32.mrf.mxu0
        %1739 = vdwg.mxu0
        %vm1740 = vcmp.gt.f32.partialorder %v1662, 0.0
        %vm1741 = vcmp.gt.f32.partialorder %v1667, 0.0
        %vm1742 = vcmp.gt.f32.partialorder %v1672, 0.0
        %vm1743 = vcmp.gt.f32.partialorder %v1677, 0.0
        %vm1744 = vcmp.gt.f32.partialorder %v1682, 0.0
        %vm1745 = vcmp.gt.f32.partialorder %v1687, 0.0
        %vm1746 = vcmp.gt.f32.partialorder %v1692, 0.0
        %vm1747 = vcmp.gt.f32.partialorder %v1697, 0.0
        %vm1748 = vcmp.gt.f32.partialorder %v1702, 0.0
        %vm1749 = vcmp.gt.f32.partialorder %v1707, 0.0
        %vm1750 = vcmp.gt.f32.partialorder %v1712, 0.0
        %vm1751 = vcmp.gt.f32.partialorder %v1717, 0.0
        %vm1752 = vcmp.gt.f32.partialorder %v1722, 0.0
        %vm1753 = vcmp.gt.f32.partialorder %v1727, 0.0
        %vm1754 = vcmp.gt.f32.partialorder %v1732, 0.0
        %vm1755 = vcmp.gt.f32.partialorder %v1737, 0.0
        %v1756 = vmul.f32 %v1662, 0.1
        %v1757 = vmul.f32 %v1667, 0.1
        %v1758 = vmul.f32 %v1672, 0.1
        %v1759 = vmul.f32 %v1677, 0.1
        %v1760 = vmul.f32 %v1682, 0.1
        %v1761 = vmul.f32 %v1687, 0.1
        %v1762 = vmul.f32 %v1692, 0.1
        %v1763 = vmul.f32 %v1697, 0.1
        %v1764 = vmul.f32 %v1702, 0.1
        %v1765 = vmul.f32 %v1707, 0.1
        %v1766 = vmul.f32 %v1712, 0.1
        %v1767 = vmul.f32 %v1717, 0.1
        %v1768 = vmul.f32 %v1722, 0.1
        %v1769 = vmul.f32 %v1727, 0.1
        %v1770 = vmul.f32 %v1732, 0.1
        %v1771 = vmul.f32 %v1737, 0.1
        %v1772 = vsel %vm1740, %v1662, %v1756
        %v1773 = vsel %vm1741, %v1667, %v1757
        %v1774 = vsel %vm1742, %v1672, %v1758
        %v1775 = vsel %vm1743, %v1677, %v1759
        %v1776 = vsel %vm1744, %v1682, %v1760
        %v1777 = vsel %vm1745, %v1687, %v1761
        %v1778 = vsel %vm1746, %v1692, %v1762
        %v1779 = vsel %vm1747, %v1697, %v1763
        %v1780 = vsel %vm1748, %v1702, %v1764
        %v1781 = vsel %vm1749, %v1707, %v1765
        %v1782 = vsel %vm1750, %v1712, %v1766
        %v1783 = vsel %vm1751, %v1717, %v1767
        %v1784 = vsel %vm1752, %v1722, %v1768
        %v1785 = vsel %vm1753, %v1727, %v1769
        %v1786 = vsel %vm1754, %v1732, %v1770
        %v1787 = vsel %vm1755, %v1737, %v1771
        %v1788 = vld [vmem:[%s366] sm:$0xff]
        %v1789 = vld [vmem:[%s366 + $0x8] sm:$0xff]
        %v1790 = vld [vmem:[%s366 + $0x10] sm:$0xff]
        %v1791 = vld [vmem:[%s366 + $0x18] sm:$0xff]
        %v1792 = vld [vmem:[%s366 + $0x20] sm:$0xff]
        %v1793 = vld [vmem:[%s366 + $0x28] sm:$0xff]
        %v1794 = vld [vmem:[%s366 + $0x30] sm:$0xff]
        %v1795 = vld [vmem:[%s366 + $0x38] sm:$0xff]
        %v1796 = vld [vmem:[%s366 + $0x40] sm:$0xff]
        %v1797 = vld [vmem:[%s366 + $0x48] sm:$0xff]
        %v1798 = vld [vmem:[%s366 + $0x50] sm:$0xff]
        %v1799 = vld [vmem:[%s366 + $0x58] sm:$0xff]
        %v1800 = vld [vmem:[%s366 + $0x60] sm:$0xff]
        %v1801 = vld [vmem:[%s366 + $0x68] sm:$0xff]
        %v1802 = vld [vmem:[%s366 + $0x70] sm:$0xff]
        %v1803 = vld [vmem:[%s366 + $0x78] sm:$0xff]
        %v1804 = vadd.f32 %v1772, %v1788
        %v1805 = vadd.f32 %v1773, %v1789
        %v1806 = vadd.f32 %v1774, %v1790
        %v1807 = vadd.f32 %v1775, %v1791
        %v1808 = vadd.f32 %v1776, %v1792
        %v1809 = vadd.f32 %v1777, %v1793
        %v1810 = vadd.f32 %v1778, %v1794
        %v1811 = vadd.f32 %v1779, %v1795
        %v1812 = vadd.f32 %v1780, %v1796
        %v1813 = vadd.f32 %v1781, %v1797
        %v1814 = vadd.f32 %v1782, %v1798
        %v1815 = vadd.f32 %v1783, %v1799
        %v1816 = vadd.f32 %v1784, %v1800
        %v1817 = vadd.f32 %v1785, %v1801
        %v1818 = vadd.f32 %v1786, %v1802
        %v1819 = vadd.f32 %v1787, %v1803
        %1820 = vst.msk [vmem:[%s424] sm:$0xff] %vm466, %v1804
        %1821 = vst.msk [vmem:[%s424 + $0x8] sm:$0xff] %vm466, %v1805
        %1822 = vst.msk [vmem:[%s424 + $0x10] sm:$0xff] %vm466, %v1806
        %1823 = vst.msk [vmem:[%s424 + $0x18] sm:$0xff] %vm466, %v1807
        %1824 = vst.msk [vmem:[%s424 + $0x20] sm:$0xff] %vm466, %v1808
        %1825 = vst.msk [vmem:[%s424 + $0x28] sm:$0xff] %vm466, %v1809
        %1826 = vst.msk [vmem:[%s424 + $0x30] sm:$0xff] %vm466, %v1810
        %1827 = vst.msk [vmem:[%s424 + $0x38] sm:$0xff] %vm466, %v1811
        %1828 = vst.msk [vmem:[%s424 + $0x40] sm:$0xff] %vm466, %v1812
        %1829 = vst.msk [vmem:[%s424 + $0x48] sm:$0xff] %vm466, %v1813
        %1830 = vst.msk [vmem:[%s424 + $0x50] sm:$0xff] %vm466, %v1814
        %1831 = vst.msk [vmem:[%s424 + $0x58] sm:$0xff] %vm466, %v1815
        %1832 = vst.msk [vmem:[%s424 + $0x60] sm:$0xff] %vm466, %v1816
        %1833 = vst.msk [vmem:[%s424 + $0x68] sm:$0xff] %vm466, %v1817
        %1834 = vst.msk [vmem:[%s424 + $0x70] sm:$0xff] %vm466, %v1818
        %1835 = vst.msk [vmem:[%s424 + $0x78] sm:$0xff] %vm466, %v1819
        %s1836 = sand.u32 %s233, 1
        %s1837 = scalar_lea.sflag [#allocation5], %s1836
        %s1838 = sand.u32 %s233, 1
        %s1839 = smul.addr %s1838, 128
        %s1840 = scalar_lea.vmem [#allocation9], %s1839
        // Predicated region
        $region69: #{tpu_custom_call.1} parent=47 // pred_check
          %p1841 = pneg %p243
        $region70: #{tpu_custom_call.1} parent=47 // pred_check_branch
          %1843 = sbr.rel (%p1841) target = $region72
        $region71: #{tpu_custom_call.1} parent=47 // pred_region
          %s1844 = smul.u32 8, %s32
          %s1846 = ssub.s32 2048, 2048
          %1847 = vsyncadd %s1837, %s1846
          %s1848 = smul.addr %s1844, 2
          %s1849 = smul.addr %s31, 32
          %s1850 = sadd.s32 %s1848, %s1849
          %s1851 = smul.addr %s1850, 128
          %s1852 = scalar_lea.hbm %s7, %s1851
          %s1853 = sshll.u32 %s1840, 4
          %s1854 = int_to_ptr.vmem [resolvable:$true] %s1853
          %1859 = dma.vmem_to_hbm [thread:$0]  %s1854, 2048, %s1852, %s1837, 128, 128, 8
        $region72: #{tpu_custom_call.1} parent=47 // pred_fallthru
          _
      $region48: #{tpu_custom_call.1} parent=5 // pred_fallthru
        _
      %p1860 = scmp.le.s32.totalorder 2, %s22
      // Predicated region
      $region73: #{tpu_custom_call.1} parent=5 // pred_check
        %p1861 = pneg %p1860
      $region74: #{tpu_custom_call.1} parent=5 // pred_check_branch
        %1863 = sbr.rel (%p1861) target = $region76
      $region75: #{tpu_custom_call.1} parent=5 // pred_region
        %s1864 = ssub.s32 %s22, 2
        // Predicated region
        $region77: #{tpu_custom_call.1} parent=75 // pred_check
          %p1865 = pneg %p249
        $region78: #{tpu_custom_call.1} parent=75 // pred_check_branch
          %1867 = sbr.rel (%p1865) target = $region80
        $region79: #{tpu_custom_call.1} parent=75 // pred_region
          %s1868 = sand.u32 %s234, 1
          %s1869 = scalar_lea.sflag [#allocation5], %s1868
          %s1870 = sand.u32 %s234, 1
          %s1871 = smul.addr %s1870, 128
          %s1872 = scalar_lea.vmem [#allocation9], %s1871
          %1873 = dma.done %s1869, 2048
        $region80: #{tpu_custom_call.1} parent=75 // pred_fallthru
          _
      $region76: #{tpu_custom_call.1} parent=5 // pred_fallthru
        _
    $region6: #{tpu_custom_call.1} parent=1 // loop_footer
      %s26 = sadd.s32 1, %s22
    $region7: #{tpu_custom_call.1} parent=1 // loop_footer_branch
      %21 = sbr.rel target = $region3
    $region8: #{tpu_custom_call.1} parent=1 // loop_exit
      _
    %1874 = vsyncpa [#allocation4], 1
    %s1875 = scalar_lea.sflag [#allocation4], 1
    %1876 = vsyncpa %s1875, 1
    %1877 = vsyncpa [#allocation7], 1
    %s1878 = scalar_lea.sflag [#allocation7], 1
    %1879 = vsyncpa %s1878, 1
    %1880 = vsyncpa [#allocation5], 1
    %s1881 = scalar_lea.sflag [#allocation5], 1
    %1882 = vsyncpa %s1881, 1

</llo_original>
